<compile_context>
chip_gen: v7x
topology: tpu7x:2x2x1
jax: 0.10.0
libtpu: 0.0.40
codegen_flags: <defaults>
</compile_context>

<pallas_src>
import jax
import jax.numpy as jnp
from jax.experimental import pallas as pl
from jax.experimental.pallas import tpu as pltpu

HIDDEN = 256          # Actor hidden_dim (module default)
NUM_RES = 5           # ResNet num_layers
NUM_POL_HIDDEN = 4    # policy hidden Linear+ReLU layers before the output Linear
NEG_INF = -1e30       # bias used for padded (unused) logit lanes

# Row layout of the fused (row, HIDDEN) f32 stack (biases + value-head weight row).
_ROW_FC_B = 0
_ROW_RES_B1 = 1
_ROW_RES_B2 = _ROW_RES_B1 + NUM_RES
_ROW_POL_B = _ROW_RES_B2 + NUM_RES
_ROW_VAL_W = _ROW_POL_B + NUM_POL_HIDDEN
_NUM_BIAS_ROWS = _ROW_VAL_W + 1                       # 16

# Slot layout of the fused (slot, HIDDEN, HIDDEN) bf16 weight stack.
_SLOT_RES_W1 = 0
_SLOT_RES_W2 = NUM_RES
_SLOT_POL_W = 2 * NUM_RES
_NUM_W_SLOTS = _SLOT_POL_W + NUM_POL_HIDDEN           # 14


def _round_up(a, b):
    return ((a + b - 1) // b) * b


def actor_kernel(x_ref, wfc_ref, wstk_ref, wout_ref, b_ref, outb_ref, vb_ref,
                 logp_ref, val_ref):
    bf16 = jnp.bfloat16

    # Embedding: h = x @ Wfc + b  (bf16 MXU inputs, f32 accumulation)
    h = jnp.dot(x_ref[...].astype(bf16), wfc_ref[...],
                preferred_element_type=jnp.float32)
    h = h + b_ref[_ROW_FC_B:_ROW_FC_B + 1, :]

    # 5 residual blocks: h = h + relu(relu(h W1 + b1) W2 + b2)
    for i in range(NUM_RES):
        z = jnp.dot(h.astype(bf16), wstk_ref[_SLOT_RES_W1 + i],
                    preferred_element_type=jnp.float32)
        z = jnp.maximum(z + b_ref[_ROW_RES_B1 + i:_ROW_RES_B1 + i + 1, :], 0.0)
        z = jnp.dot(z.astype(bf16), wstk_ref[_SLOT_RES_W2 + i],
                    preferred_element_type=jnp.float32)
        z = jnp.maximum(z + b_ref[_ROW_RES_B2 + i:_ROW_RES_B2 + i + 1, :], 0.0)
        h = h + z

    # Value head: Linear(H -> 1) as a VPU multiply + XLU lane reduction
    # (avoids a fully wasted N=1 MXU pass). Kept in f32.
    vw_row = b_ref[_ROW_VAL_W:_ROW_VAL_W + 1, :]          # (1, H) f32
    val_ref[...] = jnp.sum(h * vw_row, axis=-1, keepdims=True) + vb_ref[0, 0]

    # Policy MLP: 4x Linear+ReLU.
    # TODO(synk): Dropout(0.2) implemented as eval-mode identity (no RNG mask).
    p = h
    for i in range(NUM_POL_HIDDEN):
        p = jnp.dot(p.astype(bf16), wstk_ref[_SLOT_POL_W + i],
                    preferred_element_type=jnp.float32)
        p = jnp.maximum(p + b_ref[_ROW_POL_B + i:_ROW_POL_B + i + 1, :], 0.0)

    # Output Linear (lane-padded to a multiple of 128) + stable log_softmax.
    # Padded lanes have weight 0 and bias -1e30 -> exp underflows to exactly 0,
    # so they do not perturb the softmax over the real action lanes.
    logits = jnp.dot(p.astype(bf16), wout_ref[...],
                     preferred_element_type=jnp.float32) + outb_ref[...]
    m = jnp.max(logits, axis=-1, keepdims=True)
    s = logits - m
    lse = jnp.log(jnp.sum(jnp.exp(s), axis=-1, keepdims=True))
    logp_ref[...] = s - lse


def pack_params(params, action_dim):
    """One-time parameter fusion: bf16 weights, fused bias stack, lane-padded output."""
    H = HIDDEN
    out_pad = max(128, _round_up(action_dim, 128))

    # (14, H, H) bf16: [res_w1 x5 | res_w2 x5 | pol_w x4]
    w_stack = jnp.concatenate(
        [params["res_w1"], params["res_w2"], params["pol_w"]], axis=0
    ).astype(jnp.bfloat16)

    # Output weight padded with zero columns to a lane-dense width.
    w_out = jnp.zeros((H, out_pad), jnp.float32)
    w_out = w_out.at[:, :action_dim].set(params["pol_out_w"]).astype(jnp.bfloat16)

    # Output bias: real bias in valid lanes, -1e30 in padded lanes.
    out_b = jnp.full((1, out_pad), NEG_INF, jnp.float32)
    out_b = out_b.at[:, :action_dim].set(params["pol_out_b"])

    # (16, H) f32: all per-layer biases + the value-head weight as a row.
    b_stack = jnp.concatenate([
        params["fc_b"],
        params["res_b1"].reshape(NUM_RES, H),
        params["res_b2"].reshape(NUM_RES, H),
        params["pol_b"].reshape(NUM_POL_HIDDEN, H),
        params["val_w"].reshape(1, H),
    ], axis=0)

    return {
        "w_fc": params["fc_w"].astype(jnp.bfloat16),
        "w_stack": w_stack,
        "w_out": w_out,
        "b_stack": b_stack,
        "out_b": out_b,
        "val_b": params["val_b"].reshape(1, 1),   # scalar -> SMEM
        "action_dim": int(action_dim),
    }


def actor_forward(x, packed):
    """x: (B, obs_dim*2) f32 -> (logp: (B, action_dim) f32, val: (B, 1) f32)."""
    B, in_dim = x.shape
    H = HIDDEN
    action_dim = packed["action_dim"]
    out_pad = packed["w_out"].shape[1]

    # Batch tiling: weights stay VMEM-resident, activation tiles pipeline.
    block_b = min(256, _round_up(B, 8))
    b_pad = _round_up(B, block_b)
    if b_pad != B:
        x = jnp.pad(x, ((0, b_pad - B), (0, 0)))
    grid = (b_pad // block_b,)

    out_shape = (
        jax.ShapeDtypeStruct((b_pad, out_pad), jnp.float32),
        jax.ShapeDtypeStruct((b_pad, 1), jnp.float32),
    )
    logp_pad, val_pad = pl.pallas_call(
        actor_kernel,
        out_shape=out_shape,
        grid=grid,
        in_specs=[
            pl.BlockSpec((block_b, in_dim), lambda i: (i, 0)),              # x tile
            pl.BlockSpec((in_dim, H), lambda i: (0, 0)),                    # fc weight
            pl.BlockSpec((_NUM_W_SLOTS, H, H), lambda i: (0, 0, 0)),        # fused HxH weights
            pl.BlockSpec((H, out_pad), lambda i: (0, 0)),                   # output weight
            pl.BlockSpec((_NUM_BIAS_ROWS, H), lambda i: (0, 0)),            # biases + val_w row
            pl.BlockSpec((1, out_pad), lambda i: (0, 0)),                   # padded output bias
            pl.BlockSpec(memory_space=pltpu.MemorySpace.SMEM),              # val_b scalar
        ],
        out_specs=(
            pl.BlockSpec((block_b, out_pad), lambda i: (i, 0)),             # lane-dense logp
            pl.BlockSpec((block_b, 1), lambda i: (i, 0)),                   # value
        ),
        compiler_params=pltpu.CompilerParams(
            dimension_semantics=("parallel",),
            vmem_limit_bytes=32 * 1024 * 1024,
        ),
    )(x, packed["w_fc"], packed["w_stack"], packed["w_out"],
      packed["b_stack"], packed["out_b"], packed["val_b"])

    return logp_pad[:B, :action_dim], val_pad[:B, :]


def init_params(key, obs_dim, action_dim, hidden=HIDDEN):
    """Deterministic synthetic parameters (weights stored as (in, out), f32)."""
    in_dim = obs_dim * 2
    ks = jax.random.split(key, 12)

    def w(k, shape, fan_in):
        return (jax.random.normal(k, shape, jnp.float32) / jnp.sqrt(fan_in)).astype(jnp.float32)

    return {
        "fc_w": w(ks[0], (in_dim, hidden), in_dim),
        "fc_b": w(ks[1], (1, hidden), in_dim),
        "res_w1": w(ks[2], (NUM_RES, hidden, hidden), hidden),
        "res_b1": w(ks[3], (NUM_RES, 1, hidden), hidden),
        "res_w2": w(ks[4], (NUM_RES, hidden, hidden), hidden),
        "res_b2": w(ks[5], (NUM_RES, 1, hidden), hidden),
        "val_w": w(ks[6], (hidden, 1), hidden),
        "val_b": w(ks[7], (1, 1), hidden),
        "pol_w": w(ks[8], (NUM_POL_HIDDEN, hidden, hidden), hidden),
        "pol_b": w(ks[9], (NUM_POL_HIDDEN, 1, hidden), hidden),
        "pol_out_w": w(ks[10], (hidden, action_dim), hidden),
        "pol_out_b": w(ks[11], (1, action_dim), hidden),
    }


def reference_forward(x, params):
    """Pure-JAX reference with the same bf16-weight / f32-accumulation numerics."""
    bf = lambda a: a.astype(jnp.bfloat16)
    h = jnp.dot(bf(x), bf(params["fc_w"]),
                preferred_element_type=jnp.float32) + params["fc_b"]
    for i in range(NUM_RES):
        z = jnp.maximum(jnp.dot(bf(h), bf(params["res_w1"][i]),
                                preferred_element_type=jnp.float32)
                        + params["res_b1"][i], 0.0)
        z = jnp.maximum(jnp.dot(bf(z), bf(params["res_w2"][i]),
                                preferred_element_type=jnp.float32)
                        + params["res_b2"][i], 0.0)
        h = h + z
    val = h @ params["val_w"] + params["val_b"]
    p = h
    for i in range(NUM_POL_HIDDEN):
        p = jnp.maximum(jnp.dot(bf(p), bf(params["pol_w"][i]),
                                preferred_element_type=jnp.float32)
                        + params["pol_b"][i], 0.0)
    logits = jnp.dot(bf(p), bf(params["pol_out_w"]),
                     preferred_element_type=jnp.float32) + params["pol_out_b"]
    return jax.nn.log_softmax(logits, axis=-1), val


if __name__ == "__main__":
    key = jax.random.PRNGKey(0)
    k_param, k_x = jax.random.split(key)

    B = 8
    obs_dim = 16          # input feature dim = obs_dim * 2 = 32
    action_dim = 8

    params = init_params(k_param, obs_dim, action_dim)
    packed = pack_params(params, action_dim)
    x = jax.random.normal(k_x, (B, obs_dim * 2), jnp.float32)

    logp, val = actor_forward(x, packed)
    logp, val = jax.block_until_ready((logp, val))

    ref_logp, ref_val = reference_forward(x, params)
    assert logp.shape == (B, action_dim) and val.shape == (B, 1)
    assert jnp.allclose(logp, ref_logp, atol=1e-3, rtol=1e-3)
    assert jnp.allclose(val, ref_val, atol=1e-3, rtol=1e-3)
    assert bool(jnp.all(jnp.isfinite(logp))) and bool(jnp.all(jnp.isfinite(val)))

    print("KERNEL_OK")
</pallas_src>

<mosaic_0001>
module attributes {stable_mosaic.version = 11 : i64} {
  func.func @actor_kernel(%arg0: i32, %arg1: memref<8x32xf32, #tpu.memory_space<vmem>>, %arg2: memref<32x256xbf16, #tpu.memory_space<vmem>>, %arg3: memref<14x256x256xbf16, #tpu.memory_space<vmem>>, %arg4: memref<256x128xbf16, #tpu.memory_space<vmem>>, %arg5: memref<16x256xf32, #tpu.memory_space<vmem>>, %arg6: memref<1x128xf32, #tpu.memory_space<vmem>>, %arg7: memref<1x1xf32, #tpu.memory_space<smem>>, %arg8: memref<8x128xf32, #tpu.memory_space<vmem>>, %arg9: memref<8x1xf32, #tpu.memory_space<vmem>>) attributes {dimension_semantics = [#tpu.dimension_semantics<parallel>], iteration_bounds = array<i64: 1>, scalar_prefetch = 0 : i64, scratch_operands = 0 : i64, tpu.core_type = #tpu.core_type<tc>, window_params = [{transform_indices = @transform_0, window_bounds = array<i64: 8, 32>}, {pipeline_mode = #tpu.pipeline_mode<synchronous>, transform_indices = @transform_1, window_bounds = array<i64: 32, 256>}, {pipeline_mode = #tpu.pipeline_mode<synchronous>, transform_indices = @transform_2, window_bounds = array<i64: 14, 256, 256>}, {pipeline_mode = #tpu.pipeline_mode<synchronous>, transform_indices = @transform_3, window_bounds = array<i64: 256, 128>}, {pipeline_mode = #tpu.pipeline_mode<synchronous>, transform_indices = @transform_4, window_bounds = array<i64: 16, 256>}, {pipeline_mode = #tpu.pipeline_mode<synchronous>, transform_indices = @transform_5, window_bounds = array<i64: 1, 128>}, {transform_indices = @transform_6, window_bounds = array<i64: 1, 1>}, {transform_indices = @transform_7, window_bounds = array<i64: 8, 128>}, {transform_indices = @transform_8, window_bounds = array<i64: 8, 1>}]} {
    %c0 = arith.constant 0 : index
    %c0_0 = arith.constant 0 : index
    %0 = vector.load %arg1[%c0, %c0_0] : memref<8x32xf32, #tpu.memory_space<vmem>>, vector<8x32xf32>
    %1 = arith.truncf %0 : vector<8x32xf32> to vector<8x32xbf16>
    %c0_1 = arith.constant 0 : index
    %c0_2 = arith.constant 0 : index
    %2 = vector.load %arg2[%c0_1, %c0_2] : memref<32x256xbf16, #tpu.memory_space<vmem>>, vector<32x256xbf16>
    %cst = arith.constant dense<0.000000e+00> : vector<8x256xf32>
    %3 = tpu.matmul %1, %2, %cst {dimension_numbers = #tpu.dot_dimension_numbers<[1], [0], [0], [1], [0, 0, 1, 1], [], []>} : vector<8x32xbf16>, vector<32x256xbf16>, vector<8x256xf32> -> vector<8x256xf32>
    %c0_3 = arith.constant 0 : index
    %c0_4 = arith.constant 0 : index
    %4 = vector.load %arg5[%c0_3, %c0_4] : memref<16x256xf32, #tpu.memory_space<vmem>>, vector<1x256xf32>
    %5 = vector.broadcast %4 : vector<1x256xf32> to vector<8x256xf32>
    %6 = arith.addf %3, %5 : vector<8x256xf32>
    %7 = arith.truncf %6 : vector<8x256xf32> to vector<8x256xbf16>
    %c0_5 = arith.constant 0 : index
    %c0_6 = arith.constant 0 : index
    %c0_7 = arith.constant 0 : index
    %8 = vector.load %arg3[%c0_5, %c0_6, %c0_7] : memref<14x256x256xbf16, #tpu.memory_space<vmem>>, vector<1x256x256xbf16>
    %9 = vector.shape_cast %8 : vector<1x256x256xbf16> to vector<256x256xbf16>
    %cst_8 = arith.constant dense<0.000000e+00> : vector<8x256xf32>
    %10 = tpu.matmul %7, %9, %cst_8 {dimension_numbers = #tpu.dot_dimension_numbers<[1], [0], [0], [1], [0, 0, 1, 1], [], []>} : vector<8x256xbf16>, vector<256x256xbf16>, vector<8x256xf32> -> vector<8x256xf32>
    %c1 = arith.constant 1 : index
    %c0_9 = arith.constant 0 : index
    %11 = vector.load %arg5[%c1, %c0_9] : memref<16x256xf32, #tpu.memory_space<vmem>>, vector<1x256xf32>
    %12 = vector.broadcast %11 : vector<1x256xf32> to vector<8x256xf32>
    %13 = arith.addf %10, %12 : vector<8x256xf32>
    %cst_10 = arith.constant 0.000000e+00 : f32
    %14 = vector.broadcast %cst_10 : f32 to vector<8x256xf32>
    %15 = arith.maximumf %13, %14 : vector<8x256xf32>
    %16 = arith.truncf %15 : vector<8x256xf32> to vector<8x256xbf16>
    %c5 = arith.constant 5 : index
    %c0_11 = arith.constant 0 : index
    %c0_12 = arith.constant 0 : index
    %17 = vector.load %arg3[%c5, %c0_11, %c0_12] : memref<14x256x256xbf16, #tpu.memory_space<vmem>>, vector<1x256x256xbf16>
    %18 = vector.shape_cast %17 : vector<1x256x256xbf16> to vector<256x256xbf16>
    %cst_13 = arith.constant dense<0.000000e+00> : vector<8x256xf32>
    %19 = tpu.matmul %16, %18, %cst_13 {dimension_numbers = #tpu.dot_dimension_numbers<[1], [0], [0], [1], [0, 0, 1, 1], [], []>} : vector<8x256xbf16>, vector<256x256xbf16>, vector<8x256xf32> -> vector<8x256xf32>
    %c6 = arith.constant 6 : index
    %c0_14 = arith.constant 0 : index
    %20 = vector.load %arg5[%c6, %c0_14] : memref<16x256xf32, #tpu.memory_space<vmem>>, vector<1x256xf32>
    %21 = vector.broadcast %20 : vector<1x256xf32> to vector<8x256xf32>
    %22 = arith.addf %19, %21 : vector<8x256xf32>
    %cst_15 = arith.constant 0.000000e+00 : f32
    %23 = vector.broadcast %cst_15 : f32 to vector<8x256xf32>
    %24 = arith.maximumf %22, %23 : vector<8x256xf32>
    %25 = arith.addf %6, %24 : vector<8x256xf32>
    %26 = arith.truncf %25 : vector<8x256xf32> to vector<8x256xbf16>
    %c1_16 = arith.constant 1 : index
    %c0_17 = arith.constant 0 : index
    %c0_18 = arith.constant 0 : index
    %27 = vector.load %arg3[%c1_16, %c0_17, %c0_18] : memref<14x256x256xbf16, #tpu.memory_space<vmem>>, vector<1x256x256xbf16>
    %28 = vector.shape_cast %27 : vector<1x256x256xbf16> to vector<256x256xbf16>
    %cst_19 = arith.constant dense<0.000000e+00> : vector<8x256xf32>
    %29 = tpu.matmul %26, %28, %cst_19 {dimension_numbers = #tpu.dot_dimension_numbers<[1], [0], [0], [1], [0, 0, 1, 1], [], []>} : vector<8x256xbf16>, vector<256x256xbf16>, vector<8x256xf32> -> vector<8x256xf32>
    %c2 = arith.constant 2 : index
    %c0_20 = arith.constant 0 : index
    %30 = vector.load %arg5[%c2, %c0_20] : memref<16x256xf32, #tpu.memory_space<vmem>>, vector<1x256xf32>
    %31 = vector.broadcast %30 : vector<1x256xf32> to vector<8x256xf32>
    %32 = arith.addf %29, %31 : vector<8x256xf32>
    %cst_21 = arith.constant 0.000000e+00 : f32
    %33 = vector.broadcast %cst_21 : f32 to vector<8x256xf32>
    %34 = arith.maximumf %32, %33 : vector<8x256xf32>
    %35 = arith.truncf %34 : vector<8x256xf32> to vector<8x256xbf16>
    %c6_22 = arith.constant 6 : index
    %c0_23 = arith.constant 0 : index
    %c0_24 = arith.constant 0 : index
    %36 = vector.load %arg3[%c6_22, %c0_23, %c0_24] : memref<14x256x256xbf16, #tpu.memory_space<vmem>>, vector<1x256x256xbf16>
    %37 = vector.shape_cast %36 : vector<1x256x256xbf16> to vector<256x256xbf16>
    %cst_25 = arith.constant dense<0.000000e+00> : vector<8x256xf32>
    %38 = tpu.matmul %35, %37, %cst_25 {dimension_numbers = #tpu.dot_dimension_numbers<[1], [0], [0], [1], [0, 0, 1, 1], [], []>} : vector<8x256xbf16>, vector<256x256xbf16>, vector<8x256xf32> -> vector<8x256xf32>
    %c7 = arith.constant 7 : index
    %c0_26 = arith.constant 0 : index
    %39 = vector.load %arg5[%c7, %c0_26] : memref<16x256xf32, #tpu.memory_space<vmem>>, vector<1x256xf32>
    %40 = vector.broadcast %39 : vector<1x256xf32> to vector<8x256xf32>
    %41 = arith.addf %38, %40 : vector<8x256xf32>
    %cst_27 = arith.constant 0.000000e+00 : f32
    %42 = vector.broadcast %cst_27 : f32 to vector<8x256xf32>
    %43 = arith.maximumf %41, %42 : vector<8x256xf32>
    %44 = arith.addf %25, %43 : vector<8x256xf32>
    %45 = arith.truncf %44 : vector<8x256xf32> to vector<8x256xbf16>
    %c2_28 = arith.constant 2 : index
    %c0_29 = arith.constant 0 : index
    %c0_30 = arith.constant 0 : index
    %46 = vector.load %arg3[%c2_28, %c0_29, %c0_30] : memref<14x256x256xbf16, #tpu.memory_space<vmem>>, vector<1x256x256xbf16>
    %47 = vector.shape_cast %46 : vector<1x256x256xbf16> to vector<256x256xbf16>
    %cst_31 = arith.constant dense<0.000000e+00> : vector<8x256xf32>
    %48 = tpu.matmul %45, %47, %cst_31 {dimension_numbers = #tpu.dot_dimension_numbers<[1], [0], [0], [1], [0, 0, 1, 1], [], []>} : vector<8x256xbf16>, vector<256x256xbf16>, vector<8x256xf32> -> vector<8x256xf32>
    %c3 = arith.constant 3 : index
    %c0_32 = arith.constant 0 : index
    %49 = vector.load %arg5[%c3, %c0_32] : memref<16x256xf32, #tpu.memory_space<vmem>>, vector<1x256xf32>
    %50 = vector.broadcast %49 : vector<1x256xf32> to vector<8x256xf32>
    %51 = arith.addf %48, %50 : vector<8x256xf32>
    %cst_33 = arith.constant 0.000000e+00 : f32
    %52 = vector.broadcast %cst_33 : f32 to vector<8x256xf32>
    %53 = arith.maximumf %51, %52 : vector<8x256xf32>
    %54 = arith.truncf %53 : vector<8x256xf32> to vector<8x256xbf16>
    %c7_34 = arith.constant 7 : index
    %c0_35 = arith.constant 0 : index
    %c0_36 = arith.constant 0 : index
    %55 = vector.load %arg3[%c7_34, %c0_35, %c0_36] : memref<14x256x256xbf16, #tpu.memory_space<vmem>>, vector<1x256x256xbf16>
    %56 = vector.shape_cast %55 : vector<1x256x256xbf16> to vector<256x256xbf16>
    %cst_37 = arith.constant dense<0.000000e+00> : vector<8x256xf32>
    %57 = tpu.matmul %54, %56, %cst_37 {dimension_numbers = #tpu.dot_dimension_numbers<[1], [0], [0], [1], [0, 0, 1, 1], [], []>} : vector<8x256xbf16>, vector<256x256xbf16>, vector<8x256xf32> -> vector<8x256xf32>
    %c8 = arith.constant 8 : index
    %c0_38 = arith.constant 0 : index
    %58 = vector.load %arg5[%c8, %c0_38] : memref<16x256xf32, #tpu.memory_space<vmem>>, vector<1x256xf32>
    %59 = vector.broadcast %58 : vector<1x256xf32> to vector<8x256xf32>
    %60 = arith.addf %57, %59 : vector<8x256xf32>
    %cst_39 = arith.constant 0.000000e+00 : f32
    %61 = vector.broadcast %cst_39 : f32 to vector<8x256xf32>
    %62 = arith.maximumf %60, %61 : vector<8x256xf32>
    %63 = arith.addf %44, %62 : vector<8x256xf32>
    %64 = arith.truncf %63 : vector<8x256xf32> to vector<8x256xbf16>
    %c3_40 = arith.constant 3 : index
    %c0_41 = arith.constant 0 : index
    %c0_42 = arith.constant 0 : index
    %65 = vector.load %arg3[%c3_40, %c0_41, %c0_42] : memref<14x256x256xbf16, #tpu.memory_space<vmem>>, vector<1x256x256xbf16>
    %66 = vector.shape_cast %65 : vector<1x256x256xbf16> to vector<256x256xbf16>
    %cst_43 = arith.constant dense<0.000000e+00> : vector<8x256xf32>
    %67 = tpu.matmul %64, %66, %cst_43 {dimension_numbers = #tpu.dot_dimension_numbers<[1], [0], [0], [1], [0, 0, 1, 1], [], []>} : vector<8x256xbf16>, vector<256x256xbf16>, vector<8x256xf32> -> vector<8x256xf32>
    %c4 = arith.constant 4 : index
    %c0_44 = arith.constant 0 : index
    %68 = vector.load %arg5[%c4, %c0_44] : memref<16x256xf32, #tpu.memory_space<vmem>>, vector<1x256xf32>
    %69 = vector.broadcast %68 : vector<1x256xf32> to vector<8x256xf32>
    %70 = arith.addf %67, %69 : vector<8x256xf32>
    %cst_45 = arith.constant 0.000000e+00 : f32
    %71 = vector.broadcast %cst_45 : f32 to vector<8x256xf32>
    %72 = arith.maximumf %70, %71 : vector<8x256xf32>
    %73 = arith.truncf %72 : vector<8x256xf32> to vector<8x256xbf16>
    %c8_46 = arith.constant 8 : index
    %c0_47 = arith.constant 0 : index
    %c0_48 = arith.constant 0 : index
    %74 = vector.load %arg3[%c8_46, %c0_47, %c0_48] : memref<14x256x256xbf16, #tpu.memory_space<vmem>>, vector<1x256x256xbf16>
    %75 = vector.shape_cast %74 : vector<1x256x256xbf16> to vector<256x256xbf16>
    %cst_49 = arith.constant dense<0.000000e+00> : vector<8x256xf32>
    %76 = tpu.matmul %73, %75, %cst_49 {dimension_numbers = #tpu.dot_dimension_numbers<[1], [0], [0], [1], [0, 0, 1, 1], [], []>} : vector<8x256xbf16>, vector<256x256xbf16>, vector<8x256xf32> -> vector<8x256xf32>
    %c9 = arith.constant 9 : index
    %c0_50 = arith.constant 0 : index
    %77 = vector.load %arg5[%c9, %c0_50] : memref<16x256xf32, #tpu.memory_space<vmem>>, vector<1x256xf32>
    %78 = vector.broadcast %77 : vector<1x256xf32> to vector<8x256xf32>
    %79 = arith.addf %76, %78 : vector<8x256xf32>
    %cst_51 = arith.constant 0.000000e+00 : f32
    %80 = vector.broadcast %cst_51 : f32 to vector<8x256xf32>
    %81 = arith.maximumf %79, %80 : vector<8x256xf32>
    %82 = arith.addf %63, %81 : vector<8x256xf32>
    %83 = arith.truncf %82 : vector<8x256xf32> to vector<8x256xbf16>
    %c4_52 = arith.constant 4 : index
    %c0_53 = arith.constant 0 : index
    %c0_54 = arith.constant 0 : index
    %84 = vector.load %arg3[%c4_52, %c0_53, %c0_54] : memref<14x256x256xbf16, #tpu.memory_space<vmem>>, vector<1x256x256xbf16>
    %85 = vector.shape_cast %84 : vector<1x256x256xbf16> to vector<256x256xbf16>
    %cst_55 = arith.constant dense<0.000000e+00> : vector<8x256xf32>
    %86 = tpu.matmul %83, %85, %cst_55 {dimension_numbers = #tpu.dot_dimension_numbers<[1], [0], [0], [1], [0, 0, 1, 1], [], []>} : vector<8x256xbf16>, vector<256x256xbf16>, vector<8x256xf32> -> vector<8x256xf32>
    %c5_56 = arith.constant 5 : index
    %c0_57 = arith.constant 0 : index
    %87 = vector.load %arg5[%c5_56, %c0_57] : memref<16x256xf32, #tpu.memory_space<vmem>>, vector<1x256xf32>
    %88 = vector.broadcast %87 : vector<1x256xf32> to vector<8x256xf32>
    %89 = arith.addf %86, %88 : vector<8x256xf32>
    %cst_58 = arith.constant 0.000000e+00 : f32
    %90 = vector.broadcast %cst_58 : f32 to vector<8x256xf32>
    %91 = arith.maximumf %89, %90 : vector<8x256xf32>
    %92 = arith.truncf %91 : vector<8x256xf32> to vector<8x256xbf16>
    %c9_59 = arith.constant 9 : index
    %c0_60 = arith.constant 0 : index
    %c0_61 = arith.constant 0 : index
    %93 = vector.load %arg3[%c9_59, %c0_60, %c0_61] : memref<14x256x256xbf16, #tpu.memory_space<vmem>>, vector<1x256x256xbf16>
    %94 = vector.shape_cast %93 : vector<1x256x256xbf16> to vector<256x256xbf16>
    %cst_62 = arith.constant dense<0.000000e+00> : vector<8x256xf32>
    %95 = tpu.matmul %92, %94, %cst_62 {dimension_numbers = #tpu.dot_dimension_numbers<[1], [0], [0], [1], [0, 0, 1, 1], [], []>} : vector<8x256xbf16>, vector<256x256xbf16>, vector<8x256xf32> -> vector<8x256xf32>
    %c10 = arith.constant 10 : index
    %c0_63 = arith.constant 0 : index
    %96 = vector.load %arg5[%c10, %c0_63] : memref<16x256xf32, #tpu.memory_space<vmem>>, vector<1x256xf32>
    %97 = vector.broadcast %96 : vector<1x256xf32> to vector<8x256xf32>
    %98 = arith.addf %95, %97 : vector<8x256xf32>
    %cst_64 = arith.constant 0.000000e+00 : f32
    %99 = vector.broadcast %cst_64 : f32 to vector<8x256xf32>
    %100 = arith.maximumf %98, %99 : vector<8x256xf32>
    %101 = arith.addf %82, %100 : vector<8x256xf32>
    %c15 = arith.constant 15 : index
    %c0_65 = arith.constant 0 : index
    %102 = vector.load %arg5[%c15, %c0_65] : memref<16x256xf32, #tpu.memory_space<vmem>>, vector<1x256xf32>
    %103 = vector.broadcast %102 : vector<1x256xf32> to vector<8x256xf32>
    %104 = arith.mulf %101, %103 : vector<8x256xf32>
    %cst_66 = arith.constant dense<0.000000e+00> : vector<8xf32>
    %105 = vector.multi_reduction <add>, %104, %cst_66 [1] : vector<8x256xf32> to vector<8xf32>
    %106 = vector.shape_cast %105 : vector<8xf32> to vector<8x1xf32>
    %c0_67 = arith.constant 0 : index
    %c0_68 = arith.constant 0 : index
    %107 = memref.load %arg7[%c0_67, %c0_68] : memref<1x1xf32, #tpu.memory_space<smem>>
    %108 = vector.broadcast %107 : f32 to vector<8x1xf32>
    %109 = arith.addf %106, %108 : vector<8x1xf32>
    %c0_69 = arith.constant 0 : index
    %c0_70 = arith.constant 0 : index
    %110 = vector.load %arg9[%c0_69, %c0_70] : memref<8x1xf32, #tpu.memory_space<vmem>>, vector<8x1xf32>
    tpu.vector_store %arg9[%c0_69, %c0_70], %109 {strides = array<i32>} : memref<8x1xf32, #tpu.memory_space<vmem>>, vector<8x1xf32>,
    %111 = arith.truncf %101 : vector<8x256xf32> to vector<8x256xbf16>
    %c10_71 = arith.constant 10 : index
    %c0_72 = arith.constant 0 : index
    %c0_73 = arith.constant 0 : index
    %112 = vector.load %arg3[%c10_71, %c0_72, %c0_73] : memref<14x256x256xbf16, #tpu.memory_space<vmem>>, vector<1x256x256xbf16>
    %113 = vector.shape_cast %112 : vector<1x256x256xbf16> to vector<256x256xbf16>
    %cst_74 = arith.constant dense<0.000000e+00> : vector<8x256xf32>
    %114 = tpu.matmul %111, %113, %cst_74 {dimension_numbers = #tpu.dot_dimension_numbers<[1], [0], [0], [1], [0, 0, 1, 1], [], []>} : vector<8x256xbf16>, vector<256x256xbf16>, vector<8x256xf32> -> vector<8x256xf32>
    %c11 = arith.constant 11 : index
    %c0_75 = arith.constant 0 : index
    %115 = vector.load %arg5[%c11, %c0_75] : memref<16x256xf32, #tpu.memory_space<vmem>>, vector<1x256xf32>
    %116 = vector.broadcast %115 : vector<1x256xf32> to vector<8x256xf32>
    %117 = arith.addf %114, %116 : vector<8x256xf32>
    %cst_76 = arith.constant 0.000000e+00 : f32
    %118 = vector.broadcast %cst_76 : f32 to vector<8x256xf32>
    %119 = arith.maximumf %117, %118 : vector<8x256xf32>
    %120 = arith.truncf %119 : vector<8x256xf32> to vector<8x256xbf16>
    %c11_77 = arith.constant 11 : index
    %c0_78 = arith.constant 0 : index
    %c0_79 = arith.constant 0 : index
    %121 = vector.load %arg3[%c11_77, %c0_78, %c0_79] : memref<14x256x256xbf16, #tpu.memory_space<vmem>>, vector<1x256x256xbf16>
    %122 = vector.shape_cast %121 : vector<1x256x256xbf16> to vector<256x256xbf16>
    %cst_80 = arith.constant dense<0.000000e+00> : vector<8x256xf32>
    %123 = tpu.matmul %120, %122, %cst_80 {dimension_numbers = #tpu.dot_dimension_numbers<[1], [0], [0], [1], [0, 0, 1, 1], [], []>} : vector<8x256xbf16>, vector<256x256xbf16>, vector<8x256xf32> -> vector<8x256xf32>
    %c12 = arith.constant 12 : index
    %c0_81 = arith.constant 0 : index
    %124 = vector.load %arg5[%c12, %c0_81] : memref<16x256xf32, #tpu.memory_space<vmem>>, vector<1x256xf32>
    %125 = vector.broadcast %124 : vector<1x256xf32> to vector<8x256xf32>
    %126 = arith.addf %123, %125 : vector<8x256xf32>
    %cst_82 = arith.constant 0.000000e+00 : f32
    %127 = vector.broadcast %cst_82 : f32 to vector<8x256xf32>
    %128 = arith.maximumf %126, %127 : vector<8x256xf32>
    %129 = arith.truncf %128 : vector<8x256xf32> to vector<8x256xbf16>
    %c12_83 = arith.constant 12 : index
    %c0_84 = arith.constant 0 : index
    %c0_85 = arith.constant 0 : index
    %130 = vector.load %arg3[%c12_83, %c0_84, %c0_85] : memref<14x256x256xbf16, #tpu.memory_space<vmem>>, vector<1x256x256xbf16>
    %131 = vector.shape_cast %130 : vector<1x256x256xbf16> to vector<256x256xbf16>
    %cst_86 = arith.constant dense<0.000000e+00> : vector<8x256xf32>
    %132 = tpu.matmul %129, %131, %cst_86 {dimension_numbers = #tpu.dot_dimension_numbers<[1], [0], [0], [1], [0, 0, 1, 1], [], []>} : vector<8x256xbf16>, vector<256x256xbf16>, vector<8x256xf32> -> vector<8x256xf32>
    %c13 = arith.constant 13 : index
    %c0_87 = arith.constant 0 : index
    %133 = vector.load %arg5[%c13, %c0_87] : memref<16x256xf32, #tpu.memory_space<vmem>>, vector<1x256xf32>
    %134 = vector.broadcast %133 : vector<1x256xf32> to vector<8x256xf32>
    %135 = arith.addf %132, %134 : vector<8x256xf32>
    %cst_88 = arith.constant 0.000000e+00 : f32
    %136 = vector.broadcast %cst_88 : f32 to vector<8x256xf32>
    %137 = arith.maximumf %135, %136 : vector<8x256xf32>
    %138 = arith.truncf %137 : vector<8x256xf32> to vector<8x256xbf16>
    %c13_89 = arith.constant 13 : index
    %c0_90 = arith.constant 0 : index
    %c0_91 = arith.constant 0 : index
    %139 = vector.load %arg3[%c13_89, %c0_90, %c0_91] : memref<14x256x256xbf16, #tpu.memory_space<vmem>>, vector<1x256x256xbf16>
    %140 = vector.shape_cast %139 : vector<1x256x256xbf16> to vector<256x256xbf16>
    %cst_92 = arith.constant dense<0.000000e+00> : vector<8x256xf32>
    %141 = tpu.matmul %138, %140, %cst_92 {dimension_numbers = #tpu.dot_dimension_numbers<[1], [0], [0], [1], [0, 0, 1, 1], [], []>} : vector<8x256xbf16>, vector<256x256xbf16>, vector<8x256xf32> -> vector<8x256xf32>
    %c14 = arith.constant 14 : index
    %c0_93 = arith.constant 0 : index
    %142 = vector.load %arg5[%c14, %c0_93] : memref<16x256xf32, #tpu.memory_space<vmem>>, vector<1x256xf32>
    %143 = vector.broadcast %142 : vector<1x256xf32> to vector<8x256xf32>
    %144 = arith.addf %141, %143 : vector<8x256xf32>
    %cst_94 = arith.constant 0.000000e+00 : f32
    %145 = vector.broadcast %cst_94 : f32 to vector<8x256xf32>
    %146 = arith.maximumf %144, %145 : vector<8x256xf32>
    %147 = arith.truncf %146 : vector<8x256xf32> to vector<8x256xbf16>
    %c0_95 = arith.constant 0 : index
    %c0_96 = arith.constant 0 : index
    %148 = vector.load %arg4[%c0_95, %c0_96] : memref<256x128xbf16, #tpu.memory_space<vmem>>, vector<256x128xbf16>
    %cst_97 = arith.constant dense<0.000000e+00> : vector<8x128xf32>
    %149 = tpu.matmul %147, %148, %cst_97 {dimension_numbers = #tpu.dot_dimension_numbers<[1], [0], [0], [1], [0, 0, 1, 1], [], []>} : vector<8x256xbf16>, vector<256x128xbf16>, vector<8x128xf32> -> vector<8x128xf32>
    %c0_98 = arith.constant 0 : index
    %c0_99 = arith.constant 0 : index
    %150 = vector.load %arg6[%c0_98, %c0_99] : memref<1x128xf32, #tpu.memory_space<vmem>>, vector<1x128xf32>
    %151 = vector.broadcast %150 : vector<1x128xf32> to vector<8x128xf32>
    %152 = arith.addf %149, %151 : vector<8x128xf32>
    %cst_100 = arith.constant dense<0xFF800000> : vector<8xf32>
    %153 = vector.multi_reduction <maximumf>, %152, %cst_100 [1] : vector<8x128xf32> to vector<8xf32>
    %154 = vector.shape_cast %153 : vector<8xf32> to vector<8x1xf32>
    %155 = vector.broadcast %154 : vector<8x1xf32> to vector<8x128xf32>
    %156 = arith.subf %152, %155 : vector<8x128xf32>
    %157 = math.exp %156 : vector<8x128xf32>
    %cst_101 = arith.constant dense<0.000000e+00> : vector<8xf32>
    %158 = vector.multi_reduction <add>, %157, %cst_101 [1] : vector<8x128xf32> to vector<8xf32>
    %159 = vector.shape_cast %158 : vector<8xf32> to vector<8x1xf32>
    %160 = math.log %159 : vector<8x1xf32>
    %161 = vector.broadcast %160 : vector<8x1xf32> to vector<8x128xf32>
    %162 = arith.subf %156, %161 : vector<8x128xf32>
    %c0_102 = arith.constant 0 : index
    %c0_103 = arith.constant 0 : index
    %163 = vector.load %arg8[%c0_102, %c0_103] : memref<8x128xf32, #tpu.memory_space<vmem>>, vector<8x128xf32>
    tpu.vector_store %arg8[%c0_102, %c0_103], %162 {strides = array<i32>} : memref<8x128xf32, #tpu.memory_space<vmem>>, vector<8x128xf32>,
    return
  }
  func.func @transform_0(%arg0: i32) -> (i32, i32) {
    %c0_i32 = arith.constant 0 : i32
    %c0_i32_0 = arith.constant 0 : i32
    return %arg0, %c0_i32 : i32, i32
  }
  func.func @transform_1(%arg0: i32) -> (i32, i32) {
    %c0_i32 = arith.constant 0 : i32
    %c0_i32_0 = arith.constant 0 : i32
    %c0_i32_1 = arith.constant 0 : i32
    return %c0_i32, %c0_i32_0 : i32, i32
  }
  func.func @transform_2(%arg0: i32) -> (i32, i32, i32) {
    %c0_i32 = arith.constant 0 : i32
    %c0_i32_0 = arith.constant 0 : i32
    %c0_i32_1 = arith.constant 0 : i32
    %c0_i32_2 = arith.constant 0 : i32
    return %c0_i32, %c0_i32_0, %c0_i32_1 : i32, i32, i32
  }
  func.func @transform_3(%arg0: i32) -> (i32, i32) {
    %c0_i32 = arith.constant 0 : i32
    %c0_i32_0 = arith.constant 0 : i32
    %c0_i32_1 = arith.constant 0 : i32
    return %c0_i32, %c0_i32_0 : i32, i32
  }
  func.func @transform_4(%arg0: i32) -> (i32, i32) {
    %c0_i32 = arith.constant 0 : i32
    %c0_i32_0 = arith.constant 0 : i32
    %c0_i32_1 = arith.constant 0 : i32
    return %c0_i32, %c0_i32_0 : i32, i32
  }
  func.func @transform_5(%arg0: i32) -> (i32, i32) {
    %c0_i32 = arith.constant 0 : i32
    %c0_i32_0 = arith.constant 0 : i32
    %c0_i32_1 = arith.constant 0 : i32
    return %c0_i32, %c0_i32_0 : i32, i32
  }
  func.func @transform_6(%arg0: i32) -> (i32, i32) {
    %c0_i32 = arith.constant 0 : i32
    %c0_i32_0 = arith.constant 0 : i32
    %c0_i32_1 = arith.constant 0 : i32
    return %c0_i32, %c0_i32_0 : i32, i32
  }
  func.func @transform_7(%arg0: i32) -> (i32, i32) {
    %c0_i32 = arith.constant 0 : i32
    %c0_i32_0 = arith.constant 0 : i32
    return %arg0, %c0_i32 : i32, i32
  }
  func.func @transform_8(%arg0: i32) -> (i32, i32) {
    %c0_i32 = arith.constant 0 : i32
    %c0_i32_0 = arith.constant 0 : i32
    return %arg0, %c0_i32 : i32, i32
  }
}

</mosaic_0001>

<llo_original>
// kernel: tpu_custom_call.1
$region0: #{tpu_custom_call.1}
  #allocation0 [shape = 'u32[]', space=smem, size = 0x4, offset = 0x4, fixed_abs, tag = 'smem constant byte address 0x4 - core index']
  #allocation1 [shape = 'u32[144,128]{1,0:T(1,128)}', space=vmem, size = 0x12000, scoped, tag = 'internal scratch']
  #allocation2 [shape = 'f32[1,1]{1,0:T(1,128)S(6)}', space=smem, size = 0x200, scoped, tag = 'scoped memory for tpu_custom_call.1']
  %s0 = inlined_call_operand.hbm [shape: f32[8,32], index: 0, kind: input, shape index: {}]
  %s1 = inlined_call_operand.hbm [shape: bf16[32,256], index: 1, kind: input, shape index: {}]
  %s2 = inlined_call_operand.hbm [shape: bf16[14,256,256], index: 2, kind: input, shape index: {}]
  %s3 = inlined_call_operand.hbm [shape: bf16[256,128], index: 3, kind: input, shape index: {}]
  %s4 = inlined_call_operand.hbm [shape: f32[16,256], index: 4, kind: input, shape index: {}]
  %s5 = inlined_call_operand.hbm [shape: f32[1,128], index: 5, kind: input, shape index: {}]
  %s6 = inlined_call_operand.<no memory space> [shape: f32[1,1], index: 6, kind: input, shape index: {}]
  %s7 = inlined_call_operand.hbm [shape: f32[8,128], index: 7, kind: output, shape index: {0}]
  %s8 = inlined_call_operand.vmem [shape: f32[8,1], index: 8, kind: output, shape index: {1}]
  %9 = xla_tuple %s7, %s8
  %s10 = sld [smem:[#allocation0]]
  $region70: #{tpu_custom_call.1} parent=0
    _
  %s12 = ssub.s32 1, %s10
  %s13 = scalar_select 0, %s12, %s10
  %14 = sst [smem:[#allocation2]] %s6
  $region1: #{tpu_custom_call.1} parent=0
    #allocation3 [shape = 'u8[4096]{0}', space=vmem, size = 0x1000, scoped, tag = 'input window, operand 0, single buffered']
    #allocation4 [shape = 's32[1]{0}', space=sflag, size = 0x4, scoped, tag = 'scoped memory for tpu_custom_call.1']
    #allocation5 [shape = 's32[1]{0}', space=sflag, size = 0x4, scoped, tag = 'scoped memory for tpu_custom_call.1']
    #allocation6 [shape = 'u8[16384]{0}', space=vmem, size = 0x4000, scoped, tag = 'input window, operand 1, single buffered']
    #allocation7 [shape = 's32[1]{0}', space=sflag, size = 0x4, scoped, tag = 'scoped memory for tpu_custom_call.1']
    #allocation8 [shape = 'u8[1835008]{0}', space=vmem, size = 0x1c0000, scoped, tag = 'input window, operand 2, single buffered']
    #allocation9 [shape = 'u8[65536]{0}', space=vmem, size = 0x10000, scoped, tag = 'input window, operand 3, single buffered']
    #allocation10 [shape = 's32[1]{0}', space=sflag, size = 0x4, scoped, tag = 'scoped memory for tpu_custom_call.1']
    #allocation11 [shape = 'u8[16384]{0}', space=vmem, size = 0x4000, scoped, tag = 'input window, operand 4, single buffered']
    #allocation12 [shape = 'u8[512]{0}', space=vmem, size = 0x400, scoped, tag = 'input window, operand 5, single buffered']
    #allocation13 [shape = 's32[1]{0}', space=sflag, size = 0x4, scoped, tag = 'scoped memory for tpu_custom_call.1']
    #allocation14 [shape = 'u8[4096]{0}', space=vmem, size = 0x1000, scoped, tag = 'output window, operand 0, single buffered']
    %15 = vsyncpa [#allocation4], 0
    %16 = vsyncpa [#allocation7], 0
    %17 = vsyncpa [#allocation10], 0
    %18 = vsyncpa [#allocation13], 0
    %19 = vsyncpa [#allocation5], 0
    // Predicated region
    $region2: #{tpu_custom_call.1} parent=1 // pred_check
      _
    $region3: #{tpu_custom_call.1} parent=1 // pred_check_branch
      %21 = sbr.rel (0) target = $region5
    $region4: #{tpu_custom_call.1} parent=1 // pred_region
      %s23 = ssub.s32 128, 128
      %24 = vsyncadd [#allocation4], %s23
      %s26 = sshll.u32 [#allocation3], 4
      %s27 = int_to_ptr.vmem [resolvable:$true] %s26
      %29 = dma.hbm_to_vmem [thread:$0]  %s0, 128, %s27, [#allocation4]
    $region5: #{tpu_custom_call.1} parent=1 // pred_fallthru
      _
    // Predicated region
    $region6: #{tpu_custom_call.1} parent=1 // pred_check
      _
    $region7: #{tpu_custom_call.1} parent=1 // pred_check_branch
      %31 = sbr.rel (0) target = $region9
    $region8: #{tpu_custom_call.1} parent=1 // pred_region
      %s33 = ssub.s32 512, 512
      %34 = vsyncadd [#allocation7], %s33
      %s35 = sshll.u32 [#allocation6], 4
      %s36 = int_to_ptr.vmem [resolvable:$true] %s35
      %41 = dma.hbm_to_vmem [thread:$0]  %s1, 512, %s36, [#allocation7], 128, 128, 8
    $region9: #{tpu_custom_call.1} parent=1 // pred_fallthru
      _
    // Predicated region
    $region10: #{tpu_custom_call.1} parent=1 // pred_check
      _
    $region11: #{tpu_custom_call.1} parent=1 // pred_check_branch
      %43 = sbr.rel (0) target = $region13
    $region12: #{tpu_custom_call.1} parent=1 // pred_region
      %s45 = ssub.s32 57344, 57344
      %46 = vsyncadd [#allocation7], %s45
      %s47 = sshll.u32 [#allocation8], 4
      %s48 = int_to_ptr.vmem [resolvable:$true] %s47
      %53 = dma.hbm_to_vmem [thread:$0]  %s2, 57344, %s48, [#allocation7], 128, 128, 8
    $region13: #{tpu_custom_call.1} parent=1 // pred_fallthru
      _
    // Predicated region
    $region14: #{tpu_custom_call.1} parent=1 // pred_check
      _
    $region15: #{tpu_custom_call.1} parent=1 // pred_check_branch
      %55 = sbr.rel (0) target = $region17
    $region16: #{tpu_custom_call.1} parent=1 // pred_region
      %s57 = ssub.s32 2048, 2048
      %58 = vsyncadd [#allocation10], %s57
      %s59 = sshll.u32 [#allocation9], 4
      %s60 = int_to_ptr.vmem [resolvable:$true] %s59
      %65 = dma.hbm_to_vmem [thread:$0]  %s3, 2048, %s60, [#allocation10], 64, 64, 4
    $region17: #{tpu_custom_call.1} parent=1 // pred_fallthru
      _
    // Predicated region
    $region18: #{tpu_custom_call.1} parent=1 // pred_check
      _
    $region19: #{tpu_custom_call.1} parent=1 // pred_check_branch
      %67 = sbr.rel (0) target = $region21
    $region20: #{tpu_custom_call.1} parent=1 // pred_region
      %s69 = ssub.s32 512, 512
      %70 = vsyncadd [#allocation10], %s69
      %s71 = sshll.u32 [#allocation11], 4
      %s72 = int_to_ptr.vmem [resolvable:$true] %s71
      %77 = dma.hbm_to_vmem [thread:$0]  %s4, 512, %s72, [#allocation10], 256, 256, 16
    $region21: #{tpu_custom_call.1} parent=1 // pred_fallthru
      _
    // Predicated region
    $region22: #{tpu_custom_call.1} parent=1 // pred_check
      _
    $region23: #{tpu_custom_call.1} parent=1 // pred_check_branch
      %79 = sbr.rel (0) target = $region25
    $region24: #{tpu_custom_call.1} parent=1 // pred_region
      %s81 = ssub.s32 16, 16
      %82 = vsyncadd [#allocation13], %s81
      %s84 = sshll.u32 [#allocation12], 4
      %s85 = int_to_ptr.vmem [resolvable:$true] %s84
      %87 = dma.hbm_to_vmem [thread:$0]  %s5, 16, %s85, [#allocation13]
    $region25: #{tpu_custom_call.1} parent=1 // pred_fallthru
      _
    // Predicated region
    $region26: #{tpu_custom_call.1} parent=1 // pred_check
      _
    $region27: #{tpu_custom_call.1} parent=1 // pred_check_branch
      %89 = sbr.rel (0) target = $region29
    $region28: #{tpu_custom_call.1} parent=1 // pred_region
      _
    $region29: #{tpu_custom_call.1} parent=1 // pred_fallthru
      _
    // Predicated region
    $region30: #{tpu_custom_call.1} parent=1 // pred_check
      _
    $region31: #{tpu_custom_call.1} parent=1 // pred_check_branch
      %91 = sbr.rel (0) target = $region33
    $region32: #{tpu_custom_call.1} parent=1 // pred_region
      %92 = dma.done [#allocation4], 128
    $region33: #{tpu_custom_call.1} parent=1 // pred_fallthru
      _
    // Predicated region
    $region34: #{tpu_custom_call.1} parent=1 // pred_check
      _
    $region35: #{tpu_custom_call.1} parent=1 // pred_check_branch
      %94 = sbr.rel (0) target = $region37
    $region36: #{tpu_custom_call.1} parent=1 // pred_region
      %95 = dma.done [#allocation7], 512
    $region37: #{tpu_custom_call.1} parent=1 // pred_fallthru
      _
    // Predicated region
    $region38: #{tpu_custom_call.1} parent=1 // pred_check
      _
    $region39: #{tpu_custom_call.1} parent=1 // pred_check_branch
      %97 = sbr.rel (0) target = $region41
    $region40: #{tpu_custom_call.1} parent=1 // pred_region
      %98 = dma.done [#allocation7], 57344
    $region41: #{tpu_custom_call.1} parent=1 // pred_fallthru
      _
    // Predicated region
    $region42: #{tpu_custom_call.1} parent=1 // pred_check
      _
    $region43: #{tpu_custom_call.1} parent=1 // pred_check_branch
      %100 = sbr.rel (0) target = $region45
    $region44: #{tpu_custom_call.1} parent=1 // pred_region
      %101 = dma.done [#allocation10], 2048
    $region45: #{tpu_custom_call.1} parent=1 // pred_fallthru
      _
    // Predicated region
    $region46: #{tpu_custom_call.1} parent=1 // pred_check
      _
    $region47: #{tpu_custom_call.1} parent=1 // pred_check_branch
      %103 = sbr.rel (0) target = $region49
    $region48: #{tpu_custom_call.1} parent=1 // pred_region
      %104 = dma.done [#allocation10], 512
    $region49: #{tpu_custom_call.1} parent=1 // pred_fallthru
      _
    // Predicated region
    $region50: #{tpu_custom_call.1} parent=1 // pred_check
      _
    $region51: #{tpu_custom_call.1} parent=1 // pred_check_branch
      %106 = sbr.rel (0) target = $region53
    $region52: #{tpu_custom_call.1} parent=1 // pred_region
      %107 = dma.done [#allocation13], 16
    $region53: #{tpu_custom_call.1} parent=1 // pred_fallthru
      _
    %v109 = vld [vmem:[#allocation3] sm:$0xff]
    %v110 = vpack.c.bf16 %v109, %v109
    %v111 = vld [vmem:[#allocation6] sm:$0xff]
    %v112 = vld [vmem:[#allocation6 + $0x8] sm:$0xff]
    %v113 = vld [vmem:[#allocation6 + $0x10] sm:$0xff]
    %v114 = vld [vmem:[#allocation6 + $0x18] sm:$0xff]
    %v115 = vld [vmem:[#allocation11] ss:$8 sm:$0x3]
    %v117 = vlaneseq
    %v118 = vshrl.u32 %v117, 7
    %v119 = vsub.s32 0, %v118
    %v120 = vrot.slane %v115, %v119
    %v121 = vlaneseq
    %v122 = vshrl.u32 %v121, 7
    %v123 = vsub.s32 1, %v122
    %v124 = vrot.slane %v115, %v123
    %v131 = vunpack.c.l.b16 %v111
    %v132 = vunpack.c.h.b16 %v111
    %v133 = vunpack.c.l.b16 %v112
    %v134 = vunpack.c.h.b16 %v112
    %v135 = vunpack.c.l.b16 %v113
    %v136 = vunpack.c.h.b16 %v113
    %v137 = vunpack.c.l.b16 %v114
    %v138 = vunpack.c.h.b16 %v114
    %v139 = vpack.c.b16 %v133, %v131
    %v140 = vpack.c.b16 %v134, %v132
    %v141 = vpack.c.b16 %v137, %v135
    %v142 = vpack.c.b16 %v138, %v136
    %vm147 = vcmask 261120
    %v149 = vsel %vm147, %v110, 0
    %151 = vmatprep.subr.bf16.mxu0 %v140
    %152 = vmatpush1.bf16.msra.mxu0 %v139
    %153 = vmatprep.subr.bf16.mxu0 %v142
    %154 = vmatpush1.bf16.msra.mxu0 %v141
    %155 = vmatprep.subr.bf16.mxu0 0
    %156 = vmatpush1.bf16.msra.mxu0 0
    %157 = vmatprep.subr.bf16.mxu0 0
    %158 = vmatpush1.bf16.msra.mxu0 0
    %159 = vmatprep.subr.bf16.mxu0 0
    %160 = vmatpush1.bf16.msra.mxu0 0
    %161 = vmatprep.subr.bf16.mxu0 0
    %162 = vmatpush1.bf16.msra.mxu0 0
    %163 = vmatprep.subr.bf16.mxu0 0
    %164 = vmatpush1.bf16.msra.mxu0 0
    %165 = vmatprep.subr.bf16.mxu0 0
    %166 = vmatpush1.bf16.msra.mxu0 0
    %167 = vmatprep.subr.bf16.mxu0 0
    %168 = vmatpush1.bf16.msra.mxu0 0
    %169 = vmatprep.subr.bf16.mxu0 0
    %170 = vmatpush1.bf16.msra.mxu0 0
    %171 = vmatprep.subr.bf16.mxu0 0
    %172 = vmatpush1.bf16.msra.mxu0 0
    %173 = vmatprep.subr.bf16.mxu0 0
    %174 = vmatpush1.bf16.msra.mxu0 0
    %175 = vmatprep.subr.bf16.mxu0 0
    %176 = vmatpush1.bf16.msra.mxu0 0
    %177 = vmatprep.subr.bf16.mxu0 0
    %178 = vmatpush1.bf16.msra.mxu0 0
    %179 = vmatprep.subr.bf16.mxu0 0
    %180 = vmatpush1.bf16.msra.mxu0 0
    %181 = vmatprep.subr.bf16.mxu0 0
    %182 = vmatpush1.bf16.msra.mxu0 0
    %183 = vmatprep.mubr.bf16.mxu0 0
    %184 = vmatmul.mubr.bf16.gmra.mrb[0].mxu0 %v149
    %v185 = vpop.f32.mrb[0].mxu0
    %v186 = vadd.f32 %v120, %v185
    %v187 = vpop.f32.mrb[0].mxu0
    %v188 = vadd.f32 %v124, %v187
    %v189 = vpop.f32.mrb[0].mxu0
    %v190 = vpop.f32.mrb[0].mxu0
    %191 = vdwg.mxu0
    %v192 = vpack.c.bf16 %v186, %v186
    %v193 = vpack.c.bf16 %v188, %v188
    %v194 = vld [vmem:[#allocation8] sm:$0xff]
    %v195 = vld [vmem:[#allocation8 + $0x8] sm:$0xff]
    %v196 = vld [vmem:[#allocation8 + $0x10] sm:$0xff]
    %v197 = vld [vmem:[#allocation8 + $0x18] sm:$0xff]
    %v198 = vld [vmem:[#allocation8 + $0x20] sm:$0xff]
    %v199 = vld [vmem:[#allocation8 + $0x28] sm:$0xff]
    %v200 = vld [vmem:[#allocation8 + $0x30] sm:$0xff]
    %v201 = vld [vmem:[#allocation8 + $0x38] sm:$0xff]
    %v202 = vld [vmem:[#allocation8 + $0x40] sm:$0xff]
    %v203 = vld [vmem:[#allocation8 + $0x48] sm:$0xff]
    %v204 = vld [vmem:[#allocation8 + $0x50] sm:$0xff]
    %v205 = vld [vmem:[#allocation8 + $0x58] sm:$0xff]
    %v206 = vld [vmem:[#allocation8 + $0x60] sm:$0xff]
    %v207 = vld [vmem:[#allocation8 + $0x68] sm:$0xff]
    %v208 = vld [vmem:[#allocation8 + $0x70] sm:$0xff]
    %v209 = vld [vmem:[#allocation8 + $0x78] sm:$0xff]
    %v210 = vld [vmem:[#allocation8 + $0x80] sm:$0xff]
    %v211 = vld [vmem:[#allocation8 + $0x88] sm:$0xff]
    %v212 = vld [vmem:[#allocation8 + $0x90] sm:$0xff]
    %v213 = vld [vmem:[#allocation8 + $0x98] sm:$0xff]
    %v214 = vld [vmem:[#allocation8 + $0xa0] sm:$0xff]
    %v215 = vld [vmem:[#allocation8 + $0xa8] sm:$0xff]
    %v216 = vld [vmem:[#allocation8 + $0xb0] sm:$0xff]
    %v217 = vld [vmem:[#allocation8 + $0xb8] sm:$0xff]
    %v218 = vld [vmem:[#allocation8 + $0xc0] sm:$0xff]
    %v219 = vld [vmem:[#allocation8 + $0xc8] sm:$0xff]
    %v220 = vld [vmem:[#allocation8 + $0xd0] sm:$0xff]
    %v221 = vld [vmem:[#allocation8 + $0xd8] sm:$0xff]
    %v222 = vld [vmem:[#allocation8 + $0xe0] sm:$0xff]
    %v223 = vld [vmem:[#allocation8 + $0xe8] sm:$0xff]
    %v224 = vld [vmem:[#allocation8 + $0xf0] sm:$0xff]
    %v225 = vld [vmem:[#allocation8 + $0xf8] sm:$0xff]
    %s226 = scalar_lea.vmem [#allocation11], 1
    %v227 = vld [vmem:[%s226] ss:$8 sm:$0x3]
    %v229 = vlaneseq
    %v230 = vshrl.u32 %v229, 7
    %v231 = vsub.s32 0, %v230
    %v232 = vrot.slane %v227, %v231
    %v233 = vlaneseq
    %v234 = vshrl.u32 %v233, 7
    %v235 = vsub.s32 1, %v234
    %v236 = vrot.slane %v227, %v235
    %v271 = vunpack.c.l.b16 %v194
    %v272 = vunpack.c.h.b16 %v194
    %v273 = vunpack.c.l.b16 %v195
    %v274 = vunpack.c.h.b16 %v195
    %v275 = vunpack.c.l.b16 %v196
    %v276 = vunpack.c.h.b16 %v196
    %v277 = vunpack.c.l.b16 %v197
    %v278 = vunpack.c.h.b16 %v197
    %v279 = vunpack.c.l.b16 %v198
    %v280 = vunpack.c.h.b16 %v198
    %v281 = vunpack.c.l.b16 %v199
    %v282 = vunpack.c.h.b16 %v199
    %v283 = vunpack.c.l.b16 %v200
    %v284 = vunpack.c.h.b16 %v200
    %v285 = vunpack.c.l.b16 %v201
    %v286 = vunpack.c.h.b16 %v201
    %v287 = vunpack.c.l.b16 %v202
    %v288 = vunpack.c.h.b16 %v202
    %v289 = vunpack.c.l.b16 %v203
    %v290 = vunpack.c.h.b16 %v203
    %v291 = vunpack.c.l.b16 %v204
    %v292 = vunpack.c.h.b16 %v204
    %v293 = vunpack.c.l.b16 %v205
    %v294 = vunpack.c.h.b16 %v205
    %v295 = vunpack.c.l.b16 %v206
    %v296 = vunpack.c.h.b16 %v206
    %v297 = vunpack.c.l.b16 %v207
    %v298 = vunpack.c.h.b16 %v207
    %v299 = vunpack.c.l.b16 %v208
    %v300 = vunpack.c.h.b16 %v208
    %v301 = vunpack.c.l.b16 %v209
    %v302 = vunpack.c.h.b16 %v209
    %v303 = vunpack.c.l.b16 %v210
    %v304 = vunpack.c.h.b16 %v210
    %v305 = vunpack.c.l.b16 %v211
    %v306 = vunpack.c.h.b16 %v211
    %v307 = vunpack.c.l.b16 %v212
    %v308 = vunpack.c.h.b16 %v212
    %v309 = vunpack.c.l.b16 %v213
    %v310 = vunpack.c.h.b16 %v213
    %v311 = vunpack.c.l.b16 %v214
    %v312 = vunpack.c.h.b16 %v214
    %v313 = vunpack.c.l.b16 %v215
    %v314 = vunpack.c.h.b16 %v215
    %v315 = vunpack.c.l.b16 %v216
    %v316 = vunpack.c.h.b16 %v216
    %v317 = vunpack.c.l.b16 %v217
    %v318 = vunpack.c.h.b16 %v217
    %v319 = vunpack.c.l.b16 %v218
    %v320 = vunpack.c.h.b16 %v218
    %v321 = vunpack.c.l.b16 %v219
    %v322 = vunpack.c.h.b16 %v219
    %v323 = vunpack.c.l.b16 %v220
    %v324 = vunpack.c.h.b16 %v220
    %v325 = vunpack.c.l.b16 %v221
    %v326 = vunpack.c.h.b16 %v221
    %v327 = vunpack.c.l.b16 %v222
    %v328 = vunpack.c.h.b16 %v222
    %v329 = vunpack.c.l.b16 %v223
    %v330 = vunpack.c.h.b16 %v223
    %v331 = vunpack.c.l.b16 %v224
    %v332 = vunpack.c.h.b16 %v224
    %v333 = vunpack.c.l.b16 %v225
    %v334 = vunpack.c.h.b16 %v225
    %v335 = vpack.c.b16 %v273, %v271
    %v336 = vpack.c.b16 %v274, %v272
    %v337 = vpack.c.b16 %v277, %v275
    %v338 = vpack.c.b16 %v278, %v276
    %v339 = vpack.c.b16 %v281, %v279
    %v340 = vpack.c.b16 %v282, %v280
    %v341 = vpack.c.b16 %v285, %v283
    %v342 = vpack.c.b16 %v286, %v284
    %v343 = vpack.c.b16 %v289, %v287
    %v344 = vpack.c.b16 %v290, %v288
    %v345 = vpack.c.b16 %v293, %v291
    %v346 = vpack.c.b16 %v294, %v292
    %v347 = vpack.c.b16 %v297, %v295
    %v348 = vpack.c.b16 %v298, %v296
    %v349 = vpack.c.b16 %v301, %v299
    %v350 = vpack.c.b16 %v302, %v300
    %v351 = vpack.c.b16 %v305, %v303
    %v352 = vpack.c.b16 %v306, %v304
    %v353 = vpack.c.b16 %v309, %v307
    %v354 = vpack.c.b16 %v310, %v308
    %v355 = vpack.c.b16 %v313, %v311
    %v356 = vpack.c.b16 %v314, %v312
    %v357 = vpack.c.b16 %v317, %v315
    %v358 = vpack.c.b16 %v318, %v316
    %v359 = vpack.c.b16 %v321, %v319
    %v360 = vpack.c.b16 %v322, %v320
    %v361 = vpack.c.b16 %v325, %v323
    %v362 = vpack.c.b16 %v326, %v324
    %v363 = vpack.c.b16 %v329, %v327
    %v364 = vpack.c.b16 %v330, %v328
    %v365 = vpack.c.b16 %v333, %v331
    %v366 = vpack.c.b16 %v334, %v332
    %399 = vmatprep.subr.bf16.mxu0 %v336
    %400 = vmatpush1.bf16.msra.mxu0 %v335
    %401 = vmatprep.subr.bf16.mxu0 %v338
    %402 = vmatpush1.bf16.msra.mxu0 %v337
    %403 = vmatprep.subr.bf16.mxu0 %v340
    %404 = vmatpush1.bf16.msra.mxu0 %v339
    %405 = vmatprep.subr.bf16.mxu0 %v342
    %406 = vmatpush1.bf16.msra.mxu0 %v341
    %407 = vmatprep.subr.bf16.mxu0 %v344
    %408 = vmatpush1.bf16.msra.mxu0 %v343
    %409 = vmatprep.subr.bf16.mxu0 %v346
    %410 = vmatpush1.bf16.msra.mxu0 %v345
    %411 = vmatprep.subr.bf16.mxu0 %v348
    %412 = vmatpush1.bf16.msra.mxu0 %v347
    %413 = vmatprep.subr.bf16.mxu0 %v350
    %414 = vmatpush1.bf16.msra.mxu0 %v349
    %415 = vmatprep.subr.bf16.mxu0 %v352
    %416 = vmatpush1.bf16.msra.mxu0 %v351
    %417 = vmatprep.subr.bf16.mxu0 %v354
    %418 = vmatpush1.bf16.msra.mxu0 %v353
    %419 = vmatprep.subr.bf16.mxu0 %v356
    %420 = vmatpush1.bf16.msra.mxu0 %v355
    %421 = vmatprep.subr.bf16.mxu0 %v358
    %422 = vmatpush1.bf16.msra.mxu0 %v357
    %423 = vmatprep.subr.bf16.mxu0 %v360
    %424 = vmatpush1.bf16.msra.mxu0 %v359
    %425 = vmatprep.subr.bf16.mxu0 %v362
    %426 = vmatpush1.bf16.msra.mxu0 %v361
    %427 = vmatprep.subr.bf16.mxu0 %v364
    %428 = vmatpush1.bf16.msra.mxu0 %v363
    %429 = vmatprep.subr.bf16.mxu0 %v366
    %430 = vmatpush1.bf16.msra.mxu0 %v365
    %431 = vmatprep.mubr.bf16.mxu0 %v193
    %432 = vmatmul.mubr.bf16.gmra.mrb[0].mxu0 %v192
    %v433 = vpop.f32.mrb[0].mxu0
    %v434 = vadd.f32 %v232, %v433
    %v435 = vpop.f32.mrb[0].mxu0
    %v436 = vadd.f32 %v236, %v435
    %v437 = vpop.f32.mrb[0].mxu0
    %v438 = vpop.f32.mrb[0].mxu0
    %439 = vdwg.mxu0
    %v440 = vmax.f32 %v434, 0.0
    %v441 = vmax.f32 %v436, 0.0
    %v442 = vpack.c.bf16 %v440, %v440
    %v443 = vpack.c.bf16 %v441, %v441
    %s444 = scalar_lea.vmem [#allocation8], 1280
    %v445 = vld [vmem:[%s444] sm:$0xff]
    %v446 = vld [vmem:[%s444 + $0x8] sm:$0xff]
    %v447 = vld [vmem:[%s444 + $0x10] sm:$0xff]
    %v448 = vld [vmem:[%s444 + $0x18] sm:$0xff]
    %v449 = vld [vmem:[%s444 + $0x20] sm:$0xff]
    %v450 = vld [vmem:[%s444 + $0x28] sm:$0xff]
    %v451 = vld [vmem:[%s444 + $0x30] sm:$0xff]
    %v452 = vld [vmem:[%s444 + $0x38] sm:$0xff]
    %v453 = vld [vmem:[%s444 + $0x40] sm:$0xff]
    %v454 = vld [vmem:[%s444 + $0x48] sm:$0xff]
    %v455 = vld [vmem:[%s444 + $0x50] sm:$0xff]
    %v456 = vld [vmem:[%s444 + $0x58] sm:$0xff]
    %v457 = vld [vmem:[%s444 + $0x60] sm:$0xff]
    %v458 = vld [vmem:[%s444 + $0x68] sm:$0xff]
    %v459 = vld [vmem:[%s444 + $0x70] sm:$0xff]
    %v460 = vld [vmem:[%s444 + $0x78] sm:$0xff]
    %v461 = vld [vmem:[%s444 + $0x80] sm:$0xff]
    %v462 = vld [vmem:[%s444 + $0x88] sm:$0xff]
    %v463 = vld [vmem:[%s444 + $0x90] sm:$0xff]
    %v464 = vld [vmem:[%s444 + $0x98] sm:$0xff]
    %v465 = vld [vmem:[%s444 + $0xa0] sm:$0xff]
    %v466 = vld [vmem:[%s444 + $0xa8] sm:$0xff]
    %v467 = vld [vmem:[%s444 + $0xb0] sm:$0xff]
    %v468 = vld [vmem:[%s444 + $0xb8] sm:$0xff]
    %v469 = vld [vmem:[%s444 + $0xc0] sm:$0xff]
    %v470 = vld [vmem:[%s444 + $0xc8] sm:$0xff]
    %v471 = vld [vmem:[%s444 + $0xd0] sm:$0xff]
    %v472 = vld [vmem:[%s444 + $0xd8] sm:$0xff]
    %v473 = vld [vmem:[%s444 + $0xe0] sm:$0xff]
    %v474 = vld [vmem:[%s444 + $0xe8] sm:$0xff]
    %v475 = vld [vmem:[%s444 + $0xf0] sm:$0xff]
    %v476 = vld [vmem:[%s444 + $0xf8] sm:$0xff]
    %s477 = scalar_lea.vmem [#allocation11], 6
    %v478 = vld [vmem:[%s477] ss:$8 sm:$0x3]
    %v480 = vlaneseq
    %v481 = vshrl.u32 %v480, 7
    %v482 = vsub.s32 0, %v481
    %v483 = vrot.slane %v478, %v482
    %v484 = vlaneseq
    %v485 = vshrl.u32 %v484, 7
    %v486 = vsub.s32 1, %v485
    %v487 = vrot.slane %v478, %v486
    %v522 = vunpack.c.l.b16 %v445
    %v523 = vunpack.c.h.b16 %v445
    %v524 = vunpack.c.l.b16 %v446
    %v525 = vunpack.c.h.b16 %v446
    %v526 = vunpack.c.l.b16 %v447
    %v527 = vunpack.c.h.b16 %v447
    %v528 = vunpack.c.l.b16 %v448
    %v529 = vunpack.c.h.b16 %v448
    %v530 = vunpack.c.l.b16 %v449
    %v531 = vunpack.c.h.b16 %v449
    %v532 = vunpack.c.l.b16 %v450
    %v533 = vunpack.c.h.b16 %v450
    %v534 = vunpack.c.l.b16 %v451
    %v535 = vunpack.c.h.b16 %v451
    %v536 = vunpack.c.l.b16 %v452
    %v537 = vunpack.c.h.b16 %v452
    %v538 = vunpack.c.l.b16 %v453
    %v539 = vunpack.c.h.b16 %v453
    %v540 = vunpack.c.l.b16 %v454
    %v541 = vunpack.c.h.b16 %v454
    %v542 = vunpack.c.l.b16 %v455
    %v543 = vunpack.c.h.b16 %v455
    %v544 = vunpack.c.l.b16 %v456
    %v545 = vunpack.c.h.b16 %v456
    %v546 = vunpack.c.l.b16 %v457
    %v547 = vunpack.c.h.b16 %v457
    %v548 = vunpack.c.l.b16 %v458
    %v549 = vunpack.c.h.b16 %v458
    %v550 = vunpack.c.l.b16 %v459
    %v551 = vunpack.c.h.b16 %v459
    %v552 = vunpack.c.l.b16 %v460
    %v553 = vunpack.c.h.b16 %v460
    %v554 = vunpack.c.l.b16 %v461
    %v555 = vunpack.c.h.b16 %v461
    %v556 = vunpack.c.l.b16 %v462
    %v557 = vunpack.c.h.b16 %v462
    %v558 = vunpack.c.l.b16 %v463
    %v559 = vunpack.c.h.b16 %v463
    %v560 = vunpack.c.l.b16 %v464
    %v561 = vunpack.c.h.b16 %v464
    %v562 = vunpack.c.l.b16 %v465
    %v563 = vunpack.c.h.b16 %v465
    %v564 = vunpack.c.l.b16 %v466
    %v565 = vunpack.c.h.b16 %v466
    %v566 = vunpack.c.l.b16 %v467
    %v567 = vunpack.c.h.b16 %v467
    %v568 = vunpack.c.l.b16 %v468
    %v569 = vunpack.c.h.b16 %v468
    %v570 = vunpack.c.l.b16 %v469
    %v571 = vunpack.c.h.b16 %v469
    %v572 = vunpack.c.l.b16 %v470
    %v573 = vunpack.c.h.b16 %v470
    %v574 = vunpack.c.l.b16 %v471
    %v575 = vunpack.c.h.b16 %v471
    %v576 = vunpack.c.l.b16 %v472
    %v577 = vunpack.c.h.b16 %v472
    %v578 = vunpack.c.l.b16 %v473
    %v579 = vunpack.c.h.b16 %v473
    %v580 = vunpack.c.l.b16 %v474
    %v581 = vunpack.c.h.b16 %v474
    %v582 = vunpack.c.l.b16 %v475
    %v583 = vunpack.c.h.b16 %v475
    %v584 = vunpack.c.l.b16 %v476
    %v585 = vunpack.c.h.b16 %v476
    %v586 = vpack.c.b16 %v524, %v522
    %v587 = vpack.c.b16 %v525, %v523
    %v588 = vpack.c.b16 %v528, %v526
    %v589 = vpack.c.b16 %v529, %v527
    %v590 = vpack.c.b16 %v532, %v530
    %v591 = vpack.c.b16 %v533, %v531
    %v592 = vpack.c.b16 %v536, %v534
    %v593 = vpack.c.b16 %v537, %v535
    %v594 = vpack.c.b16 %v540, %v538
    %v595 = vpack.c.b16 %v541, %v539
    %v596 = vpack.c.b16 %v544, %v542
    %v597 = vpack.c.b16 %v545, %v543
    %v598 = vpack.c.b16 %v548, %v546
    %v599 = vpack.c.b16 %v549, %v547
    %v600 = vpack.c.b16 %v552, %v550
    %v601 = vpack.c.b16 %v553, %v551
    %v602 = vpack.c.b16 %v556, %v554
    %v603 = vpack.c.b16 %v557, %v555
    %v604 = vpack.c.b16 %v560, %v558
    %v605 = vpack.c.b16 %v561, %v559
    %v606 = vpack.c.b16 %v564, %v562
    %v607 = vpack.c.b16 %v565, %v563
    %v608 = vpack.c.b16 %v568, %v566
    %v609 = vpack.c.b16 %v569, %v567
    %v610 = vpack.c.b16 %v572, %v570
    %v611 = vpack.c.b16 %v573, %v571
    %v612 = vpack.c.b16 %v576, %v574
    %v613 = vpack.c.b16 %v577, %v575
    %v614 = vpack.c.b16 %v580, %v578
    %v615 = vpack.c.b16 %v581, %v579
    %v616 = vpack.c.b16 %v584, %v582
    %v617 = vpack.c.b16 %v585, %v583
    %650 = vmatprep.subr.bf16.mxu0 %v587
    %651 = vmatpush1.bf16.msra.mxu0 %v586
    %652 = vmatprep.subr.bf16.mxu0 %v589
    %653 = vmatpush1.bf16.msra.mxu0 %v588
    %654 = vmatprep.subr.bf16.mxu0 %v591
    %655 = vmatpush1.bf16.msra.mxu0 %v590
    %656 = vmatprep.subr.bf16.mxu0 %v593
    %657 = vmatpush1.bf16.msra.mxu0 %v592
    %658 = vmatprep.subr.bf16.mxu0 %v595
    %659 = vmatpush1.bf16.msra.mxu0 %v594
    %660 = vmatprep.subr.bf16.mxu0 %v597
    %661 = vmatpush1.bf16.msra.mxu0 %v596
    %662 = vmatprep.subr.bf16.mxu0 %v599
    %663 = vmatpush1.bf16.msra.mxu0 %v598
    %664 = vmatprep.subr.bf16.mxu0 %v601
    %665 = vmatpush1.bf16.msra.mxu0 %v600
    %666 = vmatprep.subr.bf16.mxu0 %v603
    %667 = vmatpush1.bf16.msra.mxu0 %v602
    %668 = vmatprep.subr.bf16.mxu0 %v605
    %669 = vmatpush1.bf16.msra.mxu0 %v604
    %670 = vmatprep.subr.bf16.mxu0 %v607
    %671 = vmatpush1.bf16.msra.mxu0 %v606
    %672 = vmatprep.subr.bf16.mxu0 %v609
    %673 = vmatpush1.bf16.msra.mxu0 %v608
    %674 = vmatprep.subr.bf16.mxu0 %v611
    %675 = vmatpush1.bf16.msra.mxu0 %v610
    %676 = vmatprep.subr.bf16.mxu0 %v613
    %677 = vmatpush1.bf16.msra.mxu0 %v612
    %678 = vmatprep.subr.bf16.mxu0 %v615
    %679 = vmatpush1.bf16.msra.mxu0 %v614
    %680 = vmatprep.subr.bf16.mxu0 %v617
    %681 = vmatpush1.bf16.msra.mxu0 %v616
    %682 = vmatprep.mubr.bf16.mxu0 %v443
    %683 = vmatmul.mubr.bf16.gmra.mrb[0].mxu0 %v442
    %v684 = vpop.f32.mrb[0].mxu0
    %v685 = vadd.f32 %v483, %v684
    %v686 = vpop.f32.mrb[0].mxu0
    %v687 = vadd.f32 %v487, %v686
    %v688 = vpop.f32.mrb[0].mxu0
    %v689 = vpop.f32.mrb[0].mxu0
    %690 = vdwg.mxu0
    %v691 = vmax.f32 %v685, 0.0
    %v692 = vmax.f32 %v687, 0.0
    %v693 = vadd.f32 %v186, %v691
    %v694 = vadd.f32 %v188, %v692
    %v695 = vpack.c.bf16 %v693, %v693
    %v696 = vpack.c.bf16 %v694, %v694
    %s697 = scalar_lea.vmem [#allocation8], 256
    %v698 = vld [vmem:[%s697] sm:$0xff]
    %v699 = vld [vmem:[%s697 + $0x8] sm:$0xff]
    %v700 = vld [vmem:[%s697 + $0x10] sm:$0xff]
    %v701 = vld [vmem:[%s697 + $0x18] sm:$0xff]
    %v702 = vld [vmem:[%s697 + $0x20] sm:$0xff]
    %v703 = vld [vmem:[%s697 + $0x28] sm:$0xff]
    %v704 = vld [vmem:[%s697 + $0x30] sm:$0xff]
    %v705 = vld [vmem:[%s697 + $0x38] sm:$0xff]
    %v706 = vld [vmem:[%s697 + $0x40] sm:$0xff]
    %v707 = vld [vmem:[%s697 + $0x48] sm:$0xff]
    %v708 = vld [vmem:[%s697 + $0x50] sm:$0xff]
    %v709 = vld [vmem:[%s697 + $0x58] sm:$0xff]
    %v710 = vld [vmem:[%s697 + $0x60] sm:$0xff]
    %v711 = vld [vmem:[%s697 + $0x68] sm:$0xff]
    %v712 = vld [vmem:[%s697 + $0x70] sm:$0xff]
    %v713 = vld [vmem:[%s697 + $0x78] sm:$0xff]
    %v714 = vld [vmem:[%s697 + $0x80] sm:$0xff]
    %v715 = vld [vmem:[%s697 + $0x88] sm:$0xff]
    %v716 = vld [vmem:[%s697 + $0x90] sm:$0xff]
    %v717 = vld [vmem:[%s697 + $0x98] sm:$0xff]
    %v718 = vld [vmem:[%s697 + $0xa0] sm:$0xff]
    %v719 = vld [vmem:[%s697 + $0xa8] sm:$0xff]
    %v720 = vld [vmem:[%s697 + $0xb0] sm:$0xff]
    %v721 = vld [vmem:[%s697 + $0xb8] sm:$0xff]
    %v722 = vld [vmem:[%s697 + $0xc0] sm:$0xff]
    %v723 = vld [vmem:[%s697 + $0xc8] sm:$0xff]
    %v724 = vld [vmem:[%s697 + $0xd0] sm:$0xff]
    %v725 = vld [vmem:[%s697 + $0xd8] sm:$0xff]
    %v726 = vld [vmem:[%s697 + $0xe0] sm:$0xff]
    %v727 = vld [vmem:[%s697 + $0xe8] sm:$0xff]
    %v728 = vld [vmem:[%s697 + $0xf0] sm:$0xff]
    %v729 = vld [vmem:[%s697 + $0xf8] sm:$0xff]
    %s730 = scalar_lea.vmem [#allocation11], 2
    %v731 = vld [vmem:[%s730] ss:$8 sm:$0x3]
    %v733 = vlaneseq
    %v734 = vshrl.u32 %v733, 7
    %v735 = vsub.s32 0, %v734
    %v736 = vrot.slane %v731, %v735
    %v737 = vlaneseq
    %v738 = vshrl.u32 %v737, 7
    %v739 = vsub.s32 1, %v738
    %v740 = vrot.slane %v731, %v739
    %v775 = vunpack.c.l.b16 %v698
    %v776 = vunpack.c.h.b16 %v698
    %v777 = vunpack.c.l.b16 %v699
    %v778 = vunpack.c.h.b16 %v699
    %v779 = vunpack.c.l.b16 %v700
    %v780 = vunpack.c.h.b16 %v700
    %v781 = vunpack.c.l.b16 %v701
    %v782 = vunpack.c.h.b16 %v701
    %v783 = vunpack.c.l.b16 %v702
    %v784 = vunpack.c.h.b16 %v702
    %v785 = vunpack.c.l.b16 %v703
    %v786 = vunpack.c.h.b16 %v703
    %v787 = vunpack.c.l.b16 %v704
    %v788 = vunpack.c.h.b16 %v704
    %v789 = vunpack.c.l.b16 %v705
    %v790 = vunpack.c.h.b16 %v705
    %v791 = vunpack.c.l.b16 %v706
    %v792 = vunpack.c.h.b16 %v706
    %v793 = vunpack.c.l.b16 %v707
    %v794 = vunpack.c.h.b16 %v707
    %v795 = vunpack.c.l.b16 %v708
    %v796 = vunpack.c.h.b16 %v708
    %v797 = vunpack.c.l.b16 %v709
    %v798 = vunpack.c.h.b16 %v709
    %v799 = vunpack.c.l.b16 %v710
    %v800 = vunpack.c.h.b16 %v710
    %v801 = vunpack.c.l.b16 %v711
    %v802 = vunpack.c.h.b16 %v711
    %v803 = vunpack.c.l.b16 %v712
    %v804 = vunpack.c.h.b16 %v712
    %v805 = vunpack.c.l.b16 %v713
    %v806 = vunpack.c.h.b16 %v713
    %v807 = vunpack.c.l.b16 %v714
    %v808 = vunpack.c.h.b16 %v714
    %v809 = vunpack.c.l.b16 %v715
    %v810 = vunpack.c.h.b16 %v715
    %v811 = vunpack.c.l.b16 %v716
    %v812 = vunpack.c.h.b16 %v716
    %v813 = vunpack.c.l.b16 %v717
    %v814 = vunpack.c.h.b16 %v717
    %v815 = vunpack.c.l.b16 %v718
    %v816 = vunpack.c.h.b16 %v718
    %v817 = vunpack.c.l.b16 %v719
    %v818 = vunpack.c.h.b16 %v719
    %v819 = vunpack.c.l.b16 %v720
    %v820 = vunpack.c.h.b16 %v720
    %v821 = vunpack.c.l.b16 %v721
    %v822 = vunpack.c.h.b16 %v721
    %v823 = vunpack.c.l.b16 %v722
    %v824 = vunpack.c.h.b16 %v722
    %v825 = vunpack.c.l.b16 %v723
    %v826 = vunpack.c.h.b16 %v723
    %v827 = vunpack.c.l.b16 %v724
    %v828 = vunpack.c.h.b16 %v724
    %v829 = vunpack.c.l.b16 %v725
    %v830 = vunpack.c.h.b16 %v725
    %v831 = vunpack.c.l.b16 %v726
    %v832 = vunpack.c.h.b16 %v726
    %v833 = vunpack.c.l.b16 %v727
    %v834 = vunpack.c.h.b16 %v727
    %v835 = vunpack.c.l.b16 %v728
    %v836 = vunpack.c.h.b16 %v728
    %v837 = vunpack.c.l.b16 %v729
    %v838 = vunpack.c.h.b16 %v729
    %v839 = vpack.c.b16 %v777, %v775
    %v840 = vpack.c.b16 %v778, %v776
    %v841 = vpack.c.b16 %v781, %v779
    %v842 = vpack.c.b16 %v782, %v780
    %v843 = vpack.c.b16 %v785, %v783
    %v844 = vpack.c.b16 %v786, %v784
    %v845 = vpack.c.b16 %v789, %v787
    %v846 = vpack.c.b16 %v790, %v788
    %v847 = vpack.c.b16 %v793, %v791
    %v848 = vpack.c.b16 %v794, %v792
    %v849 = vpack.c.b16 %v797, %v795
    %v850 = vpack.c.b16 %v798, %v796
    %v851 = vpack.c.b16 %v801, %v799
    %v852 = vpack.c.b16 %v802, %v800
    %v853 = vpack.c.b16 %v805, %v803
    %v854 = vpack.c.b16 %v806, %v804
    %v855 = vpack.c.b16 %v809, %v807
    %v856 = vpack.c.b16 %v810, %v808
    %v857 = vpack.c.b16 %v813, %v811
    %v858 = vpack.c.b16 %v814, %v812
    %v859 = vpack.c.b16 %v817, %v815
    %v860 = vpack.c.b16 %v818, %v816
    %v861 = vpack.c.b16 %v821, %v819
    %v862 = vpack.c.b16 %v822, %v820
    %v863 = vpack.c.b16 %v825, %v823
    %v864 = vpack.c.b16 %v826, %v824
    %v865 = vpack.c.b16 %v829, %v827
    %v866 = vpack.c.b16 %v830, %v828
    %v867 = vpack.c.b16 %v833, %v831
    %v868 = vpack.c.b16 %v834, %v832
    %v869 = vpack.c.b16 %v837, %v835
    %v870 = vpack.c.b16 %v838, %v836
    %903 = vmatprep.subr.bf16.mxu0 %v840
    %904 = vmatpush1.bf16.msra.mxu0 %v839
    %905 = vmatprep.subr.bf16.mxu0 %v842
    %906 = vmatpush1.bf16.msra.mxu0 %v841
    %907 = vmatprep.subr.bf16.mxu0 %v844
    %908 = vmatpush1.bf16.msra.mxu0 %v843
    %909 = vmatprep.subr.bf16.mxu0 %v846
    %910 = vmatpush1.bf16.msra.mxu0 %v845
    %911 = vmatprep.subr.bf16.mxu0 %v848
    %912 = vmatpush1.bf16.msra.mxu0 %v847
    %913 = vmatprep.subr.bf16.mxu0 %v850
    %914 = vmatpush1.bf16.msra.mxu0 %v849
    %915 = vmatprep.subr.bf16.mxu0 %v852
    %916 = vmatpush1.bf16.msra.mxu0 %v851
    %917 = vmatprep.subr.bf16.mxu0 %v854
    %918 = vmatpush1.bf16.msra.mxu0 %v853
    %919 = vmatprep.subr.bf16.mxu0 %v856
    %920 = vmatpush1.bf16.msra.mxu0 %v855
    %921 = vmatprep.subr.bf16.mxu0 %v858
    %922 = vmatpush1.bf16.msra.mxu0 %v857
    %923 = vmatprep.subr.bf16.mxu0 %v860
    %924 = vmatpush1.bf16.msra.mxu0 %v859
    %925 = vmatprep.subr.bf16.mxu0 %v862
    %926 = vmatpush1.bf16.msra.mxu0 %v861
    %927 = vmatprep.subr.bf16.mxu0 %v864
    %928 = vmatpush1.bf16.msra.mxu0 %v863
    %929 = vmatprep.subr.bf16.mxu0 %v866
    %930 = vmatpush1.bf16.msra.mxu0 %v865
    %931 = vmatprep.subr.bf16.mxu0 %v868
    %932 = vmatpush1.bf16.msra.mxu0 %v867
    %933 = vmatprep.subr.bf16.mxu0 %v870
    %934 = vmatpush1.bf16.msra.mxu0 %v869
    %935 = vmatprep.mubr.bf16.mxu0 %v696
    %936 = vmatmul.mubr.bf16.gmra.mrb[0].mxu0 %v695
    %v937 = vpop.f32.mrb[0].mxu0
    %v938 = vadd.f32 %v736, %v937
    %v939 = vpop.f32.mrb[0].mxu0
    %v940 = vadd.f32 %v740, %v939
    %v941 = vpop.f32.mrb[0].mxu0
    %v942 = vpop.f32.mrb[0].mxu0
    %943 = vdwg.mxu0
    %v944 = vmax.f32 %v938, 0.0
    %v945 = vmax.f32 %v940, 0.0
    %v946 = vpack.c.bf16 %v944, %v944
    %v947 = vpack.c.bf16 %v945, %v945
    %s948 = scalar_lea.vmem [#allocation8], 1536
    %v949 = vld [vmem:[%s948] sm:$0xff]
    %v950 = vld [vmem:[%s948 + $0x8] sm:$0xff]
    %v951 = vld [vmem:[%s948 + $0x10] sm:$0xff]
    %v952 = vld [vmem:[%s948 + $0x18] sm:$0xff]
    %v953 = vld [vmem:[%s948 + $0x20] sm:$0xff]
    %v954 = vld [vmem:[%s948 + $0x28] sm:$0xff]
    %v955 = vld [vmem:[%s948 + $0x30] sm:$0xff]
    %v956 = vld [vmem:[%s948 + $0x38] sm:$0xff]
    %v957 = vld [vmem:[%s948 + $0x40] sm:$0xff]
    %v958 = vld [vmem:[%s948 + $0x48] sm:$0xff]
    %v959 = vld [vmem:[%s948 + $0x50] sm:$0xff]
    %v960 = vld [vmem:[%s948 + $0x58] sm:$0xff]
    %v961 = vld [vmem:[%s948 + $0x60] sm:$0xff]
    %v962 = vld [vmem:[%s948 + $0x68] sm:$0xff]
    %v963 = vld [vmem:[%s948 + $0x70] sm:$0xff]
    %v964 = vld [vmem:[%s948 + $0x78] sm:$0xff]
    %v965 = vld [vmem:[%s948 + $0x80] sm:$0xff]
    %v966 = vld [vmem:[%s948 + $0x88] sm:$0xff]
    %v967 = vld [vmem:[%s948 + $0x90] sm:$0xff]
    %v968 = vld [vmem:[%s948 + $0x98] sm:$0xff]
    %v969 = vld [vmem:[%s948 + $0xa0] sm:$0xff]
    %v970 = vld [vmem:[%s948 + $0xa8] sm:$0xff]
    %v971 = vld [vmem:[%s948 + $0xb0] sm:$0xff]
    %v972 = vld [vmem:[%s948 + $0xb8] sm:$0xff]
    %v973 = vld [vmem:[%s948 + $0xc0] sm:$0xff]
    %v974 = vld [vmem:[%s948 + $0xc8] sm:$0xff]
    %v975 = vld [vmem:[%s948 + $0xd0] sm:$0xff]
    %v976 = vld [vmem:[%s948 + $0xd8] sm:$0xff]
    %v977 = vld [vmem:[%s948 + $0xe0] sm:$0xff]
    %v978 = vld [vmem:[%s948 + $0xe8] sm:$0xff]
    %v979 = vld [vmem:[%s948 + $0xf0] sm:$0xff]
    %v980 = vld [vmem:[%s948 + $0xf8] sm:$0xff]
    %s981 = scalar_lea.vmem [#allocation11], 7
    %v982 = vld [vmem:[%s981] ss:$8 sm:$0x3]
    %v984 = vlaneseq
    %v985 = vshrl.u32 %v984, 7
    %v986 = vsub.s32 0, %v985
    %v987 = vrot.slane %v982, %v986
    %v988 = vlaneseq
    %v989 = vshrl.u32 %v988, 7
    %v990 = vsub.s32 1, %v989
    %v991 = vrot.slane %v982, %v990
    %v1026 = vunpack.c.l.b16 %v949
    %v1027 = vunpack.c.h.b16 %v949
    %v1028 = vunpack.c.l.b16 %v950
    %v1029 = vunpack.c.h.b16 %v950
    %v1030 = vunpack.c.l.b16 %v951
    %v1031 = vunpack.c.h.b16 %v951
    %v1032 = vunpack.c.l.b16 %v952
    %v1033 = vunpack.c.h.b16 %v952
    %v1034 = vunpack.c.l.b16 %v953
    %v1035 = vunpack.c.h.b16 %v953
    %v1036 = vunpack.c.l.b16 %v954
    %v1037 = vunpack.c.h.b16 %v954
    %v1038 = vunpack.c.l.b16 %v955
    %v1039 = vunpack.c.h.b16 %v955
    %v1040 = vunpack.c.l.b16 %v956
    %v1041 = vunpack.c.h.b16 %v956
    %v1042 = vunpack.c.l.b16 %v957
    %v1043 = vunpack.c.h.b16 %v957
    %v1044 = vunpack.c.l.b16 %v958
    %v1045 = vunpack.c.h.b16 %v958
    %v1046 = vunpack.c.l.b16 %v959
    %v1047 = vunpack.c.h.b16 %v959
    %v1048 = vunpack.c.l.b16 %v960
    %v1049 = vunpack.c.h.b16 %v960
    %v1050 = vunpack.c.l.b16 %v961
    %v1051 = vunpack.c.h.b16 %v961
    %v1052 = vunpack.c.l.b16 %v962
    %v1053 = vunpack.c.h.b16 %v962
    %v1054 = vunpack.c.l.b16 %v963
    %v1055 = vunpack.c.h.b16 %v963
    %v1056 = vunpack.c.l.b16 %v964
    %v1057 = vunpack.c.h.b16 %v964
    %v1058 = vunpack.c.l.b16 %v965
    %v1059 = vunpack.c.h.b16 %v965
    %v1060 = vunpack.c.l.b16 %v966
    %v1061 = vunpack.c.h.b16 %v966
    %v1062 = vunpack.c.l.b16 %v967
    %v1063 = vunpack.c.h.b16 %v967
    %v1064 = vunpack.c.l.b16 %v968
    %v1065 = vunpack.c.h.b16 %v968
    %v1066 = vunpack.c.l.b16 %v969
    %v1067 = vunpack.c.h.b16 %v969
    %v1068 = vunpack.c.l.b16 %v970
    %v1069 = vunpack.c.h.b16 %v970
    %v1070 = vunpack.c.l.b16 %v971
    %v1071 = vunpack.c.h.b16 %v971
    %v1072 = vunpack.c.l.b16 %v972
    %v1073 = vunpack.c.h.b16 %v972
    %v1074 = vunpack.c.l.b16 %v973
    %v1075 = vunpack.c.h.b16 %v973
    %v1076 = vunpack.c.l.b16 %v974
    %v1077 = vunpack.c.h.b16 %v974
    %v1078 = vunpack.c.l.b16 %v975
    %v1079 = vunpack.c.h.b16 %v975
    %v1080 = vunpack.c.l.b16 %v976
    %v1081 = vunpack.c.h.b16 %v976
    %v1082 = vunpack.c.l.b16 %v977
    %v1083 = vunpack.c.h.b16 %v977
    %v1084 = vunpack.c.l.b16 %v978
    %v1085 = vunpack.c.h.b16 %v978
    %v1086 = vunpack.c.l.b16 %v979
    %v1087 = vunpack.c.h.b16 %v979
    %v1088 = vunpack.c.l.b16 %v980
    %v1089 = vunpack.c.h.b16 %v980
    %v1090 = vpack.c.b16 %v1028, %v1026
    %v1091 = vpack.c.b16 %v1029, %v1027
    %v1092 = vpack.c.b16 %v1032, %v1030
    %v1093 = vpack.c.b16 %v1033, %v1031
    %v1094 = vpack.c.b16 %v1036, %v1034
    %v1095 = vpack.c.b16 %v1037, %v1035
    %v1096 = vpack.c.b16 %v1040, %v1038
    %v1097 = vpack.c.b16 %v1041, %v1039
    %v1098 = vpack.c.b16 %v1044, %v1042
    %v1099 = vpack.c.b16 %v1045, %v1043
    %v1100 = vpack.c.b16 %v1048, %v1046
    %v1101 = vpack.c.b16 %v1049, %v1047
    %v1102 = vpack.c.b16 %v1052, %v1050
    %v1103 = vpack.c.b16 %v1053, %v1051
    %v1104 = vpack.c.b16 %v1056, %v1054
    %v1105 = vpack.c.b16 %v1057, %v1055
    %v1106 = vpack.c.b16 %v1060, %v1058
    %v1107 = vpack.c.b16 %v1061, %v1059
    %v1108 = vpack.c.b16 %v1064, %v1062
    %v1109 = vpack.c.b16 %v1065, %v1063
    %v1110 = vpack.c.b16 %v1068, %v1066
    %v1111 = vpack.c.b16 %v1069, %v1067
    %v1112 = vpack.c.b16 %v1072, %v1070
    %v1113 = vpack.c.b16 %v1073, %v1071
    %v1114 = vpack.c.b16 %v1076, %v1074
    %v1115 = vpack.c.b16 %v1077, %v1075
    %v1116 = vpack.c.b16 %v1080, %v1078
    %v1117 = vpack.c.b16 %v1081, %v1079
    %v1118 = vpack.c.b16 %v1084, %v1082
    %v1119 = vpack.c.b16 %v1085, %v1083
    %v1120 = vpack.c.b16 %v1088, %v1086
    %v1121 = vpack.c.b16 %v1089, %v1087
    %1154 = vmatprep.subr.bf16.mxu0 %v1091
    %1155 = vmatpush1.bf16.msra.mxu0 %v1090
    %1156 = vmatprep.subr.bf16.mxu0 %v1093
    %1157 = vmatpush1.bf16.msra.mxu0 %v1092
    %1158 = vmatprep.subr.bf16.mxu0 %v1095
    %1159 = vmatpush1.bf16.msra.mxu0 %v1094
    %1160 = vmatprep.subr.bf16.mxu0 %v1097
    %1161 = vmatpush1.bf16.msra.mxu0 %v1096
    %1162 = vmatprep.subr.bf16.mxu0 %v1099
    %1163 = vmatpush1.bf16.msra.mxu0 %v1098
    %1164 = vmatprep.subr.bf16.mxu0 %v1101
    %1165 = vmatpush1.bf16.msra.mxu0 %v1100
    %1166 = vmatprep.subr.bf16.mxu0 %v1103
    %1167 = vmatpush1.bf16.msra.mxu0 %v1102
    %1168 = vmatprep.subr.bf16.mxu0 %v1105
    %1169 = vmatpush1.bf16.msra.mxu0 %v1104
    %1170 = vmatprep.subr.bf16.mxu0 %v1107
    %1171 = vmatpush1.bf16.msra.mxu0 %v1106
    %1172 = vmatprep.subr.bf16.mxu0 %v1109
    %1173 = vmatpush1.bf16.msra.mxu0 %v1108
    %1174 = vmatprep.subr.bf16.mxu0 %v1111
    %1175 = vmatpush1.bf16.msra.mxu0 %v1110
    %1176 = vmatprep.subr.bf16.mxu0 %v1113
    %1177 = vmatpush1.bf16.msra.mxu0 %v1112
    %1178 = vmatprep.subr.bf16.mxu0 %v1115
    %1179 = vmatpush1.bf16.msra.mxu0 %v1114
    %1180 = vmatprep.subr.bf16.mxu0 %v1117
    %1181 = vmatpush1.bf16.msra.mxu0 %v1116
    %1182 = vmatprep.subr.bf16.mxu0 %v1119
    %1183 = vmatpush1.bf16.msra.mxu0 %v1118
    %1184 = vmatprep.subr.bf16.mxu0 %v1121
    %1185 = vmatpush1.bf16.msra.mxu0 %v1120
    %1186 = vmatprep.mubr.bf16.mxu0 %v947
    %1187 = vmatmul.mubr.bf16.gmra.mrb[0].mxu0 %v946
    %v1188 = vpop.f32.mrb[0].mxu0
    %v1189 = vadd.f32 %v987, %v1188
    %v1190 = vpop.f32.mrb[0].mxu0
    %v1191 = vadd.f32 %v991, %v1190
    %v1192 = vpop.f32.mrb[0].mxu0
    %v1193 = vpop.f32.mrb[0].mxu0
    %1194 = vdwg.mxu0
    %v1195 = vmax.f32 %v1189, 0.0
    %v1196 = vmax.f32 %v1191, 0.0
    %v1197 = vadd.f32 %v693, %v1195
    %v1198 = vadd.f32 %v694, %v1196
    %v1199 = vpack.c.bf16 %v1197, %v1197
    %v1200 = vpack.c.bf16 %v1198, %v1198
    %s1201 = scalar_lea.vmem [#allocation8], 512
    %v1202 = vld [vmem:[%s1201] sm:$0xff]
    %v1203 = vld [vmem:[%s1201 + $0x8] sm:$0xff]
    %v1204 = vld [vmem:[%s1201 + $0x10] sm:$0xff]
    %v1205 = vld [vmem:[%s1201 + $0x18] sm:$0xff]
    %v1206 = vld [vmem:[%s1201 + $0x20] sm:$0xff]
    %v1207 = vld [vmem:[%s1201 + $0x28] sm:$0xff]
    %v1208 = vld [vmem:[%s1201 + $0x30] sm:$0xff]
    %v1209 = vld [vmem:[%s1201 + $0x38] sm:$0xff]
    %v1210 = vld [vmem:[%s1201 + $0x40] sm:$0xff]
    %v1211 = vld [vmem:[%s1201 + $0x48] sm:$0xff]
    %v1212 = vld [vmem:[%s1201 + $0x50] sm:$0xff]
    %v1213 = vld [vmem:[%s1201 + $0x58] sm:$0xff]
    %v1214 = vld [vmem:[%s1201 + $0x60] sm:$0xff]
    %v1215 = vld [vmem:[%s1201 + $0x68] sm:$0xff]
    %v1216 = vld [vmem:[%s1201 + $0x70] sm:$0xff]
    %v1217 = vld [vmem:[%s1201 + $0x78] sm:$0xff]
    %v1218 = vld [vmem:[%s1201 + $0x80] sm:$0xff]
    %v1219 = vld [vmem:[%s1201 + $0x88] sm:$0xff]
    %v1220 = vld [vmem:[%s1201 + $0x90] sm:$0xff]
    %v1221 = vld [vmem:[%s1201 + $0x98] sm:$0xff]
    %v1222 = vld [vmem:[%s1201 + $0xa0] sm:$0xff]
    %v1223 = vld [vmem:[%s1201 + $0xa8] sm:$0xff]
    %v1224 = vld [vmem:[%s1201 + $0xb0] sm:$0xff]
    %v1225 = vld [vmem:[%s1201 + $0xb8] sm:$0xff]
    %v1226 = vld [vmem:[%s1201 + $0xc0] sm:$0xff]
    %v1227 = vld [vmem:[%s1201 + $0xc8] sm:$0xff]
    %v1228 = vld [vmem:[%s1201 + $0xd0] sm:$0xff]
    %v1229 = vld [vmem:[%s1201 + $0xd8] sm:$0xff]
    %v1230 = vld [vmem:[%s1201 + $0xe0] sm:$0xff]
    %v1231 = vld [vmem:[%s1201 + $0xe8] sm:$0xff]
    %v1232 = vld [vmem:[%s1201 + $0xf0] sm:$0xff]
    %v1233 = vld [vmem:[%s1201 + $0xf8] sm:$0xff]
    %s1234 = scalar_lea.vmem [#allocation11], 3
    %v1235 = vld [vmem:[%s1234] ss:$8 sm:$0x3]
    %v1237 = vlaneseq
    %v1238 = vshrl.u32 %v1237, 7
    %v1239 = vsub.s32 0, %v1238
    %v1240 = vrot.slane %v1235, %v1239
    %v1241 = vlaneseq
    %v1242 = vshrl.u32 %v1241, 7
    %v1243 = vsub.s32 1, %v1242
    %v1244 = vrot.slane %v1235, %v1243
    %v1279 = vunpack.c.l.b16 %v1202
    %v1280 = vunpack.c.h.b16 %v1202
    %v1281 = vunpack.c.l.b16 %v1203
    %v1282 = vunpack.c.h.b16 %v1203
    %v1283 = vunpack.c.l.b16 %v1204
    %v1284 = vunpack.c.h.b16 %v1204
    %v1285 = vunpack.c.l.b16 %v1205
    %v1286 = vunpack.c.h.b16 %v1205
    %v1287 = vunpack.c.l.b16 %v1206
    %v1288 = vunpack.c.h.b16 %v1206
    %v1289 = vunpack.c.l.b16 %v1207
    %v1290 = vunpack.c.h.b16 %v1207
    %v1291 = vunpack.c.l.b16 %v1208
    %v1292 = vunpack.c.h.b16 %v1208
    %v1293 = vunpack.c.l.b16 %v1209
    %v1294 = vunpack.c.h.b16 %v1209
    %v1295 = vunpack.c.l.b16 %v1210
    %v1296 = vunpack.c.h.b16 %v1210
    %v1297 = vunpack.c.l.b16 %v1211
    %v1298 = vunpack.c.h.b16 %v1211
    %v1299 = vunpack.c.l.b16 %v1212
    %v1300 = vunpack.c.h.b16 %v1212
    %v1301 = vunpack.c.l.b16 %v1213
    %v1302 = vunpack.c.h.b16 %v1213
    %v1303 = vunpack.c.l.b16 %v1214
    %v1304 = vunpack.c.h.b16 %v1214
    %v1305 = vunpack.c.l.b16 %v1215
    %v1306 = vunpack.c.h.b16 %v1215
    %v1307 = vunpack.c.l.b16 %v1216
    %v1308 = vunpack.c.h.b16 %v1216
    %v1309 = vunpack.c.l.b16 %v1217
    %v1310 = vunpack.c.h.b16 %v1217
    %v1311 = vunpack.c.l.b16 %v1218
    %v1312 = vunpack.c.h.b16 %v1218
    %v1313 = vunpack.c.l.b16 %v1219
    %v1314 = vunpack.c.h.b16 %v1219
    %v1315 = vunpack.c.l.b16 %v1220
    %v1316 = vunpack.c.h.b16 %v1220
    %v1317 = vunpack.c.l.b16 %v1221
    %v1318 = vunpack.c.h.b16 %v1221
    %v1319 = vunpack.c.l.b16 %v1222
    %v1320 = vunpack.c.h.b16 %v1222
    %v1321 = vunpack.c.l.b16 %v1223
    %v1322 = vunpack.c.h.b16 %v1223
    %v1323 = vunpack.c.l.b16 %v1224
    %v1324 = vunpack.c.h.b16 %v1224
    %v1325 = vunpack.c.l.b16 %v1225
    %v1326 = vunpack.c.h.b16 %v1225
    %v1327 = vunpack.c.l.b16 %v1226
    %v1328 = vunpack.c.h.b16 %v1226
    %v1329 = vunpack.c.l.b16 %v1227
    %v1330 = vunpack.c.h.b16 %v1227
    %v1331 = vunpack.c.l.b16 %v1228
    %v1332 = vunpack.c.h.b16 %v1228
    %v1333 = vunpack.c.l.b16 %v1229
    %v1334 = vunpack.c.h.b16 %v1229
    %v1335 = vunpack.c.l.b16 %v1230
    %v1336 = vunpack.c.h.b16 %v1230
    %v1337 = vunpack.c.l.b16 %v1231
    %v1338 = vunpack.c.h.b16 %v1231
    %v1339 = vunpack.c.l.b16 %v1232
    %v1340 = vunpack.c.h.b16 %v1232
    %v1341 = vunpack.c.l.b16 %v1233
    %v1342 = vunpack.c.h.b16 %v1233
    %v1343 = vpack.c.b16 %v1281, %v1279
    %v1344 = vpack.c.b16 %v1282, %v1280
    %v1345 = vpack.c.b16 %v1285, %v1283
    %v1346 = vpack.c.b16 %v1286, %v1284
    %v1347 = vpack.c.b16 %v1289, %v1287
    %v1348 = vpack.c.b16 %v1290, %v1288
    %v1349 = vpack.c.b16 %v1293, %v1291
    %v1350 = vpack.c.b16 %v1294, %v1292
    %v1351 = vpack.c.b16 %v1297, %v1295
    %v1352 = vpack.c.b16 %v1298, %v1296
    %v1353 = vpack.c.b16 %v1301, %v1299
    %v1354 = vpack.c.b16 %v1302, %v1300
    %v1355 = vpack.c.b16 %v1305, %v1303
    %v1356 = vpack.c.b16 %v1306, %v1304
    %v1357 = vpack.c.b16 %v1309, %v1307
    %v1358 = vpack.c.b16 %v1310, %v1308
    %v1359 = vpack.c.b16 %v1313, %v1311
    %v1360 = vpack.c.b16 %v1314, %v1312
    %v1361 = vpack.c.b16 %v1317, %v1315
    %v1362 = vpack.c.b16 %v1318, %v1316
    %v1363 = vpack.c.b16 %v1321, %v1319
    %v1364 = vpack.c.b16 %v1322, %v1320
    %v1365 = vpack.c.b16 %v1325, %v1323
    %v1366 = vpack.c.b16 %v1326, %v1324
    %v1367 = vpack.c.b16 %v1329, %v1327
    %v1368 = vpack.c.b16 %v1330, %v1328
    %v1369 = vpack.c.b16 %v1333, %v1331
    %v1370 = vpack.c.b16 %v1334, %v1332
    %v1371 = vpack.c.b16 %v1337, %v1335
    %v1372 = vpack.c.b16 %v1338, %v1336
    %v1373 = vpack.c.b16 %v1341, %v1339
    %v1374 = vpack.c.b16 %v1342, %v1340
    %1407 = vmatprep.subr.bf16.mxu0 %v1344
    %1408 = vmatpush1.bf16.msra.mxu0 %v1343
    %1409 = vmatprep.subr.bf16.mxu0 %v1346
    %1410 = vmatpush1.bf16.msra.mxu0 %v1345
    %1411 = vmatprep.subr.bf16.mxu0 %v1348
    %1412 = vmatpush1.bf16.msra.mxu0 %v1347
    %1413 = vmatprep.subr.bf16.mxu0 %v1350
    %1414 = vmatpush1.bf16.msra.mxu0 %v1349
    %1415 = vmatprep.subr.bf16.mxu0 %v1352
    %1416 = vmatpush1.bf16.msra.mxu0 %v1351
    %1417 = vmatprep.subr.bf16.mxu0 %v1354
    %1418 = vmatpush1.bf16.msra.mxu0 %v1353
    %1419 = vmatprep.subr.bf16.mxu0 %v1356
    %1420 = vmatpush1.bf16.msra.mxu0 %v1355
    %1421 = vmatprep.subr.bf16.mxu0 %v1358
    %1422 = vmatpush1.bf16.msra.mxu0 %v1357
    %1423 = vmatprep.subr.bf16.mxu0 %v1360
    %1424 = vmatpush1.bf16.msra.mxu0 %v1359
    %1425 = vmatprep.subr.bf16.mxu0 %v1362
    %1426 = vmatpush1.bf16.msra.mxu0 %v1361
    %1427 = vmatprep.subr.bf16.mxu0 %v1364
    %1428 = vmatpush1.bf16.msra.mxu0 %v1363
    %1429 = vmatprep.subr.bf16.mxu0 %v1366
    %1430 = vmatpush1.bf16.msra.mxu0 %v1365
    %1431 = vmatprep.subr.bf16.mxu0 %v1368
    %1432 = vmatpush1.bf16.msra.mxu0 %v1367
    %1433 = vmatprep.subr.bf16.mxu0 %v1370
    %1434 = vmatpush1.bf16.msra.mxu0 %v1369
    %1435 = vmatprep.subr.bf16.mxu0 %v1372
    %1436 = vmatpush1.bf16.msra.mxu0 %v1371
    %1437 = vmatprep.subr.bf16.mxu0 %v1374
    %1438 = vmatpush1.bf16.msra.mxu0 %v1373
    %1439 = vmatprep.mubr.bf16.mxu0 %v1200
    %1440 = vmatmul.mubr.bf16.gmra.mrb[0].mxu0 %v1199
    %v1441 = vpop.f32.mrb[0].mxu0
    %v1442 = vadd.f32 %v1240, %v1441
    %v1443 = vpop.f32.mrb[0].mxu0
    %v1444 = vadd.f32 %v1244, %v1443
    %v1445 = vpop.f32.mrb[0].mxu0
    %v1446 = vpop.f32.mrb[0].mxu0
    %1447 = vdwg.mxu0
    %v1448 = vmax.f32 %v1442, 0.0
    %v1449 = vmax.f32 %v1444, 0.0
    %v1450 = vpack.c.bf16 %v1448, %v1448
    %v1451 = vpack.c.bf16 %v1449, %v1449
    %s1452 = scalar_lea.vmem [#allocation8], 1792
    %v1453 = vld [vmem:[%s1452] sm:$0xff]
    %v1454 = vld [vmem:[%s1452 + $0x8] sm:$0xff]
    %v1455 = vld [vmem:[%s1452 + $0x10] sm:$0xff]
    %v1456 = vld [vmem:[%s1452 + $0x18] sm:$0xff]
    %v1457 = vld [vmem:[%s1452 + $0x20] sm:$0xff]
    %v1458 = vld [vmem:[%s1452 + $0x28] sm:$0xff]
    %v1459 = vld [vmem:[%s1452 + $0x30] sm:$0xff]
    %v1460 = vld [vmem:[%s1452 + $0x38] sm:$0xff]
    %v1461 = vld [vmem:[%s1452 + $0x40] sm:$0xff]
    %v1462 = vld [vmem:[%s1452 + $0x48] sm:$0xff]
    %v1463 = vld [vmem:[%s1452 + $0x50] sm:$0xff]
    %v1464 = vld [vmem:[%s1452 + $0x58] sm:$0xff]
    %v1465 = vld [vmem:[%s1452 + $0x60] sm:$0xff]
    %v1466 = vld [vmem:[%s1452 + $0x68] sm:$0xff]
    %v1467 = vld [vmem:[%s1452 + $0x70] sm:$0xff]
    %v1468 = vld [vmem:[%s1452 + $0x78] sm:$0xff]
    %v1469 = vld [vmem:[%s1452 + $0x80] sm:$0xff]
    %v1470 = vld [vmem:[%s1452 + $0x88] sm:$0xff]
    %v1471 = vld [vmem:[%s1452 + $0x90] sm:$0xff]
    %v1472 = vld [vmem:[%s1452 + $0x98] sm:$0xff]
    %v1473 = vld [vmem:[%s1452 + $0xa0] sm:$0xff]
    %v1474 = vld [vmem:[%s1452 + $0xa8] sm:$0xff]
    %v1475 = vld [vmem:[%s1452 + $0xb0] sm:$0xff]
    %v1476 = vld [vmem:[%s1452 + $0xb8] sm:$0xff]
    %v1477 = vld [vmem:[%s1452 + $0xc0] sm:$0xff]
    %v1478 = vld [vmem:[%s1452 + $0xc8] sm:$0xff]
    %v1479 = vld [vmem:[%s1452 + $0xd0] sm:$0xff]
    %v1480 = vld [vmem:[%s1452 + $0xd8] sm:$0xff]
    %v1481 = vld [vmem:[%s1452 + $0xe0] sm:$0xff]
    %v1482 = vld [vmem:[%s1452 + $0xe8] sm:$0xff]
    %v1483 = vld [vmem:[%s1452 + $0xf0] sm:$0xff]
    %v1484 = vld [vmem:[%s1452 + $0xf8] sm:$0xff]
    %s1485 = scalar_lea.vmem [#allocation11], 16
    %v1486 = vld [vmem:[%s1485] ss:$8 sm:$0x3]
    %v1488 = vlaneseq
    %v1489 = vshrl.u32 %v1488, 7
    %v1490 = vsub.s32 0, %v1489
    %v1491 = vrot.slane %v1486, %v1490
    %v1492 = vlaneseq
    %v1493 = vshrl.u32 %v1492, 7
    %v1494 = vsub.s32 1, %v1493
    %v1495 = vrot.slane %v1486, %v1494
    %v1530 = vunpack.c.l.b16 %v1453
    %v1531 = vunpack.c.h.b16 %v1453
    %v1532 = vunpack.c.l.b16 %v1454
    %v1533 = vunpack.c.h.b16 %v1454
    %v1534 = vunpack.c.l.b16 %v1455
    %v1535 = vunpack.c.h.b16 %v1455
    %v1536 = vunpack.c.l.b16 %v1456
    %v1537 = vunpack.c.h.b16 %v1456
    %v1538 = vunpack.c.l.b16 %v1457
    %v1539 = vunpack.c.h.b16 %v1457
    %v1540 = vunpack.c.l.b16 %v1458
    %v1541 = vunpack.c.h.b16 %v1458
    %v1542 = vunpack.c.l.b16 %v1459
    %v1543 = vunpack.c.h.b16 %v1459
    %v1544 = vunpack.c.l.b16 %v1460
    %v1545 = vunpack.c.h.b16 %v1460
    %v1546 = vunpack.c.l.b16 %v1461
    %v1547 = vunpack.c.h.b16 %v1461
    %v1548 = vunpack.c.l.b16 %v1462
    %v1549 = vunpack.c.h.b16 %v1462
    %v1550 = vunpack.c.l.b16 %v1463
    %v1551 = vunpack.c.h.b16 %v1463
    %v1552 = vunpack.c.l.b16 %v1464
    %v1553 = vunpack.c.h.b16 %v1464
    %v1554 = vunpack.c.l.b16 %v1465
    %v1555 = vunpack.c.h.b16 %v1465
    %v1556 = vunpack.c.l.b16 %v1466
    %v1557 = vunpack.c.h.b16 %v1466
    %v1558 = vunpack.c.l.b16 %v1467
    %v1559 = vunpack.c.h.b16 %v1467
    %v1560 = vunpack.c.l.b16 %v1468
    %v1561 = vunpack.c.h.b16 %v1468
    %v1562 = vunpack.c.l.b16 %v1469
    %v1563 = vunpack.c.h.b16 %v1469
    %v1564 = vunpack.c.l.b16 %v1470
    %v1565 = vunpack.c.h.b16 %v1470
    %v1566 = vunpack.c.l.b16 %v1471
    %v1567 = vunpack.c.h.b16 %v1471
    %v1568 = vunpack.c.l.b16 %v1472
    %v1569 = vunpack.c.h.b16 %v1472
    %v1570 = vunpack.c.l.b16 %v1473
    %v1571 = vunpack.c.h.b16 %v1473
    %v1572 = vunpack.c.l.b16 %v1474
    %v1573 = vunpack.c.h.b16 %v1474
    %v1574 = vunpack.c.l.b16 %v1475
    %v1575 = vunpack.c.h.b16 %v1475
    %v1576 = vunpack.c.l.b16 %v1476
    %v1577 = vunpack.c.h.b16 %v1476
    %v1578 = vunpack.c.l.b16 %v1477
    %v1579 = vunpack.c.h.b16 %v1477
    %v1580 = vunpack.c.l.b16 %v1478
    %v1581 = vunpack.c.h.b16 %v1478
    %v1582 = vunpack.c.l.b16 %v1479
    %v1583 = vunpack.c.h.b16 %v1479
    %v1584 = vunpack.c.l.b16 %v1480
    %v1585 = vunpack.c.h.b16 %v1480
    %v1586 = vunpack.c.l.b16 %v1481
    %v1587 = vunpack.c.h.b16 %v1481
    %v1588 = vunpack.c.l.b16 %v1482
    %v1589 = vunpack.c.h.b16 %v1482
    %v1590 = vunpack.c.l.b16 %v1483
    %v1591 = vunpack.c.h.b16 %v1483
    %v1592 = vunpack.c.l.b16 %v1484
    %v1593 = vunpack.c.h.b16 %v1484
    %v1594 = vpack.c.b16 %v1532, %v1530
    %v1595 = vpack.c.b16 %v1533, %v1531
    %v1596 = vpack.c.b16 %v1536, %v1534
    %v1597 = vpack.c.b16 %v1537, %v1535
    %v1598 = vpack.c.b16 %v1540, %v1538
    %v1599 = vpack.c.b16 %v1541, %v1539
    %v1600 = vpack.c.b16 %v1544, %v1542
    %v1601 = vpack.c.b16 %v1545, %v1543
    %v1602 = vpack.c.b16 %v1548, %v1546
    %v1603 = vpack.c.b16 %v1549, %v1547
    %v1604 = vpack.c.b16 %v1552, %v1550
    %v1605 = vpack.c.b16 %v1553, %v1551
    %v1606 = vpack.c.b16 %v1556, %v1554
    %v1607 = vpack.c.b16 %v1557, %v1555
    %v1608 = vpack.c.b16 %v1560, %v1558
    %v1609 = vpack.c.b16 %v1561, %v1559
    %v1610 = vpack.c.b16 %v1564, %v1562
    %v1611 = vpack.c.b16 %v1565, %v1563
    %v1612 = vpack.c.b16 %v1568, %v1566
    %v1613 = vpack.c.b16 %v1569, %v1567
    %v1614 = vpack.c.b16 %v1572, %v1570
    %v1615 = vpack.c.b16 %v1573, %v1571
    %v1616 = vpack.c.b16 %v1576, %v1574
    %v1617 = vpack.c.b16 %v1577, %v1575
    %v1618 = vpack.c.b16 %v1580, %v1578
    %v1619 = vpack.c.b16 %v1581, %v1579
    %v1620 = vpack.c.b16 %v1584, %v1582
    %v1621 = vpack.c.b16 %v1585, %v1583
    %v1622 = vpack.c.b16 %v1588, %v1586
    %v1623 = vpack.c.b16 %v1589, %v1587
    %v1624 = vpack.c.b16 %v1592, %v1590
    %v1625 = vpack.c.b16 %v1593, %v1591
    %1658 = vmatprep.subr.bf16.mxu0 %v1595
    %1659 = vmatpush1.bf16.msra.mxu0 %v1594
    %1660 = vmatprep.subr.bf16.mxu0 %v1597
    %1661 = vmatpush1.bf16.msra.mxu0 %v1596
    %1662 = vmatprep.subr.bf16.mxu0 %v1599
    %1663 = vmatpush1.bf16.msra.mxu0 %v1598
    %1664 = vmatprep.subr.bf16.mxu0 %v1601
    %1665 = vmatpush1.bf16.msra.mxu0 %v1600
    %1666 = vmatprep.subr.bf16.mxu0 %v1603
    %1667 = vmatpush1.bf16.msra.mxu0 %v1602
    %1668 = vmatprep.subr.bf16.mxu0 %v1605
    %1669 = vmatpush1.bf16.msra.mxu0 %v1604
    %1670 = vmatprep.subr.bf16.mxu0 %v1607
    %1671 = vmatpush1.bf16.msra.mxu0 %v1606
    %1672 = vmatprep.subr.bf16.mxu0 %v1609
    %1673 = vmatpush1.bf16.msra.mxu0 %v1608
    %1674 = vmatprep.subr.bf16.mxu0 %v1611
    %1675 = vmatpush1.bf16.msra.mxu0 %v1610
    %1676 = vmatprep.subr.bf16.mxu0 %v1613
    %1677 = vmatpush1.bf16.msra.mxu0 %v1612
    %1678 = vmatprep.subr.bf16.mxu0 %v1615
    %1679 = vmatpush1.bf16.msra.mxu0 %v1614
    %1680 = vmatprep.subr.bf16.mxu0 %v1617
    %1681 = vmatpush1.bf16.msra.mxu0 %v1616
    %1682 = vmatprep.subr.bf16.mxu0 %v1619
    %1683 = vmatpush1.bf16.msra.mxu0 %v1618
    %1684 = vmatprep.subr.bf16.mxu0 %v1621
    %1685 = vmatpush1.bf16.msra.mxu0 %v1620
    %1686 = vmatprep.subr.bf16.mxu0 %v1623
    %1687 = vmatpush1.bf16.msra.mxu0 %v1622
    %1688 = vmatprep.subr.bf16.mxu0 %v1625
    %1689 = vmatpush1.bf16.msra.mxu0 %v1624
    %1690 = vmatprep.mubr.bf16.mxu0 %v1451
    %1691 = vmatmul.mubr.bf16.gmra.mrb[0].mxu0 %v1450
    %v1692 = vpop.f32.mrb[0].mxu0
    %v1693 = vadd.f32 %v1491, %v1692
    %v1694 = vpop.f32.mrb[0].mxu0
    %v1695 = vadd.f32 %v1495, %v1694
    %v1696 = vpop.f32.mrb[0].mxu0
    %v1697 = vpop.f32.mrb[0].mxu0
    %1698 = vdwg.mxu0
    %v1699 = vmax.f32 %v1693, 0.0
    %v1700 = vmax.f32 %v1695, 0.0
    %v1701 = vadd.f32 %v1197, %v1699
    %v1702 = vadd.f32 %v1198, %v1700
    %v1703 = vpack.c.bf16 %v1701, %v1701
    %v1704 = vpack.c.bf16 %v1702, %v1702
    %s1705 = scalar_lea.vmem [#allocation8], 768
    %v1706 = vld [vmem:[%s1705] sm:$0xff]
    %v1707 = vld [vmem:[%s1705 + $0x8] sm:$0xff]
    %v1708 = vld [vmem:[%s1705 + $0x10] sm:$0xff]
    %v1709 = vld [vmem:[%s1705 + $0x18] sm:$0xff]
    %v1710 = vld [vmem:[%s1705 + $0x20] sm:$0xff]
    %v1711 = vld [vmem:[%s1705 + $0x28] sm:$0xff]
    %v1712 = vld [vmem:[%s1705 + $0x30] sm:$0xff]
    %v1713 = vld [vmem:[%s1705 + $0x38] sm:$0xff]
    %v1714 = vld [vmem:[%s1705 + $0x40] sm:$0xff]
    %v1715 = vld [vmem:[%s1705 + $0x48] sm:$0xff]
    %v1716 = vld [vmem:[%s1705 + $0x50] sm:$0xff]
    %v1717 = vld [vmem:[%s1705 + $0x58] sm:$0xff]
    %v1718 = vld [vmem:[%s1705 + $0x60] sm:$0xff]
    %v1719 = vld [vmem:[%s1705 + $0x68] sm:$0xff]
    %v1720 = vld [vmem:[%s1705 + $0x70] sm:$0xff]
    %v1721 = vld [vmem:[%s1705 + $0x78] sm:$0xff]
    %v1722 = vld [vmem:[%s1705 + $0x80] sm:$0xff]
    %v1723 = vld [vmem:[%s1705 + $0x88] sm:$0xff]
    %v1724 = vld [vmem:[%s1705 + $0x90] sm:$0xff]
    %v1725 = vld [vmem:[%s1705 + $0x98] sm:$0xff]
    %v1726 = vld [vmem:[%s1705 + $0xa0] sm:$0xff]
    %v1727 = vld [vmem:[%s1705 + $0xa8] sm:$0xff]
    %v1728 = vld [vmem:[%s1705 + $0xb0] sm:$0xff]
    %v1729 = vld [vmem:[%s1705 + $0xb8] sm:$0xff]
    %v1730 = vld [vmem:[%s1705 + $0xc0] sm:$0xff]
    %v1731 = vld [vmem:[%s1705 + $0xc8] sm:$0xff]
    %v1732 = vld [vmem:[%s1705 + $0xd0] sm:$0xff]
    %v1733 = vld [vmem:[%s1705 + $0xd8] sm:$0xff]
    %v1734 = vld [vmem:[%s1705 + $0xe0] sm:$0xff]
    %v1735 = vld [vmem:[%s1705 + $0xe8] sm:$0xff]
    %v1736 = vld [vmem:[%s1705 + $0xf0] sm:$0xff]
    %v1737 = vld [vmem:[%s1705 + $0xf8] sm:$0xff]
    %s1738 = scalar_lea.vmem [#allocation11], 4
    %v1739 = vld [vmem:[%s1738] ss:$8 sm:$0x3]
    %v1741 = vlaneseq
    %v1742 = vshrl.u32 %v1741, 7
    %v1743 = vsub.s32 0, %v1742
    %v1744 = vrot.slane %v1739, %v1743
    %v1745 = vlaneseq
    %v1746 = vshrl.u32 %v1745, 7
    %v1747 = vsub.s32 1, %v1746
    %v1748 = vrot.slane %v1739, %v1747
    %v1783 = vunpack.c.l.b16 %v1706
    %v1784 = vunpack.c.h.b16 %v1706
    %v1785 = vunpack.c.l.b16 %v1707
    %v1786 = vunpack.c.h.b16 %v1707
    %v1787 = vunpack.c.l.b16 %v1708
    %v1788 = vunpack.c.h.b16 %v1708
    %v1789 = vunpack.c.l.b16 %v1709
    %v1790 = vunpack.c.h.b16 %v1709
    %v1791 = vunpack.c.l.b16 %v1710
    %v1792 = vunpack.c.h.b16 %v1710
    %v1793 = vunpack.c.l.b16 %v1711
    %v1794 = vunpack.c.h.b16 %v1711
    %v1795 = vunpack.c.l.b16 %v1712
    %v1796 = vunpack.c.h.b16 %v1712
    %v1797 = vunpack.c.l.b16 %v1713
    %v1798 = vunpack.c.h.b16 %v1713
    %v1799 = vunpack.c.l.b16 %v1714
    %v1800 = vunpack.c.h.b16 %v1714
    %v1801 = vunpack.c.l.b16 %v1715
    %v1802 = vunpack.c.h.b16 %v1715
    %v1803 = vunpack.c.l.b16 %v1716
    %v1804 = vunpack.c.h.b16 %v1716
    %v1805 = vunpack.c.l.b16 %v1717
    %v1806 = vunpack.c.h.b16 %v1717
    %v1807 = vunpack.c.l.b16 %v1718
    %v1808 = vunpack.c.h.b16 %v1718
    %v1809 = vunpack.c.l.b16 %v1719
    %v1810 = vunpack.c.h.b16 %v1719
    %v1811 = vunpack.c.l.b16 %v1720
    %v1812 = vunpack.c.h.b16 %v1720
    %v1813 = vunpack.c.l.b16 %v1721
    %v1814 = vunpack.c.h.b16 %v1721
    %v1815 = vunpack.c.l.b16 %v1722
    %v1816 = vunpack.c.h.b16 %v1722
    %v1817 = vunpack.c.l.b16 %v1723
    %v1818 = vunpack.c.h.b16 %v1723
    %v1819 = vunpack.c.l.b16 %v1724
    %v1820 = vunpack.c.h.b16 %v1724
    %v1821 = vunpack.c.l.b16 %v1725
    %v1822 = vunpack.c.h.b16 %v1725
    %v1823 = vunpack.c.l.b16 %v1726
    %v1824 = vunpack.c.h.b16 %v1726
    %v1825 = vunpack.c.l.b16 %v1727
    %v1826 = vunpack.c.h.b16 %v1727
    %v1827 = vunpack.c.l.b16 %v1728
    %v1828 = vunpack.c.h.b16 %v1728
    %v1829 = vunpack.c.l.b16 %v1729
    %v1830 = vunpack.c.h.b16 %v1729
    %v1831 = vunpack.c.l.b16 %v1730
    %v1832 = vunpack.c.h.b16 %v1730
    %v1833 = vunpack.c.l.b16 %v1731
    %v1834 = vunpack.c.h.b16 %v1731
    %v1835 = vunpack.c.l.b16 %v1732
    %v1836 = vunpack.c.h.b16 %v1732
    %v1837 = vunpack.c.l.b16 %v1733
    %v1838 = vunpack.c.h.b16 %v1733
    %v1839 = vunpack.c.l.b16 %v1734
    %v1840 = vunpack.c.h.b16 %v1734
    %v1841 = vunpack.c.l.b16 %v1735
    %v1842 = vunpack.c.h.b16 %v1735
    %v1843 = vunpack.c.l.b16 %v1736
    %v1844 = vunpack.c.h.b16 %v1736
    %v1845 = vunpack.c.l.b16 %v1737
    %v1846 = vunpack.c.h.b16 %v1737
    %v1847 = vpack.c.b16 %v1785, %v1783
    %v1848 = vpack.c.b16 %v1786, %v1784
    %v1849 = vpack.c.b16 %v1789, %v1787
    %v1850 = vpack.c.b16 %v1790, %v1788
    %v1851 = vpack.c.b16 %v1793, %v1791
    %v1852 = vpack.c.b16 %v1794, %v1792
    %v1853 = vpack.c.b16 %v1797, %v1795
    %v1854 = vpack.c.b16 %v1798, %v1796
    %v1855 = vpack.c.b16 %v1801, %v1799
    %v1856 = vpack.c.b16 %v1802, %v1800
    %v1857 = vpack.c.b16 %v1805, %v1803
    %v1858 = vpack.c.b16 %v1806, %v1804
    %v1859 = vpack.c.b16 %v1809, %v1807
    %v1860 = vpack.c.b16 %v1810, %v1808
    %v1861 = vpack.c.b16 %v1813, %v1811
    %v1862 = vpack.c.b16 %v1814, %v1812
    %v1863 = vpack.c.b16 %v1817, %v1815
    %v1864 = vpack.c.b16 %v1818, %v1816
    %v1865 = vpack.c.b16 %v1821, %v1819
    %v1866 = vpack.c.b16 %v1822, %v1820
    %v1867 = vpack.c.b16 %v1825, %v1823
    %v1868 = vpack.c.b16 %v1826, %v1824
    %v1869 = vpack.c.b16 %v1829, %v1827
    %v1870 = vpack.c.b16 %v1830, %v1828
    %v1871 = vpack.c.b16 %v1833, %v1831
    %v1872 = vpack.c.b16 %v1834, %v1832
    %v1873 = vpack.c.b16 %v1837, %v1835
    %v1874 = vpack.c.b16 %v1838, %v1836
    %v1875 = vpack.c.b16 %v1841, %v1839
    %v1876 = vpack.c.b16 %v1842, %v1840
    %v1877 = vpack.c.b16 %v1845, %v1843
    %v1878 = vpack.c.b16 %v1846, %v1844
    %1911 = vmatprep.subr.bf16.mxu0 %v1848
    %1912 = vmatpush1.bf16.msra.mxu0 %v1847
    %1913 = vmatprep.subr.bf16.mxu0 %v1850
    %1914 = vmatpush1.bf16.msra.mxu0 %v1849
    %1915 = vmatprep.subr.bf16.mxu0 %v1852
    %1916 = vmatpush1.bf16.msra.mxu0 %v1851
    %1917 = vmatprep.subr.bf16.mxu0 %v1854
    %1918 = vmatpush1.bf16.msra.mxu0 %v1853
    %1919 = vmatprep.subr.bf16.mxu0 %v1856
    %1920 = vmatpush1.bf16.msra.mxu0 %v1855
    %1921 = vmatprep.subr.bf16.mxu0 %v1858
    %1922 = vmatpush1.bf16.msra.mxu0 %v1857
    %1923 = vmatprep.subr.bf16.mxu0 %v1860
    %1924 = vmatpush1.bf16.msra.mxu0 %v1859
    %1925 = vmatprep.subr.bf16.mxu0 %v1862
    %1926 = vmatpush1.bf16.msra.mxu0 %v1861
    %1927 = vmatprep.subr.bf16.mxu0 %v1864
    %1928 = vmatpush1.bf16.msra.mxu0 %v1863
    %1929 = vmatprep.subr.bf16.mxu0 %v1866
    %1930 = vmatpush1.bf16.msra.mxu0 %v1865
    %1931 = vmatprep.subr.bf16.mxu0 %v1868
    %1932 = vmatpush1.bf16.msra.mxu0 %v1867
    %1933 = vmatprep.subr.bf16.mxu0 %v1870
    %1934 = vmatpush1.bf16.msra.mxu0 %v1869
    %1935 = vmatprep.subr.bf16.mxu0 %v1872
    %1936 = vmatpush1.bf16.msra.mxu0 %v1871
    %1937 = vmatprep.subr.bf16.mxu0 %v1874
    %1938 = vmatpush1.bf16.msra.mxu0 %v1873
    %1939 = vmatprep.subr.bf16.mxu0 %v1876
    %1940 = vmatpush1.bf16.msra.mxu0 %v1875
    %1941 = vmatprep.subr.bf16.mxu0 %v1878
    %1942 = vmatpush1.bf16.msra.mxu0 %v1877
    %1943 = vmatprep.mubr.bf16.mxu0 %v1704
    %1944 = vmatmul.mubr.bf16.gmra.mrb[0].mxu0 %v1703
    %v1945 = vpop.f32.mrb[0].mxu0
    %v1946 = vadd.f32 %v1744, %v1945
    %v1947 = vpop.f32.mrb[0].mxu0
    %v1948 = vadd.f32 %v1748, %v1947
    %v1949 = vpop.f32.mrb[0].mxu0
    %v1950 = vpop.f32.mrb[0].mxu0
    %1951 = vdwg.mxu0
    %v1952 = vmax.f32 %v1946, 0.0
    %v1953 = vmax.f32 %v1948, 0.0
    %v1954 = vpack.c.bf16 %v1952, %v1952
    %v1955 = vpack.c.bf16 %v1953, %v1953
    %s1956 = scalar_lea.vmem [#allocation8], 2048
    %v1957 = vld [vmem:[%s1956] sm:$0xff]
    %v1958 = vld [vmem:[%s1956 + $0x8] sm:$0xff]
    %v1959 = vld [vmem:[%s1956 + $0x10] sm:$0xff]
    %v1960 = vld [vmem:[%s1956 + $0x18] sm:$0xff]
    %v1961 = vld [vmem:[%s1956 + $0x20] sm:$0xff]
    %v1962 = vld [vmem:[%s1956 + $0x28] sm:$0xff]
    %v1963 = vld [vmem:[%s1956 + $0x30] sm:$0xff]
    %v1964 = vld [vmem:[%s1956 + $0x38] sm:$0xff]
    %v1965 = vld [vmem:[%s1956 + $0x40] sm:$0xff]
    %v1966 = vld [vmem:[%s1956 + $0x48] sm:$0xff]
    %v1967 = vld [vmem:[%s1956 + $0x50] sm:$0xff]
    %v1968 = vld [vmem:[%s1956 + $0x58] sm:$0xff]
    %v1969 = vld [vmem:[%s1956 + $0x60] sm:$0xff]
    %v1970 = vld [vmem:[%s1956 + $0x68] sm:$0xff]
    %v1971 = vld [vmem:[%s1956 + $0x70] sm:$0xff]
    %v1972 = vld [vmem:[%s1956 + $0x78] sm:$0xff]
    %v1973 = vld [vmem:[%s1956 + $0x80] sm:$0xff]
    %v1974 = vld [vmem:[%s1956 + $0x88] sm:$0xff]
    %v1975 = vld [vmem:[%s1956 + $0x90] sm:$0xff]
    %v1976 = vld [vmem:[%s1956 + $0x98] sm:$0xff]
    %v1977 = vld [vmem:[%s1956 + $0xa0] sm:$0xff]
    %v1978 = vld [vmem:[%s1956 + $0xa8] sm:$0xff]
    %v1979 = vld [vmem:[%s1956 + $0xb0] sm:$0xff]
    %v1980 = vld [vmem:[%s1956 + $0xb8] sm:$0xff]
    %v1981 = vld [vmem:[%s1956 + $0xc0] sm:$0xff]
    %v1982 = vld [vmem:[%s1956 + $0xc8] sm:$0xff]
    %v1983 = vld [vmem:[%s1956 + $0xd0] sm:$0xff]
    %v1984 = vld [vmem:[%s1956 + $0xd8] sm:$0xff]
    %v1985 = vld [vmem:[%s1956 + $0xe0] sm:$0xff]
    %v1986 = vld [vmem:[%s1956 + $0xe8] sm:$0xff]
    %v1987 = vld [vmem:[%s1956 + $0xf0] sm:$0xff]
    %v1988 = vld [vmem:[%s1956 + $0xf8] sm:$0xff]
    %s1989 = scalar_lea.vmem [#allocation11], 17
    %v1990 = vld [vmem:[%s1989] ss:$8 sm:$0x3]
    %v1992 = vlaneseq
    %v1993 = vshrl.u32 %v1992, 7
    %v1994 = vsub.s32 0, %v1993
    %v1995 = vrot.slane %v1990, %v1994
    %v1996 = vlaneseq
    %v1997 = vshrl.u32 %v1996, 7
    %v1998 = vsub.s32 1, %v1997
    %v1999 = vrot.slane %v1990, %v1998
    %v2034 = vunpack.c.l.b16 %v1957
    %v2035 = vunpack.c.h.b16 %v1957
    %v2036 = vunpack.c.l.b16 %v1958
    %v2037 = vunpack.c.h.b16 %v1958
    %v2038 = vunpack.c.l.b16 %v1959
    %v2039 = vunpack.c.h.b16 %v1959
    %v2040 = vunpack.c.l.b16 %v1960
    %v2041 = vunpack.c.h.b16 %v1960
    %v2042 = vunpack.c.l.b16 %v1961
    %v2043 = vunpack.c.h.b16 %v1961
    %v2044 = vunpack.c.l.b16 %v1962
    %v2045 = vunpack.c.h.b16 %v1962
    %v2046 = vunpack.c.l.b16 %v1963
    %v2047 = vunpack.c.h.b16 %v1963
    %v2048 = vunpack.c.l.b16 %v1964
    %v2049 = vunpack.c.h.b16 %v1964
    %v2050 = vunpack.c.l.b16 %v1965
    %v2051 = vunpack.c.h.b16 %v1965
    %v2052 = vunpack.c.l.b16 %v1966
    %v2053 = vunpack.c.h.b16 %v1966
    %v2054 = vunpack.c.l.b16 %v1967
    %v2055 = vunpack.c.h.b16 %v1967
    %v2056 = vunpack.c.l.b16 %v1968
    %v2057 = vunpack.c.h.b16 %v1968
    %v2058 = vunpack.c.l.b16 %v1969
    %v2059 = vunpack.c.h.b16 %v1969
    %v2060 = vunpack.c.l.b16 %v1970
    %v2061 = vunpack.c.h.b16 %v1970
    %v2062 = vunpack.c.l.b16 %v1971
    %v2063 = vunpack.c.h.b16 %v1971
    %v2064 = vunpack.c.l.b16 %v1972
    %v2065 = vunpack.c.h.b16 %v1972
    %v2066 = vunpack.c.l.b16 %v1973
    %v2067 = vunpack.c.h.b16 %v1973
    %v2068 = vunpack.c.l.b16 %v1974
    %v2069 = vunpack.c.h.b16 %v1974
    %v2070 = vunpack.c.l.b16 %v1975
    %v2071 = vunpack.c.h.b16 %v1975
    %v2072 = vunpack.c.l.b16 %v1976
    %v2073 = vunpack.c.h.b16 %v1976
    %v2074 = vunpack.c.l.b16 %v1977
    %v2075 = vunpack.c.h.b16 %v1977
    %v2076 = vunpack.c.l.b16 %v1978
    %v2077 = vunpack.c.h.b16 %v1978
    %v2078 = vunpack.c.l.b16 %v1979
    %v2079 = vunpack.c.h.b16 %v1979
    %v2080 = vunpack.c.l.b16 %v1980
    %v2081 = vunpack.c.h.b16 %v1980
    %v2082 = vunpack.c.l.b16 %v1981
    %v2083 = vunpack.c.h.b16 %v1981
    %v2084 = vunpack.c.l.b16 %v1982
    %v2085 = vunpack.c.h.b16 %v1982
    %v2086 = vunpack.c.l.b16 %v1983
    %v2087 = vunpack.c.h.b16 %v1983
    %v2088 = vunpack.c.l.b16 %v1984
    %v2089 = vunpack.c.h.b16 %v1984
    %v2090 = vunpack.c.l.b16 %v1985
    %v2091 = vunpack.c.h.b16 %v1985
    %v2092 = vunpack.c.l.b16 %v1986
    %v2093 = vunpack.c.h.b16 %v1986
    %v2094 = vunpack.c.l.b16 %v1987
    %v2095 = vunpack.c.h.b16 %v1987
    %v2096 = vunpack.c.l.b16 %v1988
    %v2097 = vunpack.c.h.b16 %v1988
    %v2098 = vpack.c.b16 %v2036, %v2034
    %v2099 = vpack.c.b16 %v2037, %v2035
    %v2100 = vpack.c.b16 %v2040, %v2038
    %v2101 = vpack.c.b16 %v2041, %v2039
    %v2102 = vpack.c.b16 %v2044, %v2042
    %v2103 = vpack.c.b16 %v2045, %v2043
    %v2104 = vpack.c.b16 %v2048, %v2046
    %v2105 = vpack.c.b16 %v2049, %v2047
    %v2106 = vpack.c.b16 %v2052, %v2050
    %v2107 = vpack.c.b16 %v2053, %v2051
    %v2108 = vpack.c.b16 %v2056, %v2054
    %v2109 = vpack.c.b16 %v2057, %v2055
    %v2110 = vpack.c.b16 %v2060, %v2058
    %v2111 = vpack.c.b16 %v2061, %v2059
    %v2112 = vpack.c.b16 %v2064, %v2062
    %v2113 = vpack.c.b16 %v2065, %v2063
    %v2114 = vpack.c.b16 %v2068, %v2066
    %v2115 = vpack.c.b16 %v2069, %v2067
    %v2116 = vpack.c.b16 %v2072, %v2070
    %v2117 = vpack.c.b16 %v2073, %v2071
    %v2118 = vpack.c.b16 %v2076, %v2074
    %v2119 = vpack.c.b16 %v2077, %v2075
    %v2120 = vpack.c.b16 %v2080, %v2078
    %v2121 = vpack.c.b16 %v2081, %v2079
    %v2122 = vpack.c.b16 %v2084, %v2082
    %v2123 = vpack.c.b16 %v2085, %v2083
    %v2124 = vpack.c.b16 %v2088, %v2086
    %v2125 = vpack.c.b16 %v2089, %v2087
    %v2126 = vpack.c.b16 %v2092, %v2090
    %v2127 = vpack.c.b16 %v2093, %v2091
    %v2128 = vpack.c.b16 %v2096, %v2094
    %v2129 = vpack.c.b16 %v2097, %v2095
    %2162 = vmatprep.subr.bf16.mxu0 %v2099
    %2163 = vmatpush1.bf16.msra.mxu0 %v2098
    %2164 = vmatprep.subr.bf16.mxu0 %v2101
    %2165 = vmatpush1.bf16.msra.mxu0 %v2100
    %2166 = vmatprep.subr.bf16.mxu0 %v2103
    %2167 = vmatpush1.bf16.msra.mxu0 %v2102
    %2168 = vmatprep.subr.bf16.mxu0 %v2105
    %2169 = vmatpush1.bf16.msra.mxu0 %v2104
    %2170 = vmatprep.subr.bf16.mxu0 %v2107
    %2171 = vmatpush1.bf16.msra.mxu0 %v2106
    %2172 = vmatprep.subr.bf16.mxu0 %v2109
    %2173 = vmatpush1.bf16.msra.mxu0 %v2108
    %2174 = vmatprep.subr.bf16.mxu0 %v2111
    %2175 = vmatpush1.bf16.msra.mxu0 %v2110
    %2176 = vmatprep.subr.bf16.mxu0 %v2113
    %2177 = vmatpush1.bf16.msra.mxu0 %v2112
    %2178 = vmatprep.subr.bf16.mxu0 %v2115
    %2179 = vmatpush1.bf16.msra.mxu0 %v2114
    %2180 = vmatprep.subr.bf16.mxu0 %v2117
    %2181 = vmatpush1.bf16.msra.mxu0 %v2116
    %2182 = vmatprep.subr.bf16.mxu0 %v2119
    %2183 = vmatpush1.bf16.msra.mxu0 %v2118
    %2184 = vmatprep.subr.bf16.mxu0 %v2121
    %2185 = vmatpush1.bf16.msra.mxu0 %v2120
    %2186 = vmatprep.subr.bf16.mxu0 %v2123
    %2187 = vmatpush1.bf16.msra.mxu0 %v2122
    %2188 = vmatprep.subr.bf16.mxu0 %v2125
    %2189 = vmatpush1.bf16.msra.mxu0 %v2124
    %2190 = vmatprep.subr.bf16.mxu0 %v2127
    %2191 = vmatpush1.bf16.msra.mxu0 %v2126
    %2192 = vmatprep.subr.bf16.mxu0 %v2129
    %2193 = vmatpush1.bf16.msra.mxu0 %v2128
    %2194 = vmatprep.mubr.bf16.mxu0 %v1955
    %2195 = vmatmul.mubr.bf16.gmra.mrb[0].mxu0 %v1954
    %v2196 = vpop.f32.mrb[0].mxu0
    %v2197 = vadd.f32 %v1995, %v2196
    %v2198 = vpop.f32.mrb[0].mxu0
    %v2199 = vadd.f32 %v1999, %v2198
    %v2200 = vpop.f32.mrb[0].mxu0
    %v2201 = vpop.f32.mrb[0].mxu0
    %2202 = vdwg.mxu0
    %v2203 = vmax.f32 %v2197, 0.0
    %v2204 = vmax.f32 %v2199, 0.0
    %v2205 = vadd.f32 %v1701, %v2203
    %v2206 = vadd.f32 %v1702, %v2204
    %v2207 = vpack.c.bf16 %v2205, %v2205
    %v2208 = vpack.c.bf16 %v2206, %v2206
    %s2209 = scalar_lea.vmem [#allocation8], 1024
    %v2210 = vld [vmem:[%s2209] sm:$0xff]
    %v2211 = vld [vmem:[%s2209 + $0x8] sm:$0xff]
    %v2212 = vld [vmem:[%s2209 + $0x10] sm:$0xff]
    %v2213 = vld [vmem:[%s2209 + $0x18] sm:$0xff]
    %v2214 = vld [vmem:[%s2209 + $0x20] sm:$0xff]
    %v2215 = vld [vmem:[%s2209 + $0x28] sm:$0xff]
    %v2216 = vld [vmem:[%s2209 + $0x30] sm:$0xff]
    %v2217 = vld [vmem:[%s2209 + $0x38] sm:$0xff]
    %v2218 = vld [vmem:[%s2209 + $0x40] sm:$0xff]
    %v2219 = vld [vmem:[%s2209 + $0x48] sm:$0xff]
    %v2220 = vld [vmem:[%s2209 + $0x50] sm:$0xff]
    %v2221 = vld [vmem:[%s2209 + $0x58] sm:$0xff]
    %v2222 = vld [vmem:[%s2209 + $0x60] sm:$0xff]
    %v2223 = vld [vmem:[%s2209 + $0x68] sm:$0xff]
    %v2224 = vld [vmem:[%s2209 + $0x70] sm:$0xff]
    %v2225 = vld [vmem:[%s2209 + $0x78] sm:$0xff]
    %v2226 = vld [vmem:[%s2209 + $0x80] sm:$0xff]
    %v2227 = vld [vmem:[%s2209 + $0x88] sm:$0xff]
    %v2228 = vld [vmem:[%s2209 + $0x90] sm:$0xff]
    %v2229 = vld [vmem:[%s2209 + $0x98] sm:$0xff]
    %v2230 = vld [vmem:[%s2209 + $0xa0] sm:$0xff]
    %v2231 = vld [vmem:[%s2209 + $0xa8] sm:$0xff]
    %v2232 = vld [vmem:[%s2209 + $0xb0] sm:$0xff]
    %v2233 = vld [vmem:[%s2209 + $0xb8] sm:$0xff]
    %v2234 = vld [vmem:[%s2209 + $0xc0] sm:$0xff]
    %v2235 = vld [vmem:[%s2209 + $0xc8] sm:$0xff]
    %v2236 = vld [vmem:[%s2209 + $0xd0] sm:$0xff]
    %v2237 = vld [vmem:[%s2209 + $0xd8] sm:$0xff]
    %v2238 = vld [vmem:[%s2209 + $0xe0] sm:$0xff]
    %v2239 = vld [vmem:[%s2209 + $0xe8] sm:$0xff]
    %v2240 = vld [vmem:[%s2209 + $0xf0] sm:$0xff]
    %v2241 = vld [vmem:[%s2209 + $0xf8] sm:$0xff]
    %s2242 = scalar_lea.vmem [#allocation11], 5
    %v2243 = vld [vmem:[%s2242] ss:$8 sm:$0x3]
    %v2245 = vlaneseq
    %v2246 = vshrl.u32 %v2245, 7
    %v2247 = vsub.s32 0, %v2246
    %v2248 = vrot.slane %v2243, %v2247
    %v2249 = vlaneseq
    %v2250 = vshrl.u32 %v2249, 7
    %v2251 = vsub.s32 1, %v2250
    %v2252 = vrot.slane %v2243, %v2251
    %v2287 = vunpack.c.l.b16 %v2210
    %v2288 = vunpack.c.h.b16 %v2210
    %v2289 = vunpack.c.l.b16 %v2211
    %v2290 = vunpack.c.h.b16 %v2211
    %v2291 = vunpack.c.l.b16 %v2212
    %v2292 = vunpack.c.h.b16 %v2212
    %v2293 = vunpack.c.l.b16 %v2213
    %v2294 = vunpack.c.h.b16 %v2213
    %v2295 = vunpack.c.l.b16 %v2214
    %v2296 = vunpack.c.h.b16 %v2214
    %v2297 = vunpack.c.l.b16 %v2215
    %v2298 = vunpack.c.h.b16 %v2215
    %v2299 = vunpack.c.l.b16 %v2216
    %v2300 = vunpack.c.h.b16 %v2216
    %v2301 = vunpack.c.l.b16 %v2217
    %v2302 = vunpack.c.h.b16 %v2217
    %v2303 = vunpack.c.l.b16 %v2218
    %v2304 = vunpack.c.h.b16 %v2218
    %v2305 = vunpack.c.l.b16 %v2219
    %v2306 = vunpack.c.h.b16 %v2219
    %v2307 = vunpack.c.l.b16 %v2220
    %v2308 = vunpack.c.h.b16 %v2220
    %v2309 = vunpack.c.l.b16 %v2221
    %v2310 = vunpack.c.h.b16 %v2221
    %v2311 = vunpack.c.l.b16 %v2222
    %v2312 = vunpack.c.h.b16 %v2222
    %v2313 = vunpack.c.l.b16 %v2223
    %v2314 = vunpack.c.h.b16 %v2223
    %v2315 = vunpack.c.l.b16 %v2224
    %v2316 = vunpack.c.h.b16 %v2224
    %v2317 = vunpack.c.l.b16 %v2225
    %v2318 = vunpack.c.h.b16 %v2225
    %v2319 = vunpack.c.l.b16 %v2226
    %v2320 = vunpack.c.h.b16 %v2226
    %v2321 = vunpack.c.l.b16 %v2227
    %v2322 = vunpack.c.h.b16 %v2227
    %v2323 = vunpack.c.l.b16 %v2228
    %v2324 = vunpack.c.h.b16 %v2228
    %v2325 = vunpack.c.l.b16 %v2229
    %v2326 = vunpack.c.h.b16 %v2229
    %v2327 = vunpack.c.l.b16 %v2230
    %v2328 = vunpack.c.h.b16 %v2230
    %v2329 = vunpack.c.l.b16 %v2231
    %v2330 = vunpack.c.h.b16 %v2231
    %v2331 = vunpack.c.l.b16 %v2232
    %v2332 = vunpack.c.h.b16 %v2232
    %v2333 = vunpack.c.l.b16 %v2233
    %v2334 = vunpack.c.h.b16 %v2233
    %v2335 = vunpack.c.l.b16 %v2234
    %v2336 = vunpack.c.h.b16 %v2234
    %v2337 = vunpack.c.l.b16 %v2235
    %v2338 = vunpack.c.h.b16 %v2235
    %v2339 = vunpack.c.l.b16 %v2236
    %v2340 = vunpack.c.h.b16 %v2236
    %v2341 = vunpack.c.l.b16 %v2237
    %v2342 = vunpack.c.h.b16 %v2237
    %v2343 = vunpack.c.l.b16 %v2238
    %v2344 = vunpack.c.h.b16 %v2238
    %v2345 = vunpack.c.l.b16 %v2239
    %v2346 = vunpack.c.h.b16 %v2239
    %v2347 = vunpack.c.l.b16 %v2240
    %v2348 = vunpack.c.h.b16 %v2240
    %v2349 = vunpack.c.l.b16 %v2241
    %v2350 = vunpack.c.h.b16 %v2241
    %v2351 = vpack.c.b16 %v2289, %v2287
    %v2352 = vpack.c.b16 %v2290, %v2288
    %v2353 = vpack.c.b16 %v2293, %v2291
    %v2354 = vpack.c.b16 %v2294, %v2292
    %v2355 = vpack.c.b16 %v2297, %v2295
    %v2356 = vpack.c.b16 %v2298, %v2296
    %v2357 = vpack.c.b16 %v2301, %v2299
    %v2358 = vpack.c.b16 %v2302, %v2300
    %v2359 = vpack.c.b16 %v2305, %v2303
    %v2360 = vpack.c.b16 %v2306, %v2304
    %v2361 = vpack.c.b16 %v2309, %v2307
    %v2362 = vpack.c.b16 %v2310, %v2308
    %v2363 = vpack.c.b16 %v2313, %v2311
    %v2364 = vpack.c.b16 %v2314, %v2312
    %v2365 = vpack.c.b16 %v2317, %v2315
    %v2366 = vpack.c.b16 %v2318, %v2316
    %v2367 = vpack.c.b16 %v2321, %v2319
    %v2368 = vpack.c.b16 %v2322, %v2320
    %v2369 = vpack.c.b16 %v2325, %v2323
    %v2370 = vpack.c.b16 %v2326, %v2324
    %v2371 = vpack.c.b16 %v2329, %v2327
    %v2372 = vpack.c.b16 %v2330, %v2328
    %v2373 = vpack.c.b16 %v2333, %v2331
    %v2374 = vpack.c.b16 %v2334, %v2332
    %v2375 = vpack.c.b16 %v2337, %v2335
    %v2376 = vpack.c.b16 %v2338, %v2336
    %v2377 = vpack.c.b16 %v2341, %v2339
    %v2378 = vpack.c.b16 %v2342, %v2340
    %v2379 = vpack.c.b16 %v2345, %v2343
    %v2380 = vpack.c.b16 %v2346, %v2344
    %v2381 = vpack.c.b16 %v2349, %v2347
    %v2382 = vpack.c.b16 %v2350, %v2348
    %2415 = vmatprep.subr.bf16.mxu0 %v2352
    %2416 = vmatpush1.bf16.msra.mxu0 %v2351
    %2417 = vmatprep.subr.bf16.mxu0 %v2354
    %2418 = vmatpush1.bf16.msra.mxu0 %v2353
    %2419 = vmatprep.subr.bf16.mxu0 %v2356
    %2420 = vmatpush1.bf16.msra.mxu0 %v2355
    %2421 = vmatprep.subr.bf16.mxu0 %v2358
    %2422 = vmatpush1.bf16.msra.mxu0 %v2357
    %2423 = vmatprep.subr.bf16.mxu0 %v2360
    %2424 = vmatpush1.bf16.msra.mxu0 %v2359
    %2425 = vmatprep.subr.bf16.mxu0 %v2362
    %2426 = vmatpush1.bf16.msra.mxu0 %v2361
    %2427 = vmatprep.subr.bf16.mxu0 %v2364
    %2428 = vmatpush1.bf16.msra.mxu0 %v2363
    %2429 = vmatprep.subr.bf16.mxu0 %v2366
    %2430 = vmatpush1.bf16.msra.mxu0 %v2365
    %2431 = vmatprep.subr.bf16.mxu0 %v2368
    %2432 = vmatpush1.bf16.msra.mxu0 %v2367
    %2433 = vmatprep.subr.bf16.mxu0 %v2370
    %2434 = vmatpush1.bf16.msra.mxu0 %v2369
    %2435 = vmatprep.subr.bf16.mxu0 %v2372
    %2436 = vmatpush1.bf16.msra.mxu0 %v2371
    %2437 = vmatprep.subr.bf16.mxu0 %v2374
    %2438 = vmatpush1.bf16.msra.mxu0 %v2373
    %2439 = vmatprep.subr.bf16.mxu0 %v2376
    %2440 = vmatpush1.bf16.msra.mxu0 %v2375
    %2441 = vmatprep.subr.bf16.mxu0 %v2378
    %2442 = vmatpush1.bf16.msra.mxu0 %v2377
    %2443 = vmatprep.subr.bf16.mxu0 %v2380
    %2444 = vmatpush1.bf16.msra.mxu0 %v2379
    %2445 = vmatprep.subr.bf16.mxu0 %v2382
    %2446 = vmatpush1.bf16.msra.mxu0 %v2381
    %2447 = vmatprep.mubr.bf16.mxu0 %v2208
    %2448 = vmatmul.mubr.bf16.gmra.mrb[0].mxu0 %v2207
    %v2449 = vpop.f32.mrb[0].mxu0
    %v2450 = vadd.f32 %v2248, %v2449
    %v2451 = vpop.f32.mrb[0].mxu0
    %v2452 = vadd.f32 %v2252, %v2451
    %v2453 = vpop.f32.mrb[0].mxu0
    %v2454 = vpop.f32.mrb[0].mxu0
    %2455 = vdwg.mxu0
    %v2456 = vmax.f32 %v2450, 0.0
    %v2457 = vmax.f32 %v2452, 0.0
    %v2458 = vpack.c.bf16 %v2456, %v2456
    %v2459 = vpack.c.bf16 %v2457, %v2457
    %s2460 = scalar_lea.vmem [#allocation8], 2304
    %v2461 = vld [vmem:[%s2460] sm:$0xff]
    %v2462 = vld [vmem:[%s2460 + $0x8] sm:$0xff]
    %v2463 = vld [vmem:[%s2460 + $0x10] sm:$0xff]
    %v2464 = vld [vmem:[%s2460 + $0x18] sm:$0xff]
    %v2465 = vld [vmem:[%s2460 + $0x20] sm:$0xff]
    %v2466 = vld [vmem:[%s2460 + $0x28] sm:$0xff]
    %v2467 = vld [vmem:[%s2460 + $0x30] sm:$0xff]
    %v2468 = vld [vmem:[%s2460 + $0x38] sm:$0xff]
    %v2469 = vld [vmem:[%s2460 + $0x40] sm:$0xff]
    %v2470 = vld [vmem:[%s2460 + $0x48] sm:$0xff]
    %v2471 = vld [vmem:[%s2460 + $0x50] sm:$0xff]
    %v2472 = vld [vmem:[%s2460 + $0x58] sm:$0xff]
    %v2473 = vld [vmem:[%s2460 + $0x60] sm:$0xff]
    %v2474 = vld [vmem:[%s2460 + $0x68] sm:$0xff]
    %v2475 = vld [vmem:[%s2460 + $0x70] sm:$0xff]
    %v2476 = vld [vmem:[%s2460 + $0x78] sm:$0xff]
    %v2477 = vld [vmem:[%s2460 + $0x80] sm:$0xff]
    %v2478 = vld [vmem:[%s2460 + $0x88] sm:$0xff]
    %v2479 = vld [vmem:[%s2460 + $0x90] sm:$0xff]
    %v2480 = vld [vmem:[%s2460 + $0x98] sm:$0xff]
    %v2481 = vld [vmem:[%s2460 + $0xa0] sm:$0xff]
    %v2482 = vld [vmem:[%s2460 + $0xa8] sm:$0xff]
    %v2483 = vld [vmem:[%s2460 + $0xb0] sm:$0xff]
    %v2484 = vld [vmem:[%s2460 + $0xb8] sm:$0xff]
    %v2485 = vld [vmem:[%s2460 + $0xc0] sm:$0xff]
    %v2486 = vld [vmem:[%s2460 + $0xc8] sm:$0xff]
    %v2487 = vld [vmem:[%s2460 + $0xd0] sm:$0xff]
    %v2488 = vld [vmem:[%s2460 + $0xd8] sm:$0xff]
    %v2489 = vld [vmem:[%s2460 + $0xe0] sm:$0xff]
    %v2490 = vld [vmem:[%s2460 + $0xe8] sm:$0xff]
    %v2491 = vld [vmem:[%s2460 + $0xf0] sm:$0xff]
    %v2492 = vld [vmem:[%s2460 + $0xf8] sm:$0xff]
    %s2493 = scalar_lea.vmem [#allocation11], 18
    %v2494 = vld [vmem:[%s2493] ss:$8 sm:$0x3]
    %v2496 = vlaneseq
    %v2497 = vshrl.u32 %v2496, 7
    %v2498 = vsub.s32 0, %v2497
    %v2499 = vrot.slane %v2494, %v2498
    %v2500 = vlaneseq
    %v2501 = vshrl.u32 %v2500, 7
    %v2502 = vsub.s32 1, %v2501
    %v2503 = vrot.slane %v2494, %v2502
    %v2538 = vunpack.c.l.b16 %v2461
    %v2539 = vunpack.c.h.b16 %v2461
    %v2540 = vunpack.c.l.b16 %v2462
    %v2541 = vunpack.c.h.b16 %v2462
    %v2542 = vunpack.c.l.b16 %v2463
    %v2543 = vunpack.c.h.b16 %v2463
    %v2544 = vunpack.c.l.b16 %v2464
    %v2545 = vunpack.c.h.b16 %v2464
    %v2546 = vunpack.c.l.b16 %v2465
    %v2547 = vunpack.c.h.b16 %v2465
    %v2548 = vunpack.c.l.b16 %v2466
    %v2549 = vunpack.c.h.b16 %v2466
    %v2550 = vunpack.c.l.b16 %v2467
    %v2551 = vunpack.c.h.b16 %v2467
    %v2552 = vunpack.c.l.b16 %v2468
    %v2553 = vunpack.c.h.b16 %v2468
    %v2554 = vunpack.c.l.b16 %v2469
    %v2555 = vunpack.c.h.b16 %v2469
    %v2556 = vunpack.c.l.b16 %v2470
    %v2557 = vunpack.c.h.b16 %v2470
    %v2558 = vunpack.c.l.b16 %v2471
    %v2559 = vunpack.c.h.b16 %v2471
    %v2560 = vunpack.c.l.b16 %v2472
    %v2561 = vunpack.c.h.b16 %v2472
    %v2562 = vunpack.c.l.b16 %v2473
    %v2563 = vunpack.c.h.b16 %v2473
    %v2564 = vunpack.c.l.b16 %v2474
    %v2565 = vunpack.c.h.b16 %v2474
    %v2566 = vunpack.c.l.b16 %v2475
    %v2567 = vunpack.c.h.b16 %v2475
    %v2568 = vunpack.c.l.b16 %v2476
    %v2569 = vunpack.c.h.b16 %v2476
    %v2570 = vunpack.c.l.b16 %v2477
    %v2571 = vunpack.c.h.b16 %v2477
    %v2572 = vunpack.c.l.b16 %v2478
    %v2573 = vunpack.c.h.b16 %v2478
    %v2574 = vunpack.c.l.b16 %v2479
    %v2575 = vunpack.c.h.b16 %v2479
    %v2576 = vunpack.c.l.b16 %v2480
    %v2577 = vunpack.c.h.b16 %v2480
    %v2578 = vunpack.c.l.b16 %v2481
    %v2579 = vunpack.c.h.b16 %v2481
    %v2580 = vunpack.c.l.b16 %v2482
    %v2581 = vunpack.c.h.b16 %v2482
    %v2582 = vunpack.c.l.b16 %v2483
    %v2583 = vunpack.c.h.b16 %v2483
    %v2584 = vunpack.c.l.b16 %v2484
    %v2585 = vunpack.c.h.b16 %v2484
    %v2586 = vunpack.c.l.b16 %v2485
    %v2587 = vunpack.c.h.b16 %v2485
    %v2588 = vunpack.c.l.b16 %v2486
    %v2589 = vunpack.c.h.b16 %v2486
    %v2590 = vunpack.c.l.b16 %v2487
    %v2591 = vunpack.c.h.b16 %v2487
    %v2592 = vunpack.c.l.b16 %v2488
    %v2593 = vunpack.c.h.b16 %v2488
    %v2594 = vunpack.c.l.b16 %v2489
    %v2595 = vunpack.c.h.b16 %v2489
    %v2596 = vunpack.c.l.b16 %v2490
    %v2597 = vunpack.c.h.b16 %v2490
    %v2598 = vunpack.c.l.b16 %v2491
    %v2599 = vunpack.c.h.b16 %v2491
    %v2600 = vunpack.c.l.b16 %v2492
    %v2601 = vunpack.c.h.b16 %v2492
    %v2602 = vpack.c.b16 %v2540, %v2538
    %v2603 = vpack.c.b16 %v2541, %v2539
    %v2604 = vpack.c.b16 %v2544, %v2542
    %v2605 = vpack.c.b16 %v2545, %v2543
    %v2606 = vpack.c.b16 %v2548, %v2546
    %v2607 = vpack.c.b16 %v2549, %v2547
    %v2608 = vpack.c.b16 %v2552, %v2550
    %v2609 = vpack.c.b16 %v2553, %v2551
    %v2610 = vpack.c.b16 %v2556, %v2554
    %v2611 = vpack.c.b16 %v2557, %v2555
    %v2612 = vpack.c.b16 %v2560, %v2558
    %v2613 = vpack.c.b16 %v2561, %v2559
    %v2614 = vpack.c.b16 %v2564, %v2562
    %v2615 = vpack.c.b16 %v2565, %v2563
    %v2616 = vpack.c.b16 %v2568, %v2566
    %v2617 = vpack.c.b16 %v2569, %v2567
    %v2618 = vpack.c.b16 %v2572, %v2570
    %v2619 = vpack.c.b16 %v2573, %v2571
    %v2620 = vpack.c.b16 %v2576, %v2574
    %v2621 = vpack.c.b16 %v2577, %v2575
    %v2622 = vpack.c.b16 %v2580, %v2578
    %v2623 = vpack.c.b16 %v2581, %v2579
    %v2624 = vpack.c.b16 %v2584, %v2582
    %v2625 = vpack.c.b16 %v2585, %v2583
    %v2626 = vpack.c.b16 %v2588, %v2586
    %v2627 = vpack.c.b16 %v2589, %v2587
    %v2628 = vpack.c.b16 %v2592, %v2590
    %v2629 = vpack.c.b16 %v2593, %v2591
    %v2630 = vpack.c.b16 %v2596, %v2594
    %v2631 = vpack.c.b16 %v2597, %v2595
    %v2632 = vpack.c.b16 %v2600, %v2598
    %v2633 = vpack.c.b16 %v2601, %v2599
    %2666 = vmatprep.subr.bf16.mxu0 %v2603
    %2667 = vmatpush1.bf16.msra.mxu0 %v2602
    %2668 = vmatprep.subr.bf16.mxu0 %v2605
    %2669 = vmatpush1.bf16.msra.mxu0 %v2604
    %2670 = vmatprep.subr.bf16.mxu0 %v2607
    %2671 = vmatpush1.bf16.msra.mxu0 %v2606
    %2672 = vmatprep.subr.bf16.mxu0 %v2609
    %2673 = vmatpush1.bf16.msra.mxu0 %v2608
    %2674 = vmatprep.subr.bf16.mxu0 %v2611
    %2675 = vmatpush1.bf16.msra.mxu0 %v2610
    %2676 = vmatprep.subr.bf16.mxu0 %v2613
    %2677 = vmatpush1.bf16.msra.mxu0 %v2612
    %2678 = vmatprep.subr.bf16.mxu0 %v2615
    %2679 = vmatpush1.bf16.msra.mxu0 %v2614
    %2680 = vmatprep.subr.bf16.mxu0 %v2617
    %2681 = vmatpush1.bf16.msra.mxu0 %v2616
    %2682 = vmatprep.subr.bf16.mxu0 %v2619
    %2683 = vmatpush1.bf16.msra.mxu0 %v2618
    %2684 = vmatprep.subr.bf16.mxu0 %v2621
    %2685 = vmatpush1.bf16.msra.mxu0 %v2620
    %2686 = vmatprep.subr.bf16.mxu0 %v2623
    %2687 = vmatpush1.bf16.msra.mxu0 %v2622
    %2688 = vmatprep.subr.bf16.mxu0 %v2625
    %2689 = vmatpush1.bf16.msra.mxu0 %v2624
    %2690 = vmatprep.subr.bf16.mxu0 %v2627
    %2691 = vmatpush1.bf16.msra.mxu0 %v2626
    %2692 = vmatprep.subr.bf16.mxu0 %v2629
    %2693 = vmatpush1.bf16.msra.mxu0 %v2628
    %2694 = vmatprep.subr.bf16.mxu0 %v2631
    %2695 = vmatpush1.bf16.msra.mxu0 %v2630
    %2696 = vmatprep.subr.bf16.mxu0 %v2633
    %2697 = vmatpush1.bf16.msra.mxu0 %v2632
    %2698 = vmatprep.mubr.bf16.mxu0 %v2459
    %2699 = vmatmul.mubr.bf16.gmra.mrb[0].mxu0 %v2458
    %v2700 = vpop.f32.mrb[0].mxu0
    %v2701 = vadd.f32 %v2499, %v2700
    %v2702 = vpop.f32.mrb[0].mxu0
    %v2703 = vadd.f32 %v2503, %v2702
    %v2704 = vpop.f32.mrb[0].mxu0
    %v2705 = vpop.f32.mrb[0].mxu0
    %2706 = vdwg.mxu0
    %v2707 = vmax.f32 %v2701, 0.0
    %v2708 = vmax.f32 %v2703, 0.0
    %v2709 = vadd.f32 %v2205, %v2707
    %v2710 = vadd.f32 %v2206, %v2708
    %s2711 = scalar_lea.vmem [#allocation11], 23
    %v2712 = vld [vmem:[%s2711] ss:$8 sm:$0x3]
    %v2714 = vlaneseq
    %v2715 = vshrl.u32 %v2714, 7
    %v2716 = vsub.s32 0, %v2715
    %v2717 = vrot.slane %v2712, %v2716
    %v2718 = vlaneseq
    %v2719 = vshrl.u32 %v2718, 7
    %v2720 = vsub.s32 1, %v2719
    %v2721 = vrot.slane %v2712, %v2720
    %v2724 = vmul.f32 %v2709, %v2717
    %v2725 = vmul.f32 %v2710, %v2721
    %v2726 = vadd.f32 %v2724, %v2725
    %2727 = vadd.xlane.f32.xlu0 %v2726
    %v2728 = vpop.xlane.xlu0 %2727
    %s2729 = sld [smem:[#allocation2]]
    %v2730 = vstv %s2729
    %v2731 = vadd.f32 %v2728, %v2730
    %vm2732 = vcmask 7168
    %2733 = vst.msk [vmem:[%s8] sm:$0xff] %vm2732, %v2731
    %v2734 = vpack.c.bf16 %v2709, %v2709
    %v2735 = vpack.c.bf16 %v2710, %v2710
    %s2736 = scalar_lea.vmem [#allocation8], 2560
    %v2737 = vld [vmem:[%s2736] sm:$0xff]
    %v2738 = vld [vmem:[%s2736 + $0x8] sm:$0xff]
    %v2739 = vld [vmem:[%s2736 + $0x10] sm:$0xff]
    %v2740 = vld [vmem:[%s2736 + $0x18] sm:$0xff]
    %v2741 = vld [vmem:[%s2736 + $0x20] sm:$0xff]
    %v2742 = vld [vmem:[%s2736 + $0x28] sm:$0xff]
    %v2743 = vld [vmem:[%s2736 + $0x30] sm:$0xff]
    %v2744 = vld [vmem:[%s2736 + $0x38] sm:$0xff]
    %v2745 = vld [vmem:[%s2736 + $0x40] sm:$0xff]
    %v2746 = vld [vmem:[%s2736 + $0x48] sm:$0xff]
    %v2747 = vld [vmem:[%s2736 + $0x50] sm:$0xff]
    %v2748 = vld [vmem:[%s2736 + $0x58] sm:$0xff]
    %v2749 = vld [vmem:[%s2736 + $0x60] sm:$0xff]
    %v2750 = vld [vmem:[%s2736 + $0x68] sm:$0xff]
    %v2751 = vld [vmem:[%s2736 + $0x70] sm:$0xff]
    %v2752 = vld [vmem:[%s2736 + $0x78] sm:$0xff]
    %v2753 = vld [vmem:[%s2736 + $0x80] sm:$0xff]
    %v2754 = vld [vmem:[%s2736 + $0x88] sm:$0xff]
    %v2755 = vld [vmem:[%s2736 + $0x90] sm:$0xff]
    %v2756 = vld [vmem:[%s2736 + $0x98] sm:$0xff]
    %v2757 = vld [vmem:[%s2736 + $0xa0] sm:$0xff]
    %v2758 = vld [vmem:[%s2736 + $0xa8] sm:$0xff]
    %v2759 = vld [vmem:[%s2736 + $0xb0] sm:$0xff]
    %v2760 = vld [vmem:[%s2736 + $0xb8] sm:$0xff]
    %v2761 = vld [vmem:[%s2736 + $0xc0] sm:$0xff]
    %v2762 = vld [vmem:[%s2736 + $0xc8] sm:$0xff]
    %v2763 = vld [vmem:[%s2736 + $0xd0] sm:$0xff]
    %v2764 = vld [vmem:[%s2736 + $0xd8] sm:$0xff]
    %v2765 = vld [vmem:[%s2736 + $0xe0] sm:$0xff]
    %v2766 = vld [vmem:[%s2736 + $0xe8] sm:$0xff]
    %v2767 = vld [vmem:[%s2736 + $0xf0] sm:$0xff]
    %v2768 = vld [vmem:[%s2736 + $0xf8] sm:$0xff]
    %s2769 = scalar_lea.vmem [#allocation11], 19
    %v2770 = vld [vmem:[%s2769] ss:$8 sm:$0x3]
    %v2772 = vlaneseq
    %v2773 = vshrl.u32 %v2772, 7
    %v2774 = vsub.s32 0, %v2773
    %v2775 = vrot.slane %v2770, %v2774
    %v2776 = vlaneseq
    %v2777 = vshrl.u32 %v2776, 7
    %v2778 = vsub.s32 1, %v2777
    %v2779 = vrot.slane %v2770, %v2778
    %v2814 = vunpack.c.l.b16 %v2737
    %v2815 = vunpack.c.h.b16 %v2737
    %v2816 = vunpack.c.l.b16 %v2738
    %v2817 = vunpack.c.h.b16 %v2738
    %v2818 = vunpack.c.l.b16 %v2739
    %v2819 = vunpack.c.h.b16 %v2739
    %v2820 = vunpack.c.l.b16 %v2740
    %v2821 = vunpack.c.h.b16 %v2740
    %v2822 = vunpack.c.l.b16 %v2741
    %v2823 = vunpack.c.h.b16 %v2741
    %v2824 = vunpack.c.l.b16 %v2742
    %v2825 = vunpack.c.h.b16 %v2742
    %v2826 = vunpack.c.l.b16 %v2743
    %v2827 = vunpack.c.h.b16 %v2743
    %v2828 = vunpack.c.l.b16 %v2744
    %v2829 = vunpack.c.h.b16 %v2744
    %v2830 = vunpack.c.l.b16 %v2745
    %v2831 = vunpack.c.h.b16 %v2745
    %v2832 = vunpack.c.l.b16 %v2746
    %v2833 = vunpack.c.h.b16 %v2746
    %v2834 = vunpack.c.l.b16 %v2747
    %v2835 = vunpack.c.h.b16 %v2747
    %v2836 = vunpack.c.l.b16 %v2748
    %v2837 = vunpack.c.h.b16 %v2748
    %v2838 = vunpack.c.l.b16 %v2749
    %v2839 = vunpack.c.h.b16 %v2749
    %v2840 = vunpack.c.l.b16 %v2750
    %v2841 = vunpack.c.h.b16 %v2750
    %v2842 = vunpack.c.l.b16 %v2751
    %v2843 = vunpack.c.h.b16 %v2751
    %v2844 = vunpack.c.l.b16 %v2752
    %v2845 = vunpack.c.h.b16 %v2752
    %v2846 = vunpack.c.l.b16 %v2753
    %v2847 = vunpack.c.h.b16 %v2753
    %v2848 = vunpack.c.l.b16 %v2754
    %v2849 = vunpack.c.h.b16 %v2754
    %v2850 = vunpack.c.l.b16 %v2755
    %v2851 = vunpack.c.h.b16 %v2755
    %v2852 = vunpack.c.l.b16 %v2756
    %v2853 = vunpack.c.h.b16 %v2756
    %v2854 = vunpack.c.l.b16 %v2757
    %v2855 = vunpack.c.h.b16 %v2757
    %v2856 = vunpack.c.l.b16 %v2758
    %v2857 = vunpack.c.h.b16 %v2758
    %v2858 = vunpack.c.l.b16 %v2759
    %v2859 = vunpack.c.h.b16 %v2759
    %v2860 = vunpack.c.l.b16 %v2760
    %v2861 = vunpack.c.h.b16 %v2760
    %v2862 = vunpack.c.l.b16 %v2761
    %v2863 = vunpack.c.h.b16 %v2761
    %v2864 = vunpack.c.l.b16 %v2762
    %v2865 = vunpack.c.h.b16 %v2762
    %v2866 = vunpack.c.l.b16 %v2763
    %v2867 = vunpack.c.h.b16 %v2763
    %v2868 = vunpack.c.l.b16 %v2764
    %v2869 = vunpack.c.h.b16 %v2764
    %v2870 = vunpack.c.l.b16 %v2765
    %v2871 = vunpack.c.h.b16 %v2765
    %v2872 = vunpack.c.l.b16 %v2766
    %v2873 = vunpack.c.h.b16 %v2766
    %v2874 = vunpack.c.l.b16 %v2767
    %v2875 = vunpack.c.h.b16 %v2767
    %v2876 = vunpack.c.l.b16 %v2768
    %v2877 = vunpack.c.h.b16 %v2768
    %v2878 = vpack.c.b16 %v2816, %v2814
    %v2879 = vpack.c.b16 %v2817, %v2815
    %v2880 = vpack.c.b16 %v2820, %v2818
    %v2881 = vpack.c.b16 %v2821, %v2819
    %v2882 = vpack.c.b16 %v2824, %v2822
    %v2883 = vpack.c.b16 %v2825, %v2823
    %v2884 = vpack.c.b16 %v2828, %v2826
    %v2885 = vpack.c.b16 %v2829, %v2827
    %v2886 = vpack.c.b16 %v2832, %v2830
    %v2887 = vpack.c.b16 %v2833, %v2831
    %v2888 = vpack.c.b16 %v2836, %v2834
    %v2889 = vpack.c.b16 %v2837, %v2835
    %v2890 = vpack.c.b16 %v2840, %v2838
    %v2891 = vpack.c.b16 %v2841, %v2839
    %v2892 = vpack.c.b16 %v2844, %v2842
    %v2893 = vpack.c.b16 %v2845, %v2843
    %v2894 = vpack.c.b16 %v2848, %v2846
    %v2895 = vpack.c.b16 %v2849, %v2847
    %v2896 = vpack.c.b16 %v2852, %v2850
    %v2897 = vpack.c.b16 %v2853, %v2851
    %v2898 = vpack.c.b16 %v2856, %v2854
    %v2899 = vpack.c.b16 %v2857, %v2855
    %v2900 = vpack.c.b16 %v2860, %v2858
    %v2901 = vpack.c.b16 %v2861, %v2859
    %v2902 = vpack.c.b16 %v2864, %v2862
    %v2903 = vpack.c.b16 %v2865, %v2863
    %v2904 = vpack.c.b16 %v2868, %v2866
    %v2905 = vpack.c.b16 %v2869, %v2867
    %v2906 = vpack.c.b16 %v2872, %v2870
    %v2907 = vpack.c.b16 %v2873, %v2871
    %v2908 = vpack.c.b16 %v2876, %v2874
    %v2909 = vpack.c.b16 %v2877, %v2875
    %2942 = vmatprep.subr.bf16.mxu0 %v2879
    %2943 = vmatpush1.bf16.msra.mxu0 %v2878
    %2944 = vmatprep.subr.bf16.mxu0 %v2881
    %2945 = vmatpush1.bf16.msra.mxu0 %v2880
    %2946 = vmatprep.subr.bf16.mxu0 %v2883
    %2947 = vmatpush1.bf16.msra.mxu0 %v2882
    %2948 = vmatprep.subr.bf16.mxu0 %v2885
    %2949 = vmatpush1.bf16.msra.mxu0 %v2884
    %2950 = vmatprep.subr.bf16.mxu0 %v2887
    %2951 = vmatpush1.bf16.msra.mxu0 %v2886
    %2952 = vmatprep.subr.bf16.mxu0 %v2889
    %2953 = vmatpush1.bf16.msra.mxu0 %v2888
    %2954 = vmatprep.subr.bf16.mxu0 %v2891
    %2955 = vmatpush1.bf16.msra.mxu0 %v2890
    %2956 = vmatprep.subr.bf16.mxu0 %v2893
    %2957 = vmatpush1.bf16.msra.mxu0 %v2892
    %2958 = vmatprep.subr.bf16.mxu0 %v2895
    %2959 = vmatpush1.bf16.msra.mxu0 %v2894
    %2960 = vmatprep.subr.bf16.mxu0 %v2897
    %2961 = vmatpush1.bf16.msra.mxu0 %v2896
    %2962 = vmatprep.subr.bf16.mxu0 %v2899
    %2963 = vmatpush1.bf16.msra.mxu0 %v2898
    %2964 = vmatprep.subr.bf16.mxu0 %v2901
    %2965 = vmatpush1.bf16.msra.mxu0 %v2900
    %2966 = vmatprep.subr.bf16.mxu0 %v2903
    %2967 = vmatpush1.bf16.msra.mxu0 %v2902
    %2968 = vmatprep.subr.bf16.mxu0 %v2905
    %2969 = vmatpush1.bf16.msra.mxu0 %v2904
    %2970 = vmatprep.subr.bf16.mxu0 %v2907
    %2971 = vmatpush1.bf16.msra.mxu0 %v2906
    %2972 = vmatprep.subr.bf16.mxu0 %v2909
    %2973 = vmatpush1.bf16.msra.mxu0 %v2908
    %2974 = vmatprep.mubr.bf16.mxu0 %v2735
    %2975 = vmatmul.mubr.bf16.gmra.mrb[0].mxu0 %v2734
    %v2976 = vpop.f32.mrb[0].mxu0
    %v2977 = vadd.f32 %v2775, %v2976
    %v2978 = vpop.f32.mrb[0].mxu0
    %v2979 = vadd.f32 %v2779, %v2978
    %v2980 = vpop.f32.mrb[0].mxu0
    %v2981 = vpop.f32.mrb[0].mxu0
    %2982 = vdwg.mxu0
    %v2983 = vmax.f32 %v2977, 0.0
    %v2984 = vmax.f32 %v2979, 0.0
    %v2985 = vpack.c.bf16 %v2983, %v2983
    %v2986 = vpack.c.bf16 %v2984, %v2984
    %s2987 = scalar_lea.vmem [#allocation8], 2816
    %v2988 = vld [vmem:[%s2987] sm:$0xff]
    %v2989 = vld [vmem:[%s2987 + $0x8] sm:$0xff]
    %v2990 = vld [vmem:[%s2987 + $0x10] sm:$0xff]
    %v2991 = vld [vmem:[%s2987 + $0x18] sm:$0xff]
    %v2992 = vld [vmem:[%s2987 + $0x20] sm:$0xff]
    %v2993 = vld [vmem:[%s2987 + $0x28] sm:$0xff]
    %v2994 = vld [vmem:[%s2987 + $0x30] sm:$0xff]
    %v2995 = vld [vmem:[%s2987 + $0x38] sm:$0xff]
    %v2996 = vld [vmem:[%s2987 + $0x40] sm:$0xff]
    %v2997 = vld [vmem:[%s2987 + $0x48] sm:$0xff]
    %v2998 = vld [vmem:[%s2987 + $0x50] sm:$0xff]
    %v2999 = vld [vmem:[%s2987 + $0x58] sm:$0xff]
    %v3000 = vld [vmem:[%s2987 + $0x60] sm:$0xff]
    %v3001 = vld [vmem:[%s2987 + $0x68] sm:$0xff]
    %v3002 = vld [vmem:[%s2987 + $0x70] sm:$0xff]
    %v3003 = vld [vmem:[%s2987 + $0x78] sm:$0xff]
    %v3004 = vld [vmem:[%s2987 + $0x80] sm:$0xff]
    %v3005 = vld [vmem:[%s2987 + $0x88] sm:$0xff]
    %v3006 = vld [vmem:[%s2987 + $0x90] sm:$0xff]
    %v3007 = vld [vmem:[%s2987 + $0x98] sm:$0xff]
    %v3008 = vld [vmem:[%s2987 + $0xa0] sm:$0xff]
    %v3009 = vld [vmem:[%s2987 + $0xa8] sm:$0xff]
    %v3010 = vld [vmem:[%s2987 + $0xb0] sm:$0xff]
    %v3011 = vld [vmem:[%s2987 + $0xb8] sm:$0xff]
    %v3012 = vld [vmem:[%s2987 + $0xc0] sm:$0xff]
    %v3013 = vld [vmem:[%s2987 + $0xc8] sm:$0xff]
    %v3014 = vld [vmem:[%s2987 + $0xd0] sm:$0xff]
    %v3015 = vld [vmem:[%s2987 + $0xd8] sm:$0xff]
    %v3016 = vld [vmem:[%s2987 + $0xe0] sm:$0xff]
    %v3017 = vld [vmem:[%s2987 + $0xe8] sm:$0xff]
    %v3018 = vld [vmem:[%s2987 + $0xf0] sm:$0xff]
    %v3019 = vld [vmem:[%s2987 + $0xf8] sm:$0xff]
    %s3020 = scalar_lea.vmem [#allocation11], 20
    %v3021 = vld [vmem:[%s3020] ss:$8 sm:$0x3]
    %v3023 = vlaneseq
    %v3024 = vshrl.u32 %v3023, 7
    %v3025 = vsub.s32 0, %v3024
    %v3026 = vrot.slane %v3021, %v3025
    %v3027 = vlaneseq
    %v3028 = vshrl.u32 %v3027, 7
    %v3029 = vsub.s32 1, %v3028
    %v3030 = vrot.slane %v3021, %v3029
    %v3065 = vunpack.c.l.b16 %v2988
    %v3066 = vunpack.c.h.b16 %v2988
    %v3067 = vunpack.c.l.b16 %v2989
    %v3068 = vunpack.c.h.b16 %v2989
    %v3069 = vunpack.c.l.b16 %v2990
    %v3070 = vunpack.c.h.b16 %v2990
    %v3071 = vunpack.c.l.b16 %v2991
    %v3072 = vunpack.c.h.b16 %v2991
    %v3073 = vunpack.c.l.b16 %v2992
    %v3074 = vunpack.c.h.b16 %v2992
    %v3075 = vunpack.c.l.b16 %v2993
    %v3076 = vunpack.c.h.b16 %v2993
    %v3077 = vunpack.c.l.b16 %v2994
    %v3078 = vunpack.c.h.b16 %v2994
    %v3079 = vunpack.c.l.b16 %v2995
    %v3080 = vunpack.c.h.b16 %v2995
    %v3081 = vunpack.c.l.b16 %v2996
    %v3082 = vunpack.c.h.b16 %v2996
    %v3083 = vunpack.c.l.b16 %v2997
    %v3084 = vunpack.c.h.b16 %v2997
    %v3085 = vunpack.c.l.b16 %v2998
    %v3086 = vunpack.c.h.b16 %v2998
    %v3087 = vunpack.c.l.b16 %v2999
    %v3088 = vunpack.c.h.b16 %v2999
    %v3089 = vunpack.c.l.b16 %v3000
    %v3090 = vunpack.c.h.b16 %v3000
    %v3091 = vunpack.c.l.b16 %v3001
    %v3092 = vunpack.c.h.b16 %v3001
    %v3093 = vunpack.c.l.b16 %v3002
    %v3094 = vunpack.c.h.b16 %v3002
    %v3095 = vunpack.c.l.b16 %v3003
    %v3096 = vunpack.c.h.b16 %v3003
    %v3097 = vunpack.c.l.b16 %v3004
    %v3098 = vunpack.c.h.b16 %v3004
    %v3099 = vunpack.c.l.b16 %v3005
    %v3100 = vunpack.c.h.b16 %v3005
    %v3101 = vunpack.c.l.b16 %v3006
    %v3102 = vunpack.c.h.b16 %v3006
    %v3103 = vunpack.c.l.b16 %v3007
    %v3104 = vunpack.c.h.b16 %v3007
    %v3105 = vunpack.c.l.b16 %v3008
    %v3106 = vunpack.c.h.b16 %v3008
    %v3107 = vunpack.c.l.b16 %v3009
    %v3108 = vunpack.c.h.b16 %v3009
    %v3109 = vunpack.c.l.b16 %v3010
    %v3110 = vunpack.c.h.b16 %v3010
    %v3111 = vunpack.c.l.b16 %v3011
    %v3112 = vunpack.c.h.b16 %v3011
    %v3113 = vunpack.c.l.b16 %v3012
    %v3114 = vunpack.c.h.b16 %v3012
    %v3115 = vunpack.c.l.b16 %v3013
    %v3116 = vunpack.c.h.b16 %v3013
    %v3117 = vunpack.c.l.b16 %v3014
    %v3118 = vunpack.c.h.b16 %v3014
    %v3119 = vunpack.c.l.b16 %v3015
    %v3120 = vunpack.c.h.b16 %v3015
    %v3121 = vunpack.c.l.b16 %v3016
    %v3122 = vunpack.c.h.b16 %v3016
    %v3123 = vunpack.c.l.b16 %v3017
    %v3124 = vunpack.c.h.b16 %v3017
    %v3125 = vunpack.c.l.b16 %v3018
    %v3126 = vunpack.c.h.b16 %v3018
    %v3127 = vunpack.c.l.b16 %v3019
    %v3128 = vunpack.c.h.b16 %v3019
    %v3129 = vpack.c.b16 %v3067, %v3065
    %v3130 = vpack.c.b16 %v3068, %v3066
    %v3131 = vpack.c.b16 %v3071, %v3069
    %v3132 = vpack.c.b16 %v3072, %v3070
    %v3133 = vpack.c.b16 %v3075, %v3073
    %v3134 = vpack.c.b16 %v3076, %v3074
    %v3135 = vpack.c.b16 %v3079, %v3077
    %v3136 = vpack.c.b16 %v3080, %v3078
    %v3137 = vpack.c.b16 %v3083, %v3081
    %v3138 = vpack.c.b16 %v3084, %v3082
    %v3139 = vpack.c.b16 %v3087, %v3085
    %v3140 = vpack.c.b16 %v3088, %v3086
    %v3141 = vpack.c.b16 %v3091, %v3089
    %v3142 = vpack.c.b16 %v3092, %v3090
    %v3143 = vpack.c.b16 %v3095, %v3093
    %v3144 = vpack.c.b16 %v3096, %v3094
    %v3145 = vpack.c.b16 %v3099, %v3097
    %v3146 = vpack.c.b16 %v3100, %v3098
    %v3147 = vpack.c.b16 %v3103, %v3101
    %v3148 = vpack.c.b16 %v3104, %v3102
    %v3149 = vpack.c.b16 %v3107, %v3105
    %v3150 = vpack.c.b16 %v3108, %v3106
    %v3151 = vpack.c.b16 %v3111, %v3109
    %v3152 = vpack.c.b16 %v3112, %v3110
    %v3153 = vpack.c.b16 %v3115, %v3113
    %v3154 = vpack.c.b16 %v3116, %v3114
    %v3155 = vpack.c.b16 %v3119, %v3117
    %v3156 = vpack.c.b16 %v3120, %v3118
    %v3157 = vpack.c.b16 %v3123, %v3121
    %v3158 = vpack.c.b16 %v3124, %v3122
    %v3159 = vpack.c.b16 %v3127, %v3125
    %v3160 = vpack.c.b16 %v3128, %v3126
    %3193 = vmatprep.subr.bf16.mxu0 %v3130
    %3194 = vmatpush1.bf16.msra.mxu0 %v3129
    %3195 = vmatprep.subr.bf16.mxu0 %v3132
    %3196 = vmatpush1.bf16.msra.mxu0 %v3131
    %3197 = vmatprep.subr.bf16.mxu0 %v3134
    %3198 = vmatpush1.bf16.msra.mxu0 %v3133
    %3199 = vmatprep.subr.bf16.mxu0 %v3136
    %3200 = vmatpush1.bf16.msra.mxu0 %v3135
    %3201 = vmatprep.subr.bf16.mxu0 %v3138
    %3202 = vmatpush1.bf16.msra.mxu0 %v3137
    %3203 = vmatprep.subr.bf16.mxu0 %v3140
    %3204 = vmatpush1.bf16.msra.mxu0 %v3139
    %3205 = vmatprep.subr.bf16.mxu0 %v3142
    %3206 = vmatpush1.bf16.msra.mxu0 %v3141
    %3207 = vmatprep.subr.bf16.mxu0 %v3144
    %3208 = vmatpush1.bf16.msra.mxu0 %v3143
    %3209 = vmatprep.subr.bf16.mxu0 %v3146
    %3210 = vmatpush1.bf16.msra.mxu0 %v3145
    %3211 = vmatprep.subr.bf16.mxu0 %v3148
    %3212 = vmatpush1.bf16.msra.mxu0 %v3147
    %3213 = vmatprep.subr.bf16.mxu0 %v3150
    %3214 = vmatpush1.bf16.msra.mxu0 %v3149
    %3215 = vmatprep.subr.bf16.mxu0 %v3152
    %3216 = vmatpush1.bf16.msra.mxu0 %v3151
    %3217 = vmatprep.subr.bf16.mxu0 %v3154
    %3218 = vmatpush1.bf16.msra.mxu0 %v3153
    %3219 = vmatprep.subr.bf16.mxu0 %v3156
    %3220 = vmatpush1.bf16.msra.mxu0 %v3155
    %3221 = vmatprep.subr.bf16.mxu0 %v3158
    %3222 = vmatpush1.bf16.msra.mxu0 %v3157
    %3223 = vmatprep.subr.bf16.mxu0 %v3160
    %3224 = vmatpush1.bf16.msra.mxu0 %v3159
    %3225 = vmatprep.mubr.bf16.mxu0 %v2986
    %3226 = vmatmul.mubr.bf16.gmra.mrb[0].mxu0 %v2985
    %v3227 = vpop.f32.mrb[0].mxu0
    %v3228 = vadd.f32 %v3026, %v3227
    %v3229 = vpop.f32.mrb[0].mxu0
    %v3230 = vadd.f32 %v3030, %v3229
    %v3231 = vpop.f32.mrb[0].mxu0
    %v3232 = vpop.f32.mrb[0].mxu0
    %3233 = vdwg.mxu0
    %v3234 = vmax.f32 %v3228, 0.0
    %v3235 = vmax.f32 %v3230, 0.0
    %v3236 = vpack.c.bf16 %v3234, %v3234
    %v3237 = vpack.c.bf16 %v3235, %v3235
    %s3238 = scalar_lea.vmem [#allocation8], 3072
    %v3239 = vld [vmem:[%s3238] sm:$0xff]
    %v3240 = vld [vmem:[%s3238 + $0x8] sm:$0xff]
    %v3241 = vld [vmem:[%s3238 + $0x10] sm:$0xff]
    %v3242 = vld [vmem:[%s3238 + $0x18] sm:$0xff]
    %v3243 = vld [vmem:[%s3238 + $0x20] sm:$0xff]
    %v3244 = vld [vmem:[%s3238 + $0x28] sm:$0xff]
    %v3245 = vld [vmem:[%s3238 + $0x30] sm:$0xff]
    %v3246 = vld [vmem:[%s3238 + $0x38] sm:$0xff]
    %v3247 = vld [vmem:[%s3238 + $0x40] sm:$0xff]
    %v3248 = vld [vmem:[%s3238 + $0x48] sm:$0xff]
    %v3249 = vld [vmem:[%s3238 + $0x50] sm:$0xff]
    %v3250 = vld [vmem:[%s3238 + $0x58] sm:$0xff]
    %v3251 = vld [vmem:[%s3238 + $0x60] sm:$0xff]
    %v3252 = vld [vmem:[%s3238 + $0x68] sm:$0xff]
    %v3253 = vld [vmem:[%s3238 + $0x70] sm:$0xff]
    %v3254 = vld [vmem:[%s3238 + $0x78] sm:$0xff]
    %v3255 = vld [vmem:[%s3238 + $0x80] sm:$0xff]
    %v3256 = vld [vmem:[%s3238 + $0x88] sm:$0xff]
    %v3257 = vld [vmem:[%s3238 + $0x90] sm:$0xff]
    %v3258 = vld [vmem:[%s3238 + $0x98] sm:$0xff]
    %v3259 = vld [vmem:[%s3238 + $0xa0] sm:$0xff]
    %v3260 = vld [vmem:[%s3238 + $0xa8] sm:$0xff]
    %v3261 = vld [vmem:[%s3238 + $0xb0] sm:$0xff]
    %v3262 = vld [vmem:[%s3238 + $0xb8] sm:$0xff]
    %v3263 = vld [vmem:[%s3238 + $0xc0] sm:$0xff]
    %v3264 = vld [vmem:[%s3238 + $0xc8] sm:$0xff]
    %v3265 = vld [vmem:[%s3238 + $0xd0] sm:$0xff]
    %v3266 = vld [vmem:[%s3238 + $0xd8] sm:$0xff]
    %v3267 = vld [vmem:[%s3238 + $0xe0] sm:$0xff]
    %v3268 = vld [vmem:[%s3238 + $0xe8] sm:$0xff]
    %v3269 = vld [vmem:[%s3238 + $0xf0] sm:$0xff]
    %v3270 = vld [vmem:[%s3238 + $0xf8] sm:$0xff]
    %s3271 = scalar_lea.vmem [#allocation11], 21
    %v3272 = vld [vmem:[%s3271] ss:$8 sm:$0x3]
    %v3274 = vlaneseq
    %v3275 = vshrl.u32 %v3274, 7
    %v3276 = vsub.s32 0, %v3275
    %v3277 = vrot.slane %v3272, %v3276
    %v3278 = vlaneseq
    %v3279 = vshrl.u32 %v3278, 7
    %v3280 = vsub.s32 1, %v3279
    %v3281 = vrot.slane %v3272, %v3280
    %v3316 = vunpack.c.l.b16 %v3239
    %v3317 = vunpack.c.h.b16 %v3239
    %v3318 = vunpack.c.l.b16 %v3240
    %v3319 = vunpack.c.h.b16 %v3240
    %v3320 = vunpack.c.l.b16 %v3241
    %v3321 = vunpack.c.h.b16 %v3241
    %v3322 = vunpack.c.l.b16 %v3242
    %v3323 = vunpack.c.h.b16 %v3242
    %v3324 = vunpack.c.l.b16 %v3243
    %v3325 = vunpack.c.h.b16 %v3243
    %v3326 = vunpack.c.l.b16 %v3244
    %v3327 = vunpack.c.h.b16 %v3244
    %v3328 = vunpack.c.l.b16 %v3245
    %v3329 = vunpack.c.h.b16 %v3245
    %v3330 = vunpack.c.l.b16 %v3246
    %v3331 = vunpack.c.h.b16 %v3246
    %v3332 = vunpack.c.l.b16 %v3247
    %v3333 = vunpack.c.h.b16 %v3247
    %v3334 = vunpack.c.l.b16 %v3248
    %v3335 = vunpack.c.h.b16 %v3248
    %v3336 = vunpack.c.l.b16 %v3249
    %v3337 = vunpack.c.h.b16 %v3249
    %v3338 = vunpack.c.l.b16 %v3250
    %v3339 = vunpack.c.h.b16 %v3250
    %v3340 = vunpack.c.l.b16 %v3251
    %v3341 = vunpack.c.h.b16 %v3251
    %v3342 = vunpack.c.l.b16 %v3252
    %v3343 = vunpack.c.h.b16 %v3252
    %v3344 = vunpack.c.l.b16 %v3253
    %v3345 = vunpack.c.h.b16 %v3253
    %v3346 = vunpack.c.l.b16 %v3254
    %v3347 = vunpack.c.h.b16 %v3254
    %v3348 = vunpack.c.l.b16 %v3255
    %v3349 = vunpack.c.h.b16 %v3255
    %v3350 = vunpack.c.l.b16 %v3256
    %v3351 = vunpack.c.h.b16 %v3256
    %v3352 = vunpack.c.l.b16 %v3257
    %v3353 = vunpack.c.h.b16 %v3257
    %v3354 = vunpack.c.l.b16 %v3258
    %v3355 = vunpack.c.h.b16 %v3258
    %v3356 = vunpack.c.l.b16 %v3259
    %v3357 = vunpack.c.h.b16 %v3259
    %v3358 = vunpack.c.l.b16 %v3260
    %v3359 = vunpack.c.h.b16 %v3260
    %v3360 = vunpack.c.l.b16 %v3261
    %v3361 = vunpack.c.h.b16 %v3261
    %v3362 = vunpack.c.l.b16 %v3262
    %v3363 = vunpack.c.h.b16 %v3262
    %v3364 = vunpack.c.l.b16 %v3263
    %v3365 = vunpack.c.h.b16 %v3263
    %v3366 = vunpack.c.l.b16 %v3264
    %v3367 = vunpack.c.h.b16 %v3264
    %v3368 = vunpack.c.l.b16 %v3265
    %v3369 = vunpack.c.h.b16 %v3265
    %v3370 = vunpack.c.l.b16 %v3266
    %v3371 = vunpack.c.h.b16 %v3266
    %v3372 = vunpack.c.l.b16 %v3267
    %v3373 = vunpack.c.h.b16 %v3267
    %v3374 = vunpack.c.l.b16 %v3268
    %v3375 = vunpack.c.h.b16 %v3268
    %v3376 = vunpack.c.l.b16 %v3269
    %v3377 = vunpack.c.h.b16 %v3269
    %v3378 = vunpack.c.l.b16 %v3270
    %v3379 = vunpack.c.h.b16 %v3270
    %v3380 = vpack.c.b16 %v3318, %v3316
    %v3381 = vpack.c.b16 %v3319, %v3317
    %v3382 = vpack.c.b16 %v3322, %v3320
    %v3383 = vpack.c.b16 %v3323, %v3321
    %v3384 = vpack.c.b16 %v3326, %v3324
    %v3385 = vpack.c.b16 %v3327, %v3325
    %v3386 = vpack.c.b16 %v3330, %v3328
    %v3387 = vpack.c.b16 %v3331, %v3329
    %v3388 = vpack.c.b16 %v3334, %v3332
    %v3389 = vpack.c.b16 %v3335, %v3333
    %v3390 = vpack.c.b16 %v3338, %v3336
    %v3391 = vpack.c.b16 %v3339, %v3337
    %v3392 = vpack.c.b16 %v3342, %v3340
    %v3393 = vpack.c.b16 %v3343, %v3341
    %v3394 = vpack.c.b16 %v3346, %v3344
    %v3395 = vpack.c.b16 %v3347, %v3345
    %v3396 = vpack.c.b16 %v3350, %v3348
    %v3397 = vpack.c.b16 %v3351, %v3349
    %v3398 = vpack.c.b16 %v3354, %v3352
    %v3399 = vpack.c.b16 %v3355, %v3353
    %v3400 = vpack.c.b16 %v3358, %v3356
    %v3401 = vpack.c.b16 %v3359, %v3357
    %v3402 = vpack.c.b16 %v3362, %v3360
    %v3403 = vpack.c.b16 %v3363, %v3361
    %v3404 = vpack.c.b16 %v3366, %v3364
    %v3405 = vpack.c.b16 %v3367, %v3365
    %v3406 = vpack.c.b16 %v3370, %v3368
    %v3407 = vpack.c.b16 %v3371, %v3369
    %v3408 = vpack.c.b16 %v3374, %v3372
    %v3409 = vpack.c.b16 %v3375, %v3373
    %v3410 = vpack.c.b16 %v3378, %v3376
    %v3411 = vpack.c.b16 %v3379, %v3377
    %3444 = vmatprep.subr.bf16.mxu0 %v3381
    %3445 = vmatpush1.bf16.msra.mxu0 %v3380
    %3446 = vmatprep.subr.bf16.mxu0 %v3383
    %3447 = vmatpush1.bf16.msra.mxu0 %v3382
    %3448 = vmatprep.subr.bf16.mxu0 %v3385
    %3449 = vmatpush1.bf16.msra.mxu0 %v3384
    %3450 = vmatprep.subr.bf16.mxu0 %v3387
    %3451 = vmatpush1.bf16.msra.mxu0 %v3386
    %3452 = vmatprep.subr.bf16.mxu0 %v3389
    %3453 = vmatpush1.bf16.msra.mxu0 %v3388
    %3454 = vmatprep.subr.bf16.mxu0 %v3391
    %3455 = vmatpush1.bf16.msra.mxu0 %v3390
    %3456 = vmatprep.subr.bf16.mxu0 %v3393
    %3457 = vmatpush1.bf16.msra.mxu0 %v3392
    %3458 = vmatprep.subr.bf16.mxu0 %v3395
    %3459 = vmatpush1.bf16.msra.mxu0 %v3394
    %3460 = vmatprep.subr.bf16.mxu0 %v3397
    %3461 = vmatpush1.bf16.msra.mxu0 %v3396
    %3462 = vmatprep.subr.bf16.mxu0 %v3399
    %3463 = vmatpush1.bf16.msra.mxu0 %v3398
    %3464 = vmatprep.subr.bf16.mxu0 %v3401
    %3465 = vmatpush1.bf16.msra.mxu0 %v3400
    %3466 = vmatprep.subr.bf16.mxu0 %v3403
    %3467 = vmatpush1.bf16.msra.mxu0 %v3402
    %3468 = vmatprep.subr.bf16.mxu0 %v3405
    %3469 = vmatpush1.bf16.msra.mxu0 %v3404
    %3470 = vmatprep.subr.bf16.mxu0 %v3407
    %3471 = vmatpush1.bf16.msra.mxu0 %v3406
    %3472 = vmatprep.subr.bf16.mxu0 %v3409
    %3473 = vmatpush1.bf16.msra.mxu0 %v3408
    %3474 = vmatprep.subr.bf16.mxu0 %v3411
    %3475 = vmatpush1.bf16.msra.mxu0 %v3410
    %3476 = vmatprep.mubr.bf16.mxu0 %v3237
    %3477 = vmatmul.mubr.bf16.gmra.mrb[0].mxu0 %v3236
    %v3478 = vpop.f32.mrb[0].mxu0
    %v3479 = vadd.f32 %v3277, %v3478
    %v3480 = vpop.f32.mrb[0].mxu0
    %v3481 = vadd.f32 %v3281, %v3480
    %v3482 = vpop.f32.mrb[0].mxu0
    %v3483 = vpop.f32.mrb[0].mxu0
    %3484 = vdwg.mxu0
    %v3485 = vmax.f32 %v3479, 0.0
    %v3486 = vmax.f32 %v3481, 0.0
    %v3487 = vpack.c.bf16 %v3485, %v3485
    %v3488 = vpack.c.bf16 %v3486, %v3486
    %s3489 = scalar_lea.vmem [#allocation8], 3328
    %v3490 = vld [vmem:[%s3489] sm:$0xff]
    %v3491 = vld [vmem:[%s3489 + $0x8] sm:$0xff]
    %v3492 = vld [vmem:[%s3489 + $0x10] sm:$0xff]
    %v3493 = vld [vmem:[%s3489 + $0x18] sm:$0xff]
    %v3494 = vld [vmem:[%s3489 + $0x20] sm:$0xff]
    %v3495 = vld [vmem:[%s3489 + $0x28] sm:$0xff]
    %v3496 = vld [vmem:[%s3489 + $0x30] sm:$0xff]
    %v3497 = vld [vmem:[%s3489 + $0x38] sm:$0xff]
    %v3498 = vld [vmem:[%s3489 + $0x40] sm:$0xff]
    %v3499 = vld [vmem:[%s3489 + $0x48] sm:$0xff]
    %v3500 = vld [vmem:[%s3489 + $0x50] sm:$0xff]
    %v3501 = vld [vmem:[%s3489 + $0x58] sm:$0xff]
    %v3502 = vld [vmem:[%s3489 + $0x60] sm:$0xff]
    %v3503 = vld [vmem:[%s3489 + $0x68] sm:$0xff]
    %v3504 = vld [vmem:[%s3489 + $0x70] sm:$0xff]
    %v3505 = vld [vmem:[%s3489 + $0x78] sm:$0xff]
    %v3506 = vld [vmem:[%s3489 + $0x80] sm:$0xff]
    %v3507 = vld [vmem:[%s3489 + $0x88] sm:$0xff]
    %v3508 = vld [vmem:[%s3489 + $0x90] sm:$0xff]
    %v3509 = vld [vmem:[%s3489 + $0x98] sm:$0xff]
    %v3510 = vld [vmem:[%s3489 + $0xa0] sm:$0xff]
    %v3511 = vld [vmem:[%s3489 + $0xa8] sm:$0xff]
    %v3512 = vld [vmem:[%s3489 + $0xb0] sm:$0xff]
    %v3513 = vld [vmem:[%s3489 + $0xb8] sm:$0xff]
    %v3514 = vld [vmem:[%s3489 + $0xc0] sm:$0xff]
    %v3515 = vld [vmem:[%s3489 + $0xc8] sm:$0xff]
    %v3516 = vld [vmem:[%s3489 + $0xd0] sm:$0xff]
    %v3517 = vld [vmem:[%s3489 + $0xd8] sm:$0xff]
    %v3518 = vld [vmem:[%s3489 + $0xe0] sm:$0xff]
    %v3519 = vld [vmem:[%s3489 + $0xe8] sm:$0xff]
    %v3520 = vld [vmem:[%s3489 + $0xf0] sm:$0xff]
    %v3521 = vld [vmem:[%s3489 + $0xf8] sm:$0xff]
    %s3522 = scalar_lea.vmem [#allocation11], 22
    %v3523 = vld [vmem:[%s3522] ss:$8 sm:$0x3]
    %v3525 = vlaneseq
    %v3526 = vshrl.u32 %v3525, 7
    %v3527 = vsub.s32 0, %v3526
    %v3528 = vrot.slane %v3523, %v3527
    %v3529 = vlaneseq
    %v3530 = vshrl.u32 %v3529, 7
    %v3531 = vsub.s32 1, %v3530
    %v3532 = vrot.slane %v3523, %v3531
    %v3567 = vunpack.c.l.b16 %v3490
    %v3568 = vunpack.c.h.b16 %v3490
    %v3569 = vunpack.c.l.b16 %v3491
    %v3570 = vunpack.c.h.b16 %v3491
    %v3571 = vunpack.c.l.b16 %v3492
    %v3572 = vunpack.c.h.b16 %v3492
    %v3573 = vunpack.c.l.b16 %v3493
    %v3574 = vunpack.c.h.b16 %v3493
    %v3575 = vunpack.c.l.b16 %v3494
    %v3576 = vunpack.c.h.b16 %v3494
    %v3577 = vunpack.c.l.b16 %v3495
    %v3578 = vunpack.c.h.b16 %v3495
    %v3579 = vunpack.c.l.b16 %v3496
    %v3580 = vunpack.c.h.b16 %v3496
    %v3581 = vunpack.c.l.b16 %v3497
    %v3582 = vunpack.c.h.b16 %v3497
    %v3583 = vunpack.c.l.b16 %v3498
    %v3584 = vunpack.c.h.b16 %v3498
    %v3585 = vunpack.c.l.b16 %v3499
    %v3586 = vunpack.c.h.b16 %v3499
    %v3587 = vunpack.c.l.b16 %v3500
    %v3588 = vunpack.c.h.b16 %v3500
    %v3589 = vunpack.c.l.b16 %v3501
    %v3590 = vunpack.c.h.b16 %v3501
    %v3591 = vunpack.c.l.b16 %v3502
    %v3592 = vunpack.c.h.b16 %v3502
    %v3593 = vunpack.c.l.b16 %v3503
    %v3594 = vunpack.c.h.b16 %v3503
    %v3595 = vunpack.c.l.b16 %v3504
    %v3596 = vunpack.c.h.b16 %v3504
    %v3597 = vunpack.c.l.b16 %v3505
    %v3598 = vunpack.c.h.b16 %v3505
    %v3599 = vunpack.c.l.b16 %v3506
    %v3600 = vunpack.c.h.b16 %v3506
    %v3601 = vunpack.c.l.b16 %v3507
    %v3602 = vunpack.c.h.b16 %v3507
    %v3603 = vunpack.c.l.b16 %v3508
    %v3604 = vunpack.c.h.b16 %v3508
    %v3605 = vunpack.c.l.b16 %v3509
    %v3606 = vunpack.c.h.b16 %v3509
    %v3607 = vunpack.c.l.b16 %v3510
    %v3608 = vunpack.c.h.b16 %v3510
    %v3609 = vunpack.c.l.b16 %v3511
    %v3610 = vunpack.c.h.b16 %v3511
    %v3611 = vunpack.c.l.b16 %v3512
    %v3612 = vunpack.c.h.b16 %v3512
    %v3613 = vunpack.c.l.b16 %v3513
    %v3614 = vunpack.c.h.b16 %v3513
    %v3615 = vunpack.c.l.b16 %v3514
    %v3616 = vunpack.c.h.b16 %v3514
    %v3617 = vunpack.c.l.b16 %v3515
    %v3618 = vunpack.c.h.b16 %v3515
    %v3619 = vunpack.c.l.b16 %v3516
    %v3620 = vunpack.c.h.b16 %v3516
    %v3621 = vunpack.c.l.b16 %v3517
    %v3622 = vunpack.c.h.b16 %v3517
    %v3623 = vunpack.c.l.b16 %v3518
    %v3624 = vunpack.c.h.b16 %v3518
    %v3625 = vunpack.c.l.b16 %v3519
    %v3626 = vunpack.c.h.b16 %v3519
    %v3627 = vunpack.c.l.b16 %v3520
    %v3628 = vunpack.c.h.b16 %v3520
    %v3629 = vunpack.c.l.b16 %v3521
    %v3630 = vunpack.c.h.b16 %v3521
    %v3631 = vpack.c.b16 %v3569, %v3567
    %v3632 = vpack.c.b16 %v3570, %v3568
    %v3633 = vpack.c.b16 %v3573, %v3571
    %v3634 = vpack.c.b16 %v3574, %v3572
    %v3635 = vpack.c.b16 %v3577, %v3575
    %v3636 = vpack.c.b16 %v3578, %v3576
    %v3637 = vpack.c.b16 %v3581, %v3579
    %v3638 = vpack.c.b16 %v3582, %v3580
    %v3639 = vpack.c.b16 %v3585, %v3583
    %v3640 = vpack.c.b16 %v3586, %v3584
    %v3641 = vpack.c.b16 %v3589, %v3587
    %v3642 = vpack.c.b16 %v3590, %v3588
    %v3643 = vpack.c.b16 %v3593, %v3591
    %v3644 = vpack.c.b16 %v3594, %v3592
    %v3645 = vpack.c.b16 %v3597, %v3595
    %v3646 = vpack.c.b16 %v3598, %v3596
    %v3647 = vpack.c.b16 %v3601, %v3599
    %v3648 = vpack.c.b16 %v3602, %v3600
    %v3649 = vpack.c.b16 %v3605, %v3603
    %v3650 = vpack.c.b16 %v3606, %v3604
    %v3651 = vpack.c.b16 %v3609, %v3607
    %v3652 = vpack.c.b16 %v3610, %v3608
    %v3653 = vpack.c.b16 %v3613, %v3611
    %v3654 = vpack.c.b16 %v3614, %v3612
    %v3655 = vpack.c.b16 %v3617, %v3615
    %v3656 = vpack.c.b16 %v3618, %v3616
    %v3657 = vpack.c.b16 %v3621, %v3619
    %v3658 = vpack.c.b16 %v3622, %v3620
    %v3659 = vpack.c.b16 %v3625, %v3623
    %v3660 = vpack.c.b16 %v3626, %v3624
    %v3661 = vpack.c.b16 %v3629, %v3627
    %v3662 = vpack.c.b16 %v3630, %v3628
    %3695 = vmatprep.subr.bf16.mxu0 %v3632
    %3696 = vmatpush1.bf16.msra.mxu0 %v3631
    %3697 = vmatprep.subr.bf16.mxu0 %v3634
    %3698 = vmatpush1.bf16.msra.mxu0 %v3633
    %3699 = vmatprep.subr.bf16.mxu0 %v3636
    %3700 = vmatpush1.bf16.msra.mxu0 %v3635
    %3701 = vmatprep.subr.bf16.mxu0 %v3638
    %3702 = vmatpush1.bf16.msra.mxu0 %v3637
    %3703 = vmatprep.subr.bf16.mxu0 %v3640
    %3704 = vmatpush1.bf16.msra.mxu0 %v3639
    %3705 = vmatprep.subr.bf16.mxu0 %v3642
    %3706 = vmatpush1.bf16.msra.mxu0 %v3641
    %3707 = vmatprep.subr.bf16.mxu0 %v3644
    %3708 = vmatpush1.bf16.msra.mxu0 %v3643
    %3709 = vmatprep.subr.bf16.mxu0 %v3646
    %3710 = vmatpush1.bf16.msra.mxu0 %v3645
    %3711 = vmatprep.subr.bf16.mxu0 %v3648
    %3712 = vmatpush1.bf16.msra.mxu0 %v3647
    %3713 = vmatprep.subr.bf16.mxu0 %v3650
    %3714 = vmatpush1.bf16.msra.mxu0 %v3649
    %3715 = vmatprep.subr.bf16.mxu0 %v3652
    %3716 = vmatpush1.bf16.msra.mxu0 %v3651
    %3717 = vmatprep.subr.bf16.mxu0 %v3654
    %3718 = vmatpush1.bf16.msra.mxu0 %v3653
    %3719 = vmatprep.subr.bf16.mxu0 %v3656
    %3720 = vmatpush1.bf16.msra.mxu0 %v3655
    %3721 = vmatprep.subr.bf16.mxu0 %v3658
    %3722 = vmatpush1.bf16.msra.mxu0 %v3657
    %3723 = vmatprep.subr.bf16.mxu0 %v3660
    %3724 = vmatpush1.bf16.msra.mxu0 %v3659
    %3725 = vmatprep.subr.bf16.mxu0 %v3662
    %3726 = vmatpush1.bf16.msra.mxu0 %v3661
    %3727 = vmatprep.mubr.bf16.mxu0 %v3488
    %3728 = vmatmul.mubr.bf16.gmra.mrb[0].mxu0 %v3487
    %v3729 = vpop.f32.mrb[0].mxu0
    %v3730 = vadd.f32 %v3528, %v3729
    %v3731 = vpop.f32.mrb[0].mxu0
    %v3732 = vadd.f32 %v3532, %v3731
    %v3733 = vpop.f32.mrb[0].mxu0
    %v3734 = vpop.f32.mrb[0].mxu0
    %3735 = vdwg.mxu0
    %v3736 = vmax.f32 %v3730, 0.0
    %v3737 = vmax.f32 %v3732, 0.0
    %v3738 = vpack.c.bf16 %v3736, %v3736
    %v3739 = vpack.c.bf16 %v3737, %v3737
    %v3740 = vld [vmem:[#allocation9] sm:$0xf]
    %v3741 = vld [vmem:[#allocation9 + $0x4] sm:$0xf]
    %v3742 = vld [vmem:[#allocation9 + $0x8] sm:$0xf]
    %v3743 = vld [vmem:[#allocation9 + $0xc] sm:$0xf]
    %v3744 = vld [vmem:[#allocation9 + $0x10] sm:$0xf]
    %v3745 = vld [vmem:[#allocation9 + $0x14] sm:$0xf]
    %v3746 = vld [vmem:[#allocation9 + $0x18] sm:$0xf]
    %v3747 = vld [vmem:[#allocation9 + $0x1c] sm:$0xf]
    %v3748 = vld [vmem:[#allocation9 + $0x20] sm:$0xf]
    %v3749 = vld [vmem:[#allocation9 + $0x24] sm:$0xf]
    %v3750 = vld [vmem:[#allocation9 + $0x28] sm:$0xf]
    %v3751 = vld [vmem:[#allocation9 + $0x2c] sm:$0xf]
    %v3752 = vld [vmem:[#allocation9 + $0x30] sm:$0xf]
    %v3753 = vld [vmem:[#allocation9 + $0x34] sm:$0xf]
    %v3754 = vld [vmem:[#allocation9 + $0x38] sm:$0xf]
    %v3755 = vld [vmem:[#allocation9 + $0x3c] sm:$0xf]
    %v3756 = vld [vmem:[#allocation9 + $0x40] sm:$0xf]
    %v3757 = vld [vmem:[#allocation9 + $0x44] sm:$0xf]
    %v3758 = vld [vmem:[#allocation9 + $0x48] sm:$0xf]
    %v3759 = vld [vmem:[#allocation9 + $0x4c] sm:$0xf]
    %v3760 = vld [vmem:[#allocation9 + $0x50] sm:$0xf]
    %v3761 = vld [vmem:[#allocation9 + $0x54] sm:$0xf]
    %v3762 = vld [vmem:[#allocation9 + $0x58] sm:$0xf]
    %v3763 = vld [vmem:[#allocation9 + $0x5c] sm:$0xf]
    %v3764 = vld [vmem:[#allocation9 + $0x60] sm:$0xf]
    %v3765 = vld [vmem:[#allocation9 + $0x64] sm:$0xf]
    %v3766 = vld [vmem:[#allocation9 + $0x68] sm:$0xf]
    %v3767 = vld [vmem:[#allocation9 + $0x6c] sm:$0xf]
    %v3768 = vld [vmem:[#allocation9 + $0x70] sm:$0xf]
    %v3769 = vld [vmem:[#allocation9 + $0x74] sm:$0xf]
    %v3770 = vld [vmem:[#allocation9 + $0x78] sm:$0xf]
    %v3771 = vld [vmem:[#allocation9 + $0x7c] sm:$0xf]
    %v3772 = vld [vmem:[#allocation12] sm:$0x1]
    %v3774 = vlaneseq
    %v3775 = vshrl.u32 %v3774, 7
    %v3776 = vsub.s32 0, %v3775
    %v3777 = vrot.slane %v3772, %v3776
    %v3811 = vunpack.c.l.b16 %v3740
    %v3812 = vunpack.c.l.b16 %v3741
    %v3813 = vunpack.c.l.b16 %v3742
    %v3814 = vunpack.c.l.b16 %v3743
    %v3815 = vunpack.c.l.b16 %v3744
    %v3816 = vunpack.c.l.b16 %v3745
    %v3817 = vunpack.c.l.b16 %v3746
    %v3818 = vunpack.c.l.b16 %v3747
    %v3819 = vunpack.c.l.b16 %v3748
    %v3820 = vunpack.c.l.b16 %v3749
    %v3821 = vunpack.c.l.b16 %v3750
    %v3822 = vunpack.c.l.b16 %v3751
    %v3823 = vunpack.c.l.b16 %v3752
    %v3824 = vunpack.c.l.b16 %v3753
    %v3825 = vunpack.c.l.b16 %v3754
    %v3826 = vunpack.c.l.b16 %v3755
    %v3827 = vunpack.c.l.b16 %v3756
    %v3828 = vunpack.c.l.b16 %v3757
    %v3829 = vunpack.c.l.b16 %v3758
    %v3830 = vunpack.c.l.b16 %v3759
    %v3831 = vunpack.c.l.b16 %v3760
    %v3832 = vunpack.c.l.b16 %v3761
    %v3833 = vunpack.c.l.b16 %v3762
    %v3834 = vunpack.c.l.b16 %v3763
    %v3835 = vunpack.c.l.b16 %v3764
    %v3836 = vunpack.c.l.b16 %v3765
    %v3837 = vunpack.c.l.b16 %v3766
    %v3838 = vunpack.c.l.b16 %v3767
    %v3839 = vunpack.c.l.b16 %v3768
    %v3840 = vunpack.c.l.b16 %v3769
    %v3841 = vunpack.c.l.b16 %v3770
    %v3842 = vunpack.c.l.b16 %v3771
    %v3843 = vpack.c.b16 %v3812, %v3811
    %v3844 = vpack.c.b16 %v3814, %v3813
    %v3845 = vpack.c.b16 %v3816, %v3815
    %v3846 = vpack.c.b16 %v3818, %v3817
    %v3847 = vpack.c.b16 %v3820, %v3819
    %v3848 = vpack.c.b16 %v3822, %v3821
    %v3849 = vpack.c.b16 %v3824, %v3823
    %v3850 = vpack.c.b16 %v3826, %v3825
    %v3851 = vpack.c.b16 %v3828, %v3827
    %v3852 = vpack.c.b16 %v3830, %v3829
    %v3853 = vpack.c.b16 %v3832, %v3831
    %v3854 = vpack.c.b16 %v3834, %v3833
    %v3855 = vpack.c.b16 %v3836, %v3835
    %v3856 = vpack.c.b16 %v3838, %v3837
    %v3857 = vpack.c.b16 %v3840, %v3839
    %v3858 = vpack.c.b16 %v3842, %v3841
    %3875 = vmatprep.subr.bf16.mxu0 0
    %3876 = vmatpush1.bf16.msra.mxu0 %v3843
    %3877 = vmatprep.subr.bf16.mxu0 0
    %3878 = vmatpush1.bf16.msra.mxu0 %v3844
    %3879 = vmatprep.subr.bf16.mxu0 0
    %3880 = vmatpush1.bf16.msra.mxu0 %v3845
    %3881 = vmatprep.subr.bf16.mxu0 0
    %3882 = vmatpush1.bf16.msra.mxu0 %v3846
    %3883 = vmatprep.subr.bf16.mxu0 0
    %3884 = vmatpush1.bf16.msra.mxu0 %v3847
    %3885 = vmatprep.subr.bf16.mxu0 0
    %3886 = vmatpush1.bf16.msra.mxu0 %v3848
    %3887 = vmatprep.subr.bf16.mxu0 0
    %3888 = vmatpush1.bf16.msra.mxu0 %v3849
    %3889 = vmatprep.subr.bf16.mxu0 0
    %3890 = vmatpush1.bf16.msra.mxu0 %v3850
    %3891 = vmatprep.subr.bf16.mxu0 0
    %3892 = vmatpush1.bf16.msra.mxu0 %v3851
    %3893 = vmatprep.subr.bf16.mxu0 0
    %3894 = vmatpush1.bf16.msra.mxu0 %v3852
    %3895 = vmatprep.subr.bf16.mxu0 0
    %3896 = vmatpush1.bf16.msra.mxu0 %v3853
    %3897 = vmatprep.subr.bf16.mxu0 0
    %3898 = vmatpush1.bf16.msra.mxu0 %v3854
    %3899 = vmatprep.subr.bf16.mxu0 0
    %3900 = vmatpush1.bf16.msra.mxu0 %v3855
    %3901 = vmatprep.subr.bf16.mxu0 0
    %3902 = vmatpush1.bf16.msra.mxu0 %v3856
    %3903 = vmatprep.subr.bf16.mxu0 0
    %3904 = vmatpush1.bf16.msra.mxu0 %v3857
    %3905 = vmatprep.subr.bf16.mxu0 0
    %3906 = vmatpush1.bf16.msra.mxu0 %v3858
    %3907 = vmatprep.mubr.bf16.mxu0 %v3739
    %3908 = vmatmul.mubr.bf16.gmra.mrb[0].mxu0 %v3738
    %v3909 = vpop.f32.mrb[0].mxu0
    %v3910 = vadd.f32 %v3777, %v3909
    %v3911 = vpop.f32.mrb[0].mxu0
    %v3912 = vpop.f32.mrb[0].mxu0
    %v3913 = vpop.f32.mrb[0].mxu0
    %3914 = vdwg.mxu0
    %3915 = vmax.xlane.f32.xlu0 %v3910
    %v3916 = vpop.xlane.xlu0 %3915
    %v3917 = vsub.f32 %v3910, %v3916
    %v3918 = vmul.f32 %v3917, 1.442695
    %v3919 = vpow.pop %v3918
    %3920 = vadd.xlane.f32.xlu0 %v3919
    %v3921 = vpop.xlane.xlu0 %3920
    %v3922 = vlog2.pop %v3921
    %v3923 = vmul.f32 %v3922, 0.6931472
    %v3924 = vsub.f32 %v3917, %v3923
    %3925 = vst [vmem:[#allocation14] sm:$0xff] %v3924
    // Predicated region
    $region54: #{tpu_custom_call.1} parent=1 // pred_check
      _
    $region55: #{tpu_custom_call.1} parent=1 // pred_check_branch
      %3927 = sbr.rel (0) target = $region57
    $region56: #{tpu_custom_call.1} parent=1 // pred_region
      %s3929 = ssub.s32 128, 128
      %3930 = vsyncadd [#allocation5], %s3929
      %s3932 = sshll.u32 [#allocation14], 4
      %s3933 = int_to_ptr.vmem [resolvable:$true] %s3932
      %3935 = dma.vmem_to_hbm [thread:$0]  %s3933, 128, %s7, [#allocation5]
    $region57: #{tpu_custom_call.1} parent=1 // pred_fallthru
      _
    // Predicated region
    $region58: #{tpu_custom_call.1} parent=1 // pred_check
      _
    $region59: #{tpu_custom_call.1} parent=1 // pred_check_branch
      %3937 = sbr.rel (0) target = $region61
    $region60: #{tpu_custom_call.1} parent=1 // pred_region
      _
    $region61: #{tpu_custom_call.1} parent=1 // pred_fallthru
      _
    // Predicated region
    $region62: #{tpu_custom_call.1} parent=1 // pred_check
      _
    $region63: #{tpu_custom_call.1} parent=1 // pred_check_branch
      %3939 = sbr.rel (0) target = $region65
    $region64: #{tpu_custom_call.1} parent=1 // pred_region
      %3940 = dma.done [#allocation5], 128
    $region65: #{tpu_custom_call.1} parent=1 // pred_fallthru
      _
    // Predicated region
    $region66: #{tpu_custom_call.1} parent=1 // pred_check
      _
    $region67: #{tpu_custom_call.1} parent=1 // pred_check_branch
      %3942 = sbr.rel (0) target = $region69
    $region68: #{tpu_custom_call.1} parent=1 // pred_region
      _
    $region69: #{tpu_custom_call.1} parent=1 // pred_fallthru
      _
    %3943 = vsyncpa [#allocation4], 1
    %3944 = vsyncpa [#allocation7], 1
    %3945 = vsyncpa [#allocation10], 1
    %3946 = vsyncpa [#allocation13], 1
    %3947 = vsyncpa [#allocation5], 1

</llo_original>
